<compile_context>
chip_gen: v7x
topology: tpu7x:2x2x1
jax: 0.10.0
libtpu: 0.0.40
codegen_flags: <defaults>
</compile_context>

<pallas_src>
import functools

import jax
import jax.numpy as jnp
from jax import lax
from jax.experimental import pallas as pl
from jax.experimental.pallas import tpu as pltpu

_PW = 8  # zero-pad width on the W side (multiple of 8 keeps concats aligned)


def _round_up(n, m):
    return (n + m - 1) // m * m


def _leaky_relu(x, slope=0.2):
    return jnp.where(x > 0, x, slope * x)


def conv_block_kernel(x_ref, w1_ref, b1_ref, w2_ref, b2_ref, o_ref,
                      *, H, W, C_in, C_out, downsample):
    """One grid step == one image.

    x_ref : (C_in, H*W)      f32, channels already padded to a multiple of 8
    w1_ref: (C_out, 9*C_in)  bf16, column = (3*dy + dx) * C_in + c
    b1_ref: (C_out, 1)       f32
    w2_ref: (C_out, 9*C_out) bf16
    b2_ref: (C_out, 1)       f32
    o_ref : (C_out, Ho*Wo)   f32  (lane-dense output slab)
    """
    HW = H * W

    def conv3x3(v_hwc, c, w_ref, b_ref):
        # v_hwc: (H, W, c) f32  ->  (C_out, H*W) f32 with bias + LeakyReLU.
        zw = jnp.zeros((H, _PW, c), jnp.float32)
        vp = jnp.concatenate([zw, v_hwc, zw], axis=1)          # (H, W+2*_PW, c)
        zh = jnp.zeros((1, W + 2 * _PW, c), jnp.float32)
        vp = jnp.concatenate([zh, vp, zh], axis=0)             # (H+2, W+2*_PW, c)

        # im2col, assembled on the sublane axis (channels-on-sublanes).
        taps = []
        for dy in range(3):
            for dx in range(3):
                patch = vp[dy:dy + H, _PW - 1 + dx:_PW - 1 + dx + W, :]
                taps.append(patch.reshape(HW, c).T)            # (c, H*W)
        slab_t = jnp.concatenate(taps, axis=0)                 # (9*c, H*W) f32

        acc = jnp.dot(w_ref[...], slab_t.astype(jnp.bfloat16),
                      preferred_element_type=jnp.float32)      # (C_out, H*W) f32
        return _leaky_relu(acc + b_ref[...])

    # channels-last spatial view of the input (single small XLU transpose)
    x_hwc = x_ref[...].T.reshape(H, W, C_in)

    y1_t = conv3x3(x_hwc, C_in, w1_ref, b1_ref)                # (C_out, H*W)
    y2_t = conv3x3(y1_t.T.reshape(H, W, C_out), C_out, w2_ref, b2_ref)

    if downsample:
        t = y2_t.T.reshape(H // 2, 2, W // 2, 2, C_out)
        pooled = (t[:, 0, :, 0, :] + t[:, 0, :, 1, :] +
                  t[:, 1, :, 0, :] + t[:, 1, :, 1, :]) * 0.25  # (Ho, Wo, C_out)
        out_t = pooled.reshape((H // 2) * (W // 2), C_out).T   # (C_out, Ho*Wo)
    else:
        out_t = y2_t
    o_ref[...] = out_t.astype(o_ref.dtype)


def conv_block_forward(x_nchw, w1, b1, w2, b2, *, downsample=True):
    """x_nchw: (B, C_in, H, W) float32.  Returns NCHW output like PyTorch."""
    B, C_in, H, W = x_nchw.shape
    C_out = w1.shape[0]
    if downsample:
        assert H % 2 == 0 and W % 2 == 0
    Ho, Wo = (H // 2, W // 2) if downsample else (H, W)
    HW = H * W

    # sublane-align channel dims (no-op when already multiples of 8)
    C_in8 = _round_up(C_in, 8)
    C_out8 = _round_up(C_out, 8)

    # --- glue (plain JAX): metadata-only spatial flatten + tiny repacks ---
    x_flat = x_nchw.reshape(B, C_in, HW)
    if C_in8 != C_in:
        x_flat = jnp.pad(x_flat, ((0, 0), (0, C_in8 - C_in), (0, 0)))

    def repack_w(w, cin, cin8, cout, cout8):
        # (Cout, Cin, 3, 3) -> (Cout8, 9*Cin8), tap-major / channel-minor, bf16
        w = jnp.pad(w, ((0, cout8 - cout), (0, cin8 - cin), (0, 0), (0, 0)))
        w = jnp.transpose(w, (0, 2, 3, 1)).reshape(cout8, 9 * cin8)
        return w.astype(jnp.bfloat16)

    w1_p = repack_w(w1, C_in, C_in8, C_out, C_out8)        # (C_out8, 9*C_in8)
    w2_p = repack_w(w2, C_out, C_out8, C_out, C_out8)      # (C_out8, 9*C_out8)
    b1_p = jnp.pad(b1, (0, C_out8 - C_out)).reshape(C_out8, 1).astype(jnp.float32)
    b2_p = jnp.pad(b2, (0, C_out8 - C_out)).reshape(C_out8, 1).astype(jnp.float32)

    kernel = functools.partial(conv_block_kernel, H=H, W=W, C_in=C_in8,
                               C_out=C_out8, downsample=downsample)

    flops = 2 * B * HW * 9 * (C_in8 + C_out8) * C_out8
    bytes_accessed = (4 * B * C_in8 * HW + 2 * w1_p.size + 2 * w2_p.size
                      + 4 * (b1_p.size + b2_p.size) + 4 * B * C_out8 * Ho * Wo)

    out = pl.pallas_call(
        kernel,
        out_shape=jax.ShapeDtypeStruct((B, C_out8, Ho * Wo), jnp.float32),
        grid_spec=pltpu.PrefetchScalarGridSpec(
            num_scalar_prefetch=0,
            grid=(B,),
            in_specs=[
                pl.BlockSpec((None, C_in8, HW), lambda b: (b, 0, 0)),
                pl.BlockSpec((C_out8, 9 * C_in8), lambda b: (0, 0)),
                pl.BlockSpec((C_out8, 1), lambda b: (0, 0)),
                pl.BlockSpec((C_out8, 9 * C_out8), lambda b: (0, 0)),
                pl.BlockSpec((C_out8, 1), lambda b: (0, 0)),
            ],
            out_specs=pl.BlockSpec((None, C_out8, Ho * Wo),
                                   lambda b: (b, 0, 0)),
        ),
        compiler_params=pltpu.CompilerParams(
            dimension_semantics=("parallel",),
            vmem_limit_bytes=64 * 1024 * 1024),
        cost_estimate=pl.CostEstimate(flops=flops, transcendentals=0,
                                      bytes_accessed=bytes_accessed),
    )(x_flat, w1_p, b1_p, w2_p, b2_p)

    out = out.reshape(B, C_out8, Ho, Wo)
    if C_out8 != C_out:
        out = out[:, :C_out]
    return out


def _reference_forward(x_nchw, w1, b1, w2, b2, *, downsample=True):
    """Pure-JAX reference mirroring the PyTorch ConvBlock (for verification)."""
    dn = lax.conv_dimension_numbers(x_nchw.shape, w1.shape,
                                    ("NCHW", "OIHW", "NCHW"))
    y = lax.conv_general_dilated(x_nchw, w1, (1, 1), ((1, 1), (1, 1)),
                                 dimension_numbers=dn)
    y = _leaky_relu(y + b1[None, :, None, None])
    y = lax.conv_general_dilated(y, w2, (1, 1), ((1, 1), (1, 1)),
                                 dimension_numbers=dn)
    y = _leaky_relu(y + b2[None, :, None, None])
    if downsample:
        B, C, H, W = y.shape
        y = y.reshape(B, C, H // 2, 2, W // 2, 2).mean(axis=(3, 5))
    return y


if __name__ == "__main__":
    B, C_in, C_out, H, W = 2, 4, 8, 16, 16

    key = jax.random.PRNGKey(0)
    kx, kw1, kb1, kw2, kb2 = jax.random.split(key, 5)

    x = jax.random.normal(kx, (B, C_in, H, W), jnp.float32)
    # deterministic synthetic parameters (PyTorch Conv2d shapes)
    w1 = 0.1 * jax.random.normal(kw1, (C_out, C_in, 3, 3), jnp.float32)
    b1 = 0.1 * jax.random.normal(kb1, (C_out,), jnp.float32)
    w2 = 0.1 * jax.random.normal(kw2, (C_out, C_out, 3, 3), jnp.float32)
    b2 = 0.1 * jax.random.normal(kb2, (C_out,), jnp.float32)

    out = conv_block_forward(x, w1, b1, w2, b2, downsample=True)
    out = jax.block_until_ready(out)

    ref = _reference_forward(x, w1, b1, w2, b2, downsample=True)
    assert out.shape == (B, C_out, H // 2, W // 2), out.shape
    max_err = jnp.max(jnp.abs(out - ref))
    # bf16 matmul operands with f32 accumulation -> loosened tolerance
    assert jnp.allclose(out, ref, atol=3e-2, rtol=3e-2), (
        f"mismatch vs reference (max abs err {max_err})")

    print("KERNEL_OK")
</pallas_src>

<mosaic_0001>
module attributes {stable_mosaic.version = 11 : i64} {
  func.func @conv_block_kernel(%arg0: i32, %arg1: memref<1x8x256xf32, #tpu.memory_space<vmem>>, %arg2: memref<8x72xbf16, #tpu.memory_space<vmem>>, %arg3: memref<8x1xf32, #tpu.memory_space<vmem>>, %arg4: memref<8x72xbf16, #tpu.memory_space<vmem>>, %arg5: memref<8x1xf32, #tpu.memory_space<vmem>>, %arg6: memref<1x8x64xf32, #tpu.memory_space<vmem>>) attributes {dimension_semantics = [#tpu.dimension_semantics<parallel>], iteration_bounds = array<i64: 2>, scalar_prefetch = 0 : i64, scratch_operands = 0 : i64, tpu.core_type = #tpu.core_type<tc>, window_params = [{transform_indices = @transform_0, window_bounds = array<i64: 1, 8, 256>}, {pipeline_mode = #tpu.pipeline_mode<synchronous>, transform_indices = @transform_1, window_bounds = array<i64: 8, 72>}, {pipeline_mode = #tpu.pipeline_mode<synchronous>, transform_indices = @transform_2, window_bounds = array<i64: 8, 1>}, {pipeline_mode = #tpu.pipeline_mode<synchronous>, transform_indices = @transform_3, window_bounds = array<i64: 8, 72>}, {pipeline_mode = #tpu.pipeline_mode<synchronous>, transform_indices = @transform_4, window_bounds = array<i64: 8, 1>}, {transform_indices = @transform_5, window_bounds = array<i64: 1, 8, 64>}]} {
    %c0 = arith.constant 0 : index
    %c0_0 = arith.constant 0 : index
    %c0_1 = arith.constant 0 : index
    %0 = vector.load %arg1[%c0, %c0_0, %c0_1] : memref<1x8x256xf32, #tpu.memory_space<vmem>>, vector<1x8x256xf32>
    %1 = vector.shape_cast %0 : vector<1x8x256xf32> to vector<8x256xf32>
    %2 = tpu.transpose %1, [1, 0] : vector<8x256xf32> -> vector<256x8xf32>
    %3 = vector.shape_cast %2 : vector<256x8xf32> to vector<16x16x8xf32>
    %cst = arith.constant 0.000000e+00 : f32
    %4 = vector.broadcast %cst : f32 to vector<16x8x8xf32>
    %5 = tpu.concatenate %4, %3, %4 in 1 : vector<16x8x8xf32>, vector<16x16x8xf32>, vector<16x8x8xf32> -> vector<16x32x8xf32>
    %cst_2 = arith.constant 0.000000e+00 : f32
    %6 = vector.broadcast %cst_2 : f32 to vector<1x32x8xf32>
    %7 = tpu.concatenate %6, %5, %6 in 0 : vector<1x32x8xf32>, vector<16x32x8xf32>, vector<1x32x8xf32> -> vector<18x32x8xf32>
    %8 = vector.extract_strided_slice %7 {offsets = [0, 7, 0], sizes = [16, 16, 8], strides = [1, 1, 1]} : vector<18x32x8xf32> to vector<16x16x8xf32>
    %9 = vector.shape_cast %8 : vector<16x16x8xf32> to vector<256x8xf32>
    %10 = tpu.transpose %9, [1, 0] : vector<256x8xf32> -> vector<8x256xf32>
    %11 = vector.extract_strided_slice %7 {offsets = [0, 8, 0], sizes = [16, 16, 8], strides = [1, 1, 1]} : vector<18x32x8xf32> to vector<16x16x8xf32>
    %12 = vector.shape_cast %11 : vector<16x16x8xf32> to vector<256x8xf32>
    %13 = tpu.transpose %12, [1, 0] : vector<256x8xf32> -> vector<8x256xf32>
    %14 = vector.extract_strided_slice %7 {offsets = [0, 9, 0], sizes = [16, 16, 8], strides = [1, 1, 1]} : vector<18x32x8xf32> to vector<16x16x8xf32>
    %15 = vector.shape_cast %14 : vector<16x16x8xf32> to vector<256x8xf32>
    %16 = tpu.transpose %15, [1, 0] : vector<256x8xf32> -> vector<8x256xf32>
    %17 = vector.extract_strided_slice %7 {offsets = [1, 7, 0], sizes = [16, 16, 8], strides = [1, 1, 1]} : vector<18x32x8xf32> to vector<16x16x8xf32>
    %18 = vector.shape_cast %17 : vector<16x16x8xf32> to vector<256x8xf32>
    %19 = tpu.transpose %18, [1, 0] : vector<256x8xf32> -> vector<8x256xf32>
    %20 = vector.extract_strided_slice %7 {offsets = [1, 8, 0], sizes = [16, 16, 8], strides = [1, 1, 1]} : vector<18x32x8xf32> to vector<16x16x8xf32>
    %21 = vector.shape_cast %20 : vector<16x16x8xf32> to vector<256x8xf32>
    %22 = tpu.transpose %21, [1, 0] : vector<256x8xf32> -> vector<8x256xf32>
    %23 = vector.extract_strided_slice %7 {offsets = [1, 9, 0], sizes = [16, 16, 8], strides = [1, 1, 1]} : vector<18x32x8xf32> to vector<16x16x8xf32>
    %24 = vector.shape_cast %23 : vector<16x16x8xf32> to vector<256x8xf32>
    %25 = tpu.transpose %24, [1, 0] : vector<256x8xf32> -> vector<8x256xf32>
    %26 = vector.extract_strided_slice %7 {offsets = [2, 7, 0], sizes = [16, 16, 8], strides = [1, 1, 1]} : vector<18x32x8xf32> to vector<16x16x8xf32>
    %27 = vector.shape_cast %26 : vector<16x16x8xf32> to vector<256x8xf32>
    %28 = tpu.transpose %27, [1, 0] : vector<256x8xf32> -> vector<8x256xf32>
    %29 = vector.extract_strided_slice %7 {offsets = [2, 8, 0], sizes = [16, 16, 8], strides = [1, 1, 1]} : vector<18x32x8xf32> to vector<16x16x8xf32>
    %30 = vector.shape_cast %29 : vector<16x16x8xf32> to vector<256x8xf32>
    %31 = tpu.transpose %30, [1, 0] : vector<256x8xf32> -> vector<8x256xf32>
    %32 = vector.extract_strided_slice %7 {offsets = [2, 9, 0], sizes = [16, 16, 8], strides = [1, 1, 1]} : vector<18x32x8xf32> to vector<16x16x8xf32>
    %33 = vector.shape_cast %32 : vector<16x16x8xf32> to vector<256x8xf32>
    %34 = tpu.transpose %33, [1, 0] : vector<256x8xf32> -> vector<8x256xf32>
    %35 = tpu.concatenate %10, %13, %16, %19, %22, %25, %28, %31, %34 in 0 : vector<8x256xf32>, vector<8x256xf32>, vector<8x256xf32>, vector<8x256xf32>, vector<8x256xf32>, vector<8x256xf32>, vector<8x256xf32>, vector<8x256xf32>, vector<8x256xf32> -> vector<72x256xf32>
    %c0_3 = arith.constant 0 : index
    %c0_4 = arith.constant 0 : index
    %36 = vector.load %arg2[%c0_3, %c0_4] : memref<8x72xbf16, #tpu.memory_space<vmem>>, vector<8x72xbf16>
    %37 = arith.truncf %35 : vector<72x256xf32> to vector<72x256xbf16>
    %cst_5 = arith.constant dense<0.000000e+00> : vector<8x256xf32>
    %38 = tpu.matmul %36, %37, %cst_5 {dimension_numbers = #tpu.dot_dimension_numbers<[1], [0], [0], [1], [0, 0, 1, 1], [], []>} : vector<8x72xbf16>, vector<72x256xbf16>, vector<8x256xf32> -> vector<8x256xf32>
    %c0_6 = arith.constant 0 : index
    %c0_7 = arith.constant 0 : index
    %39 = vector.load %arg3[%c0_6, %c0_7] : memref<8x1xf32, #tpu.memory_space<vmem>>, vector<8x1xf32>
    %40 = vector.broadcast %39 : vector<8x1xf32> to vector<8x256xf32>
    %41 = arith.addf %38, %40 : vector<8x256xf32>
    %cst_8 = arith.constant 0.000000e+00 : f32
    %42 = vector.broadcast %cst_8 : f32 to vector<8x256xf32>
    %43 = arith.cmpf ogt, %41, %42 : vector<8x256xf32>
    %cst_9 = arith.constant 2.000000e-01 : f32
    %44 = vector.broadcast %cst_9 : f32 to vector<8x256xf32>
    %45 = arith.mulf %44, %41 : vector<8x256xf32>
    %46 = arith.select %43, %41, %45 : vector<8x256xi1>, vector<8x256xf32>
    %47 = tpu.transpose %46, [1, 0] : vector<8x256xf32> -> vector<256x8xf32>
    %48 = vector.shape_cast %47 : vector<256x8xf32> to vector<16x16x8xf32>
    %cst_10 = arith.constant 0.000000e+00 : f32
    %49 = vector.broadcast %cst_10 : f32 to vector<16x8x8xf32>
    %50 = tpu.concatenate %49, %48, %49 in 1 : vector<16x8x8xf32>, vector<16x16x8xf32>, vector<16x8x8xf32> -> vector<16x32x8xf32>
    %cst_11 = arith.constant 0.000000e+00 : f32
    %51 = vector.broadcast %cst_11 : f32 to vector<1x32x8xf32>
    %52 = tpu.concatenate %51, %50, %51 in 0 : vector<1x32x8xf32>, vector<16x32x8xf32>, vector<1x32x8xf32> -> vector<18x32x8xf32>
    %53 = vector.extract_strided_slice %52 {offsets = [0, 7, 0], sizes = [16, 16, 8], strides = [1, 1, 1]} : vector<18x32x8xf32> to vector<16x16x8xf32>
    %54 = vector.shape_cast %53 : vector<16x16x8xf32> to vector<256x8xf32>
    %55 = tpu.transpose %54, [1, 0] : vector<256x8xf32> -> vector<8x256xf32>
    %56 = vector.extract_strided_slice %52 {offsets = [0, 8, 0], sizes = [16, 16, 8], strides = [1, 1, 1]} : vector<18x32x8xf32> to vector<16x16x8xf32>
    %57 = vector.shape_cast %56 : vector<16x16x8xf32> to vector<256x8xf32>
    %58 = tpu.transpose %57, [1, 0] : vector<256x8xf32> -> vector<8x256xf32>
    %59 = vector.extract_strided_slice %52 {offsets = [0, 9, 0], sizes = [16, 16, 8], strides = [1, 1, 1]} : vector<18x32x8xf32> to vector<16x16x8xf32>
    %60 = vector.shape_cast %59 : vector<16x16x8xf32> to vector<256x8xf32>
    %61 = tpu.transpose %60, [1, 0] : vector<256x8xf32> -> vector<8x256xf32>
    %62 = vector.extract_strided_slice %52 {offsets = [1, 7, 0], sizes = [16, 16, 8], strides = [1, 1, 1]} : vector<18x32x8xf32> to vector<16x16x8xf32>
    %63 = vector.shape_cast %62 : vector<16x16x8xf32> to vector<256x8xf32>
    %64 = tpu.transpose %63, [1, 0] : vector<256x8xf32> -> vector<8x256xf32>
    %65 = vector.extract_strided_slice %52 {offsets = [1, 8, 0], sizes = [16, 16, 8], strides = [1, 1, 1]} : vector<18x32x8xf32> to vector<16x16x8xf32>
    %66 = vector.shape_cast %65 : vector<16x16x8xf32> to vector<256x8xf32>
    %67 = tpu.transpose %66, [1, 0] : vector<256x8xf32> -> vector<8x256xf32>
    %68 = vector.extract_strided_slice %52 {offsets = [1, 9, 0], sizes = [16, 16, 8], strides = [1, 1, 1]} : vector<18x32x8xf32> to vector<16x16x8xf32>
    %69 = vector.shape_cast %68 : vector<16x16x8xf32> to vector<256x8xf32>
    %70 = tpu.transpose %69, [1, 0] : vector<256x8xf32> -> vector<8x256xf32>
    %71 = vector.extract_strided_slice %52 {offsets = [2, 7, 0], sizes = [16, 16, 8], strides = [1, 1, 1]} : vector<18x32x8xf32> to vector<16x16x8xf32>
    %72 = vector.shape_cast %71 : vector<16x16x8xf32> to vector<256x8xf32>
    %73 = tpu.transpose %72, [1, 0] : vector<256x8xf32> -> vector<8x256xf32>
    %74 = vector.extract_strided_slice %52 {offsets = [2, 8, 0], sizes = [16, 16, 8], strides = [1, 1, 1]} : vector<18x32x8xf32> to vector<16x16x8xf32>
    %75 = vector.shape_cast %74 : vector<16x16x8xf32> to vector<256x8xf32>
    %76 = tpu.transpose %75, [1, 0] : vector<256x8xf32> -> vector<8x256xf32>
    %77 = vector.extract_strided_slice %52 {offsets = [2, 9, 0], sizes = [16, 16, 8], strides = [1, 1, 1]} : vector<18x32x8xf32> to vector<16x16x8xf32>
    %78 = vector.shape_cast %77 : vector<16x16x8xf32> to vector<256x8xf32>
    %79 = tpu.transpose %78, [1, 0] : vector<256x8xf32> -> vector<8x256xf32>
    %80 = tpu.concatenate %55, %58, %61, %64, %67, %70, %73, %76, %79 in 0 : vector<8x256xf32>, vector<8x256xf32>, vector<8x256xf32>, vector<8x256xf32>, vector<8x256xf32>, vector<8x256xf32>, vector<8x256xf32>, vector<8x256xf32>, vector<8x256xf32> -> vector<72x256xf32>
    %c0_12 = arith.constant 0 : index
    %c0_13 = arith.constant 0 : index
    %81 = vector.load %arg4[%c0_12, %c0_13] : memref<8x72xbf16, #tpu.memory_space<vmem>>, vector<8x72xbf16>
    %82 = arith.truncf %80 : vector<72x256xf32> to vector<72x256xbf16>
    %cst_14 = arith.constant dense<0.000000e+00> : vector<8x256xf32>
    %83 = tpu.matmul %81, %82, %cst_14 {dimension_numbers = #tpu.dot_dimension_numbers<[1], [0], [0], [1], [0, 0, 1, 1], [], []>} : vector<8x72xbf16>, vector<72x256xbf16>, vector<8x256xf32> -> vector<8x256xf32>
    %c0_15 = arith.constant 0 : index
    %c0_16 = arith.constant 0 : index
    %84 = vector.load %arg5[%c0_15, %c0_16] : memref<8x1xf32, #tpu.memory_space<vmem>>, vector<8x1xf32>
    %85 = vector.broadcast %84 : vector<8x1xf32> to vector<8x256xf32>
    %86 = arith.addf %83, %85 : vector<8x256xf32>
    %cst_17 = arith.constant 0.000000e+00 : f32
    %87 = vector.broadcast %cst_17 : f32 to vector<8x256xf32>
    %88 = arith.cmpf ogt, %86, %87 : vector<8x256xf32>
    %cst_18 = arith.constant 2.000000e-01 : f32
    %89 = vector.broadcast %cst_18 : f32 to vector<8x256xf32>
    %90 = arith.mulf %89, %86 : vector<8x256xf32>
    %91 = arith.select %88, %86, %90 : vector<8x256xi1>, vector<8x256xf32>
    %92 = tpu.transpose %91, [1, 0] : vector<8x256xf32> -> vector<256x8xf32>
    %93 = vector.shape_cast %92 : vector<256x8xf32> to vector<8x2x8x2x8xf32>
    %94 = vector.extract_strided_slice %93 {offsets = [0, 0, 0, 0, 0], sizes = [8, 1, 8, 1, 8], strides = [1, 1, 1, 1, 1]} : vector<8x2x8x2x8xf32> to vector<8x1x8x1x8xf32>
    %95 = vector.shape_cast %94 : vector<8x1x8x1x8xf32> to vector<8x8x8xf32>
    %96 = vector.extract_strided_slice %93 {offsets = [0, 0, 0, 1, 0], sizes = [8, 1, 8, 1, 8], strides = [1, 1, 1, 1, 1]} : vector<8x2x8x2x8xf32> to vector<8x1x8x1x8xf32>
    %97 = vector.shape_cast %96 : vector<8x1x8x1x8xf32> to vector<8x8x8xf32>
    %98 = arith.addf %95, %97 : vector<8x8x8xf32>
    %99 = vector.extract_strided_slice %93 {offsets = [0, 1, 0, 0, 0], sizes = [8, 1, 8, 1, 8], strides = [1, 1, 1, 1, 1]} : vector<8x2x8x2x8xf32> to vector<8x1x8x1x8xf32>
    %100 = vector.shape_cast %99 : vector<8x1x8x1x8xf32> to vector<8x8x8xf32>
    %101 = arith.addf %98, %100 : vector<8x8x8xf32>
    %102 = vector.extract_strided_slice %93 {offsets = [0, 1, 0, 1, 0], sizes = [8, 1, 8, 1, 8], strides = [1, 1, 1, 1, 1]} : vector<8x2x8x2x8xf32> to vector<8x1x8x1x8xf32>
    %103 = vector.shape_cast %102 : vector<8x1x8x1x8xf32> to vector<8x8x8xf32>
    %104 = arith.addf %101, %103 : vector<8x8x8xf32>
    %cst_19 = arith.constant 2.500000e-01 : f32
    %105 = vector.broadcast %cst_19 : f32 to vector<8x8x8xf32>
    %106 = arith.mulf %104, %105 : vector<8x8x8xf32>
    %107 = vector.shape_cast %106 : vector<8x8x8xf32> to vector<64x8xf32>
    %108 = tpu.transpose %107, [1, 0] : vector<64x8xf32> -> vector<8x64xf32>
    %c0_20 = arith.constant 0 : index
    %c0_21 = arith.constant 0 : index
    %c0_22 = arith.constant 0 : index
    %109 = vector.load %arg6[%c0_20, %c0_21, %c0_22] : memref<1x8x64xf32, #tpu.memory_space<vmem>>, vector<1x8x64xf32>
    %110 = vector.shape_cast %109 : vector<1x8x64xf32> to vector<8x64xf32>
    %111 = vector.shape_cast %108 : vector<8x64xf32> to vector<1x8x64xf32>
    tpu.vector_store %arg6[%c0_20, %c0_21, %c0_22], %111 {strides = array<i32>} : memref<1x8x64xf32, #tpu.memory_space<vmem>>, vector<1x8x64xf32>,
    return
  }
  func.func @transform_0(%arg0: i32) -> (i32, i32, i32) {
    %c0_i32 = arith.constant 0 : i32
    %c0_i32_0 = arith.constant 0 : i32
    %c0_i32_1 = arith.constant 0 : i32
    return %arg0, %c0_i32, %c0_i32_0 : i32, i32, i32
  }
  func.func @transform_1(%arg0: i32) -> (i32, i32) {
    %c0_i32 = arith.constant 0 : i32
    %c0_i32_0 = arith.constant 0 : i32
    %c0_i32_1 = arith.constant 0 : i32
    return %c0_i32, %c0_i32_0 : i32, i32
  }
  func.func @transform_2(%arg0: i32) -> (i32, i32) {
    %c0_i32 = arith.constant 0 : i32
    %c0_i32_0 = arith.constant 0 : i32
    %c0_i32_1 = arith.constant 0 : i32
    return %c0_i32, %c0_i32_0 : i32, i32
  }
  func.func @transform_3(%arg0: i32) -> (i32, i32) {
    %c0_i32 = arith.constant 0 : i32
    %c0_i32_0 = arith.constant 0 : i32
    %c0_i32_1 = arith.constant 0 : i32
    return %c0_i32, %c0_i32_0 : i32, i32
  }
  func.func @transform_4(%arg0: i32) -> (i32, i32) {
    %c0_i32 = arith.constant 0 : i32
    %c0_i32_0 = arith.constant 0 : i32
    %c0_i32_1 = arith.constant 0 : i32
    return %c0_i32, %c0_i32_0 : i32, i32
  }
  func.func @transform_5(%arg0: i32) -> (i32, i32, i32) {
    %c0_i32 = arith.constant 0 : i32
    %c0_i32_0 = arith.constant 0 : i32
    %c0_i32_1 = arith.constant 0 : i32
    return %arg0, %c0_i32, %c0_i32_0 : i32, i32, i32
  }
}

</mosaic_0001>

<llo_original>
// kernel: tpu_custom_call.1
$region0: #{tpu_custom_call.1}
  #allocation0 [shape = 'u32[]', space=smem, size = 0x4, offset = 0x4, fixed_abs, tag = 'smem constant byte address 0x4 - core index']
  #allocation1 [shape = 'u32[144,128]{1,0:T(1,128)}', space=vmem, size = 0x12000, scoped, tag = 'internal scratch']
  %s0 = inlined_call_operand.hbm [shape: f32[2,8,256], index: 0, kind: input, shape index: {}]
  %s1 = inlined_call_operand.hbm [shape: bf16[8,72], index: 1, kind: input, shape index: {}]
  %s2 = inlined_call_operand.hbm [shape: f32[8,1], index: 2, kind: input, shape index: {}]
  %s3 = inlined_call_operand.hbm [shape: bf16[8,72], index: 3, kind: input, shape index: {}]
  %s4 = inlined_call_operand.hbm [shape: f32[8,1], index: 4, kind: input, shape index: {}]
  %s5 = inlined_call_operand.hbm [shape: f32[2,8,64], index: 5, kind: output, shape index: {}]
  %s6 = sld [smem:[#allocation0]]
  $region73: #{tpu_custom_call.1} parent=0
    _
  %s8 = ssub.s32 1, %s6
  %s9 = scalar_select 0, %s8, %s6
  $region1: #{tpu_custom_call.1} parent=0
    #allocation2 [shape = 'u8[16384]{0}', space=vmem, size = 0x4000, scoped, tag = 'input window, operand 0']
    #allocation3 [shape = 's32[2]{0}', space=sflag, size = 0x8, scoped, tag = 'scoped memory for tpu_custom_call.1']
    #allocation4 [shape = 's32[2]{0}', space=sflag, size = 0x8, scoped, tag = 'scoped memory for tpu_custom_call.1']
    #allocation5 [shape = 'u8[2048]{0}', space=vmem, size = 0x800, scoped, tag = 'input window, operand 1, single buffered']
    #allocation6 [shape = 's32[1]{0}', space=sflag, size = 0x4, scoped, tag = 'scoped memory for tpu_custom_call.1']
    #allocation7 [shape = 'u8[4096]{0}', space=vmem, size = 0x1000, scoped, tag = 'input window, operand 2, single buffered']
    #allocation8 [shape = 'u8[2048]{0}', space=vmem, size = 0x800, scoped, tag = 'input window, operand 3, single buffered']
    #allocation9 [shape = 's32[1]{0}', space=sflag, size = 0x4, scoped, tag = 'scoped memory for tpu_custom_call.1']
    #allocation10 [shape = 'u8[4096]{0}', space=vmem, size = 0x1000, scoped, tag = 'input window, operand 4, single buffered']
    #allocation11 [shape = 'u8[8192]{0}', space=vmem, size = 0x2000, scoped, tag = 'output window, operand 0']
    %10 = vsyncpa [#allocation3], 0
    %s11 = scalar_lea.sflag [#allocation3], 1
    %12 = vsyncpa %s11, 0
    %13 = vsyncpa [#allocation6], 0
    %14 = vsyncpa [#allocation9], 0
    %15 = vsyncpa [#allocation4], 0
    %s16 = scalar_lea.sflag [#allocation4], 1
    %17 = vsyncpa %s16, 0
    loop: start=0, step=1, limit=4
    $region2: #{tpu_custom_call.1} parent=1 // loop_pre_header
      _
    $region3: #{tpu_custom_call.1} parent=1 // loop_header
      %s19 = sphi 0, %s23
      %p20 = scmp.ge.s32.totalorder %s19, 4
      %s29 = sphi 0, %s31
      %s32 = sphi 0, %s29
      %s33 = sphi 0, %s32
      %s49 = sphi 0, %s33
      %s53 = sphi 0, %s53
      %s55 = sphi 0, %s53
      %s56 = sphi 0, %s55
      %s70 = sphi 0, %s56
      %s74 = sphi 0, %s74
      %s76 = sphi 0, %s74
      %s77 = sphi 0, %s76
      %s91 = sphi 0, %s77
      %s95 = sphi 0, %s95
      %s97 = sphi 0, %s95
      %s98 = sphi 0, %s97
      %s112 = sphi 0, %s98
      %s116 = sphi 0, %s116
      %s118 = sphi 0, %s116
      %s119 = sphi 0, %s118
      %s133 = sphi 0, %s119
      %s139 = sphi 0, %s141
      %s142 = sphi 0, %s139
      %s143 = sphi 0, %s142
      %s159 = sphi 0, %s143
    $region4: #{tpu_custom_call.1} parent=1 // loop_header_branch
      %22 = sbr.rel (%p20) target = $region8
    $region5: #{tpu_custom_call.1} parent=1 // loop_body
      %s24 = ssub.s32 %s19, 1
      %s25 = ssub.s32 %s19, 2
      %s26 = sadd.s32 %s19, 1
      %s27 = ssub.s32 %s19, %s26
      %p28 = scmp.eq.s32.totalorder %s27, 0
      %s30 = sadd.s32 %s29, 1
      %s31 = scalar_select %p28, %s29, %s30
      %p34 = pneg %p28
      %p35 = scmp.eq.s32.totalorder %s19, 1
      %p36 = por %p34, %p35
      %p37 = scmp.ne.s32.totalorder %s29, %s32
      %p38 = scmp.eq.s32.totalorder %s19, 0
      %p39 = por %p37, %p38
      %p40 = scmp.ne.s32.totalorder %s29, %s32
      %p41 = scmp.eq.s32.totalorder %s24, 1
      %p42 = por %p40, %p41
      %p43 = scmp.ne.s32.totalorder %s32, %s33
      %p44 = scmp.eq.s32.totalorder %s24, 0
      %p45 = por %p43, %p44
      %p46 = scmp.ne.s32.totalorder %s32, %s33
      %p47 = scmp.eq.s32.totalorder %s25, 1
      %p48 = por %p46, %p47
      %p50 = scmp.ne.s32.totalorder %s33, %s49
      %p51 = scmp.eq.s32.totalorder %s25, 0
      %p52 = por %p50, %p51
      %s54 = sadd.s32 %s53, 1
      %p57 = scmp.eq.s32.totalorder %s19, 1
      %p58 = scmp.ne.s32.totalorder %s53, %s55
      %p59 = scmp.eq.s32.totalorder %s19, 0
      %p60 = por %p58, %p59
      %p61 = scmp.ne.s32.totalorder %s53, %s55
      %p62 = scmp.eq.s32.totalorder %s24, 1
      %p63 = por %p61, %p62
      %p64 = scmp.ne.s32.totalorder %s55, %s56
      %p65 = scmp.eq.s32.totalorder %s24, 0
      %p66 = por %p64, %p65
      %p67 = scmp.ne.s32.totalorder %s55, %s56
      %p68 = scmp.eq.s32.totalorder %s25, 1
      %p69 = por %p67, %p68
      %p71 = scmp.ne.s32.totalorder %s56, %s70
      %p72 = scmp.eq.s32.totalorder %s25, 0
      %p73 = por %p71, %p72
      %s75 = sadd.s32 %s74, 1
      %p78 = scmp.eq.s32.totalorder %s19, 1
      %p79 = scmp.ne.s32.totalorder %s74, %s76
      %p80 = scmp.eq.s32.totalorder %s19, 0
      %p81 = por %p79, %p80
      %p82 = scmp.ne.s32.totalorder %s74, %s76
      %p83 = scmp.eq.s32.totalorder %s24, 1
      %p84 = por %p82, %p83
      %p85 = scmp.ne.s32.totalorder %s76, %s77
      %p86 = scmp.eq.s32.totalorder %s24, 0
      %p87 = por %p85, %p86
      %p88 = scmp.ne.s32.totalorder %s76, %s77
      %p89 = scmp.eq.s32.totalorder %s25, 1
      %p90 = por %p88, %p89
      %p92 = scmp.ne.s32.totalorder %s77, %s91
      %p93 = scmp.eq.s32.totalorder %s25, 0
      %p94 = por %p92, %p93
      %s96 = sadd.s32 %s95, 1
      %p99 = scmp.eq.s32.totalorder %s19, 1
      %p100 = scmp.ne.s32.totalorder %s95, %s97
      %p101 = scmp.eq.s32.totalorder %s19, 0
      %p102 = por %p100, %p101
      %p103 = scmp.ne.s32.totalorder %s95, %s97
      %p104 = scmp.eq.s32.totalorder %s24, 1
      %p105 = por %p103, %p104
      %p106 = scmp.ne.s32.totalorder %s97, %s98
      %p107 = scmp.eq.s32.totalorder %s24, 0
      %p108 = por %p106, %p107
      %p109 = scmp.ne.s32.totalorder %s97, %s98
      %p110 = scmp.eq.s32.totalorder %s25, 1
      %p111 = por %p109, %p110
      %p113 = scmp.ne.s32.totalorder %s98, %s112
      %p114 = scmp.eq.s32.totalorder %s25, 0
      %p115 = por %p113, %p114
      %s117 = sadd.s32 %s116, 1
      %p120 = scmp.eq.s32.totalorder %s19, 1
      %p121 = scmp.ne.s32.totalorder %s116, %s118
      %p122 = scmp.eq.s32.totalorder %s19, 0
      %p123 = por %p121, %p122
      %p124 = scmp.ne.s32.totalorder %s116, %s118
      %p125 = scmp.eq.s32.totalorder %s24, 1
      %p126 = por %p124, %p125
      %p127 = scmp.ne.s32.totalorder %s118, %s119
      %p128 = scmp.eq.s32.totalorder %s24, 0
      %p129 = por %p127, %p128
      %p130 = scmp.ne.s32.totalorder %s118, %s119
      %p131 = scmp.eq.s32.totalorder %s25, 1
      %p132 = por %p130, %p131
      %p134 = scmp.ne.s32.totalorder %s119, %s133
      %p135 = scmp.eq.s32.totalorder %s25, 0
      %p136 = por %p134, %p135
      %s137 = ssub.s32 %s19, %s26
      %p138 = scmp.eq.s32.totalorder %s137, 0
      %s140 = sadd.s32 %s139, 1
      %s141 = scalar_select %p138, %s139, %s140
      %p144 = pneg %p138
      %p145 = scmp.eq.s32.totalorder %s19, 1
      %p146 = por %p144, %p145
      %p147 = scmp.ne.s32.totalorder %s139, %s142
      %p148 = scmp.eq.s32.totalorder %s19, 0
      %p149 = por %p147, %p148
      %p150 = scmp.ne.s32.totalorder %s139, %s142
      %p151 = scmp.eq.s32.totalorder %s24, 1
      %p152 = por %p150, %p151
      %p153 = scmp.ne.s32.totalorder %s142, %s143
      %p154 = scmp.eq.s32.totalorder %s24, 0
      %p155 = por %p153, %p154
      %p156 = scmp.ne.s32.totalorder %s142, %s143
      %p157 = scmp.eq.s32.totalorder %s25, 1
      %p158 = por %p156, %p157
      %p160 = scmp.ne.s32.totalorder %s143, %s159
      %p161 = scmp.eq.s32.totalorder %s25, 0
      %p162 = por %p160, %p161
      %p163 = scmp.le.s32.totalorder 1, %s19
      %p164 = scmp.lt.s32.totalorder %s19, 3
      %p165 = pnand %p163, %p164
      %p166 = pneg %p165
      // Predicated region
      $region9: #{tpu_custom_call.1} parent=5 // pred_check
        _
      $region10: #{tpu_custom_call.1} parent=5 // pred_check_branch
        %168 = sbr.rel (%p165) target = $region12
      $region11: #{tpu_custom_call.1} parent=5 // pred_region
        %s169 = ssub.s32 %s19, 1
        // Predicated region
        $region13: #{tpu_custom_call.1} parent=11 // pred_check
          %p170 = pneg %p66
        $region14: #{tpu_custom_call.1} parent=11 // pred_check_branch
          %172 = sbr.rel (%p170) target = $region16
        $region15: #{tpu_custom_call.1} parent=11 // pred_region
          %s174 = ssub.s32 64, 64
          %175 = vsyncadd [#allocation6], %s174
          %s177 = sshll.u32 [#allocation5], 4
          %s178 = int_to_ptr.vmem [resolvable:$true] %s177
          %180 = dma.hbm_to_vmem [thread:$0]  %s1, 64, %s178, [#allocation6]
        $region16: #{tpu_custom_call.1} parent=11 // pred_fallthru
          _
        // Predicated region
        $region17: #{tpu_custom_call.1} parent=11 // pred_check
          %p181 = pneg %p87
        $region18: #{tpu_custom_call.1} parent=11 // pred_check_branch
          %183 = sbr.rel (%p181) target = $region20
        $region19: #{tpu_custom_call.1} parent=11 // pred_region
          %s185 = ssub.s32 128, 128
          %186 = vsyncadd [#allocation6], %s185
          %s188 = sshll.u32 [#allocation7], 4
          %s189 = int_to_ptr.vmem [resolvable:$true] %s188
          %191 = dma.hbm_to_vmem [thread:$0]  %s2, 128, %s189, [#allocation6]
        $region20: #{tpu_custom_call.1} parent=11 // pred_fallthru
          _
        // Predicated region
        $region21: #{tpu_custom_call.1} parent=11 // pred_check
          %p192 = pneg %p108
        $region22: #{tpu_custom_call.1} parent=11 // pred_check_branch
          %194 = sbr.rel (%p192) target = $region24
        $region23: #{tpu_custom_call.1} parent=11 // pred_region
          %s196 = ssub.s32 64, 64
          %197 = vsyncadd [#allocation9], %s196
          %s199 = sshll.u32 [#allocation8], 4
          %s200 = int_to_ptr.vmem [resolvable:$true] %s199
          %202 = dma.hbm_to_vmem [thread:$0]  %s3, 64, %s200, [#allocation9]
        $region24: #{tpu_custom_call.1} parent=11 // pred_fallthru
          _
        // Predicated region
        $region25: #{tpu_custom_call.1} parent=11 // pred_check
          %p203 = pneg %p129
        $region26: #{tpu_custom_call.1} parent=11 // pred_check_branch
          %205 = sbr.rel (%p203) target = $region28
        $region27: #{tpu_custom_call.1} parent=11 // pred_region
          %s207 = ssub.s32 128, 128
          %208 = vsyncadd [#allocation9], %s207
          %s210 = sshll.u32 [#allocation10], 4
          %s211 = int_to_ptr.vmem [resolvable:$true] %s210
          %213 = dma.hbm_to_vmem [thread:$0]  %s4, 128, %s211, [#allocation9]
        $region28: #{tpu_custom_call.1} parent=11 // pred_fallthru
          _
      $region12: #{tpu_custom_call.1} parent=5 // pred_fallthru
        _
      %p214 = scmp.lt.s32.totalorder %s19, 2
      // Predicated region
      $region29: #{tpu_custom_call.1} parent=5 // pred_check
        %p215 = pneg %p214
      $region30: #{tpu_custom_call.1} parent=5 // pred_check_branch
        %217 = sbr.rel (%p215) target = $region32
      $region31: #{tpu_custom_call.1} parent=5 // pred_region
        // Predicated region
        $region33: #{tpu_custom_call.1} parent=31 // pred_check
          %p218 = pneg %p39
        $region34: #{tpu_custom_call.1} parent=31 // pred_check_branch
          %220 = sbr.rel (%p218) target = $region36
        $region35: #{tpu_custom_call.1} parent=31 // pred_region
          %s221 = sand.u32 %s29, 1
          %s222 = scalar_lea.sflag [#allocation3], %s221
          %s223 = sand.u32 %s29, 1
          %s224 = smul.addr %s223, 16
          %s225 = scalar_lea.vmem [#allocation2], %s224
          %s227 = ssub.s32 256, 256
          %228 = vsyncadd %s222, %s227
          %s229 = smul.addr %s19, 2
          %s230 = smul.addr %s229, 128
          %s231 = scalar_lea.hbm %s0, %s230
          %s233 = sshll.u32 %s225, 4
          %s234 = int_to_ptr.vmem [resolvable:$true] %s233
          %236 = dma.hbm_to_vmem [thread:$0]  %s231, 256, %s234, %s222
        $region36: #{tpu_custom_call.1} parent=31 // pred_fallthru
          _
      $region32: #{tpu_custom_call.1} parent=5 // pred_fallthru
        _
      %p237 = scmp.le.s32.totalorder 1, %s19
      %p238 = scmp.lt.s32.totalorder %s19, 3
      %p239 = pnand %p237, %p238
      %p240 = pneg %p239
      // Predicated region
      $region37: #{tpu_custom_call.1} parent=5 // pred_check
        _
      $region38: #{tpu_custom_call.1} parent=5 // pred_check_branch
        %242 = sbr.rel (%p239) target = $region40
      $region39: #{tpu_custom_call.1} parent=5 // pred_region
        %s243 = ssub.s32 %s19, 1
        %s244 = sand.u32 %s32, 1
        %s245 = scalar_lea.sflag [#allocation3], %s244
        %s246 = sand.u32 %s32, 1
        %s247 = smul.addr %s246, 16
        %s248 = scalar_lea.vmem [#allocation2], %s247
        // Predicated region
        $region41: #{tpu_custom_call.1} parent=39 // pred_check
          %p249 = pneg %p45
        $region42: #{tpu_custom_call.1} parent=39 // pred_check_branch
          %251 = sbr.rel (%p249) target = $region44
        $region43: #{tpu_custom_call.1} parent=39 // pred_region
          %252 = dma.done %s245, 256
        $region44: #{tpu_custom_call.1} parent=39 // pred_fallthru
          _
        // Predicated region
        $region45: #{tpu_custom_call.1} parent=39 // pred_check
          %p253 = pneg %p66
        $region46: #{tpu_custom_call.1} parent=39 // pred_check_branch
          %255 = sbr.rel (%p253) target = $region48
        $region47: #{tpu_custom_call.1} parent=39 // pred_region
          %256 = dma.done [#allocation6], 64
        $region48: #{tpu_custom_call.1} parent=39 // pred_fallthru
          _
        // Predicated region
        $region49: #{tpu_custom_call.1} parent=39 // pred_check
          %p257 = pneg %p87
        $region50: #{tpu_custom_call.1} parent=39 // pred_check_branch
          %259 = sbr.rel (%p257) target = $region52
        $region51: #{tpu_custom_call.1} parent=39 // pred_region
          %260 = dma.done [#allocation6], 128
        $region52: #{tpu_custom_call.1} parent=39 // pred_fallthru
          _
        // Predicated region
        $region53: #{tpu_custom_call.1} parent=39 // pred_check
          %p261 = pneg %p108
        $region54: #{tpu_custom_call.1} parent=39 // pred_check_branch
          %263 = sbr.rel (%p261) target = $region56
        $region55: #{tpu_custom_call.1} parent=39 // pred_region
          %264 = dma.done [#allocation9], 64
        $region56: #{tpu_custom_call.1} parent=39 // pred_fallthru
          _
        // Predicated region
        $region57: #{tpu_custom_call.1} parent=39 // pred_check
          %p265 = pneg %p129
        $region58: #{tpu_custom_call.1} parent=39 // pred_check_branch
          %267 = sbr.rel (%p265) target = $region60
        $region59: #{tpu_custom_call.1} parent=39 // pred_region
          %268 = dma.done [#allocation9], 128
        $region60: #{tpu_custom_call.1} parent=39 // pred_fallthru
          _
        %s269 = sand.u32 %s32, 1
        %s270 = scalar_lea.sflag [#allocation3], %s269
        %s271 = sand.u32 %s32, 1
        %s272 = smul.addr %s271, 16
        %s273 = scalar_lea.vmem [#allocation2], %s272
        %p274 = pneg %p45
        %p275 = pneg %p42
        %p276 = pneg %p66
        %p277 = pneg %p63
        %p278 = pneg %p87
        %p279 = pneg %p84
        %p280 = pneg %p108
        %p281 = pneg %p105
        %p282 = pneg %p129
        %p283 = pneg %p126
        %p284 = pneg %p155
        %p285 = pneg %p152
        %s286 = sand.u32 %s142, 1
        %s287 = scalar_lea.sflag [#allocation4], %s286
        %s288 = sand.u32 %s142, 1
        %s289 = smul.addr %s288, 8
        %s290 = scalar_lea.vmem [#allocation11], %s289
        %v292 = vld [vmem:[%s248] sm:$0xff]
        %v293 = vld [vmem:[%s248 + $0x8] sm:$0xff]
        %294 = vxpose.xlu0.b32.start [1/16] %v292, 128
        %295 = vxpose.xlu0.b32.cont [2/16] 0.0, 128
        %296 = vxpose.xlu0.b32.cont [3/16] 0.0, 128
        %297 = vxpose.xlu0.b32.cont [4/16] 0.0, 128
        %298 = vxpose.xlu0.b32.cont [5/16] 0.0, 128
        %299 = vxpose.xlu0.b32.cont [6/16] 0.0, 128
        %300 = vxpose.xlu0.b32.cont [7/16] 0.0, 128
        %301 = vxpose.xlu0.b32.cont [8/16] 0.0, 128
        %302 = vxpose.xlu0.b32.cont [9/16] 0.0, 128
        %303 = vxpose.xlu0.b32.cont [10/16] 0.0, 128
        %304 = vxpose.xlu0.b32.cont [11/16] 0.0, 128
        %305 = vxpose.xlu0.b32.cont [12/16] 0.0, 128
        %306 = vxpose.xlu0.b32.cont [13/16] 0.0, 128
        %307 = vxpose.xlu0.b32.cont [14/16] 0.0, 128
        %308 = vxpose.xlu0.b32.cont [15/16] 0.0, 128
        %309 = vxpose.xlu0.b32.end [16/16] 0.0, 128
        %v310 = vpop.trf.xlu0
        %v311 = vpop.trf.xlu0
        %v312 = vpop.trf.xlu0
        %v313 = vpop.trf.xlu0
        %v314 = vpop.trf.xlu0
        %v315 = vpop.trf.xlu0
        %v316 = vpop.trf.xlu0
        %v317 = vpop.trf.xlu0
        %v318 = vpop.trf.xlu0
        %v319 = vpop.trf.xlu0
        %v320 = vpop.trf.xlu0
        %v321 = vpop.trf.xlu0
        %v322 = vpop.trf.xlu0
        %v323 = vpop.trf.xlu0
        %v324 = vpop.trf.xlu0
        %v325 = vpop.trf.xlu0
        %326 = vxpose.xlu0.b32.start [1/16] %v293, 128
        %327 = vxpose.xlu0.b32.cont [2/16] 0.0, 128
        %328 = vxpose.xlu0.b32.cont [3/16] 0.0, 128
        %329 = vxpose.xlu0.b32.cont [4/16] 0.0, 128
        %330 = vxpose.xlu0.b32.cont [5/16] 0.0, 128
        %331 = vxpose.xlu0.b32.cont [6/16] 0.0, 128
        %332 = vxpose.xlu0.b32.cont [7/16] 0.0, 128
        %333 = vxpose.xlu0.b32.cont [8/16] 0.0, 128
        %334 = vxpose.xlu0.b32.cont [9/16] 0.0, 128
        %335 = vxpose.xlu0.b32.cont [10/16] 0.0, 128
        %336 = vxpose.xlu0.b32.cont [11/16] 0.0, 128
        %337 = vxpose.xlu0.b32.cont [12/16] 0.0, 128
        %338 = vxpose.xlu0.b32.cont [13/16] 0.0, 128
        %339 = vxpose.xlu0.b32.cont [14/16] 0.0, 128
        %340 = vxpose.xlu0.b32.cont [15/16] 0.0, 128
        %341 = vxpose.xlu0.b32.end [16/16] 0.0, 128
        %v342 = vpop.trf.xlu0
        %v343 = vpop.trf.xlu0
        %v344 = vpop.trf.xlu0
        %v345 = vpop.trf.xlu0
        %v346 = vpop.trf.xlu0
        %v347 = vpop.trf.xlu0
        %v348 = vpop.trf.xlu0
        %v349 = vpop.trf.xlu0
        %v350 = vpop.trf.xlu0
        %v351 = vpop.trf.xlu0
        %v352 = vpop.trf.xlu0
        %v353 = vpop.trf.xlu0
        %v354 = vpop.trf.xlu0
        %v355 = vpop.trf.xlu0
        %v356 = vpop.trf.xlu0
        %v357 = vpop.trf.xlu0
        %vm389 = vcmask 1040384
        %v390 = vrot.slane 0.0, 7
        %v391 = vsel %vm389, %v390, %v390
        %v392 = vrot.slane %v310, 7
        %v393 = vsel %vm389, %v390, %v392
        %v394 = vrot.slane %v311, 7
        %v395 = vsel %vm389, %v392, %v394
        %v396 = vrot.slane %v312, 7
        %v397 = vsel %vm389, %v390, %v396
        %v398 = vrot.slane %v313, 7
        %v399 = vsel %vm389, %v396, %v398
        %v400 = vrot.slane %v314, 7
        %v401 = vsel %vm389, %v390, %v400
        %v402 = vrot.slane %v315, 7
        %v403 = vsel %vm389, %v400, %v402
        %v404 = vrot.slane %v316, 7
        %v405 = vsel %vm389, %v390, %v404
        %v406 = vrot.slane %v317, 7
        %v407 = vsel %vm389, %v404, %v406
        %v408 = vrot.slane %v318, 7
        %v409 = vsel %vm389, %v390, %v408
        %v410 = vrot.slane %v319, 7
        %v411 = vsel %vm389, %v408, %v410
        %v412 = vrot.slane %v320, 7
        %v413 = vsel %vm389, %v390, %v412
        %v414 = vrot.slane %v321, 7
        %v415 = vsel %vm389, %v412, %v414
        %v416 = vrot.slane %v322, 7
        %v417 = vsel %vm389, %v390, %v416
        %v418 = vrot.slane %v323, 7
        %v419 = vsel %vm389, %v416, %v418
        %v420 = vrot.slane %v324, 7
        %v421 = vsel %vm389, %v390, %v420
        %v422 = vrot.slane %v325, 7
        %v423 = vsel %vm389, %v420, %v422
        %v424 = vrot.slane %v342, 7
        %v425 = vsel %vm389, %v390, %v424
        %v426 = vrot.slane %v343, 7
        %v427 = vsel %vm389, %v424, %v426
        %v428 = vrot.slane %v344, 7
        %v429 = vsel %vm389, %v390, %v428
        %v430 = vrot.slane %v345, 7
        %v431 = vsel %vm389, %v428, %v430
        %v432 = vrot.slane %v346, 7
        %v433 = vsel %vm389, %v390, %v432
        %v434 = vrot.slane %v347, 7
        %v435 = vsel %vm389, %v432, %v434
        %v436 = vrot.slane %v348, 7
        %v437 = vsel %vm389, %v390, %v436
        %v438 = vrot.slane %v349, 7
        %v439 = vsel %vm389, %v436, %v438
        %v440 = vrot.slane %v350, 7
        %v441 = vsel %vm389, %v390, %v440
        %v442 = vrot.slane %v351, 7
        %v443 = vsel %vm389, %v440, %v442
        %v444 = vrot.slane %v352, 7
        %v445 = vsel %vm389, %v390, %v444
        %v446 = vrot.slane %v353, 7
        %v447 = vsel %vm389, %v444, %v446
        %v448 = vrot.slane %v354, 7
        %v449 = vsel %vm389, %v390, %v448
        %v450 = vrot.slane %v355, 7
        %v451 = vsel %vm389, %v448, %v450
        %483 = vxpose.xlu0.b32.start [1/16] %v391, 128
        %484 = vxpose.xlu0.b32.cont [2/16] %v391, 128
        %485 = vxpose.xlu0.b32.cont [3/16] %v393, 128
        %486 = vxpose.xlu0.b32.cont [4/16] %v395, 128
        %487 = vxpose.xlu0.b32.cont [5/16] %v397, 128
        %488 = vxpose.xlu0.b32.cont [6/16] %v399, 128
        %489 = vxpose.xlu0.b32.cont [7/16] %v401, 128
        %490 = vxpose.xlu0.b32.cont [8/16] %v403, 128
        %491 = vxpose.xlu0.b32.cont [9/16] %v405, 128
        %492 = vxpose.xlu0.b32.cont [10/16] %v407, 128
        %493 = vxpose.xlu0.b32.cont [11/16] %v409, 128
        %494 = vxpose.xlu0.b32.cont [12/16] %v411, 128
        %495 = vxpose.xlu0.b32.cont [13/16] %v413, 128
        %496 = vxpose.xlu0.b32.cont [14/16] %v415, 128
        %497 = vxpose.xlu0.b32.cont [15/16] %v417, 128
        %498 = vxpose.xlu0.b32.end [16/16] %v419, 128
        %v499 = vpop.trf.xlu0
        %v500 = vpop.trf.xlu0
        %v501 = vpop.trf.xlu0
        %v502 = vpop.trf.xlu0
        %v503 = vpop.trf.xlu0
        %v504 = vpop.trf.xlu0
        %v505 = vpop.trf.xlu0
        %v506 = vpop.trf.xlu0
        %v507 = vpop.trf.xlu0
        %v508 = vpop.trf.xlu0
        %v509 = vpop.trf.xlu0
        %v510 = vpop.trf.xlu0
        %v511 = vpop.trf.xlu0
        %v512 = vpop.trf.xlu0
        %v513 = vpop.trf.xlu0
        %v514 = vpop.trf.xlu0
        %515 = vxpose.xlu0.b32.start [1/16] %v421, 128
        %516 = vxpose.xlu0.b32.cont [2/16] %v423, 128
        %517 = vxpose.xlu0.b32.cont [3/16] %v425, 128
        %518 = vxpose.xlu0.b32.cont [4/16] %v427, 128
        %519 = vxpose.xlu0.b32.cont [5/16] %v429, 128
        %520 = vxpose.xlu0.b32.cont [6/16] %v431, 128
        %521 = vxpose.xlu0.b32.cont [7/16] %v433, 128
        %522 = vxpose.xlu0.b32.cont [8/16] %v435, 128
        %523 = vxpose.xlu0.b32.cont [9/16] %v437, 128
        %524 = vxpose.xlu0.b32.cont [10/16] %v439, 128
        %525 = vxpose.xlu0.b32.cont [11/16] %v441, 128
        %526 = vxpose.xlu0.b32.cont [12/16] %v443, 128
        %527 = vxpose.xlu0.b32.cont [13/16] %v445, 128
        %528 = vxpose.xlu0.b32.cont [14/16] %v447, 128
        %529 = vxpose.xlu0.b32.cont [15/16] %v449, 128
        %530 = vxpose.xlu0.b32.end [16/16] %v451, 128
        %v531 = vpop.trf.xlu0
        %v532 = vpop.trf.xlu0
        %v533 = vpop.trf.xlu0
        %v534 = vpop.trf.xlu0
        %v535 = vpop.trf.xlu0
        %v536 = vpop.trf.xlu0
        %v537 = vpop.trf.xlu0
        %v538 = vpop.trf.xlu0
        %v539 = vpop.trf.xlu0
        %v540 = vpop.trf.xlu0
        %v541 = vpop.trf.xlu0
        %v542 = vpop.trf.xlu0
        %v543 = vpop.trf.xlu0
        %v544 = vpop.trf.xlu0
        %v545 = vpop.trf.xlu0
        %v546 = vpop.trf.xlu0
        %547 = vxpose.xlu0.b32.start [1/16] 0.0, 128
        %548 = vxpose.xlu0.b32.cont [2/16] 0.0, 128
        %549 = vxpose.xlu0.b32.cont [3/16] %v310, 128
        %550 = vxpose.xlu0.b32.cont [4/16] %v311, 128
        %551 = vxpose.xlu0.b32.cont [5/16] %v312, 128
        %552 = vxpose.xlu0.b32.cont [6/16] %v313, 128
        %553 = vxpose.xlu0.b32.cont [7/16] %v314, 128
        %554 = vxpose.xlu0.b32.cont [8/16] %v315, 128
        %555 = vxpose.xlu0.b32.cont [9/16] %v316, 128
        %556 = vxpose.xlu0.b32.cont [10/16] %v317, 128
        %557 = vxpose.xlu0.b32.cont [11/16] %v318, 128
        %558 = vxpose.xlu0.b32.cont [12/16] %v319, 128
        %559 = vxpose.xlu0.b32.cont [13/16] %v320, 128
        %560 = vxpose.xlu0.b32.cont [14/16] %v321, 128
        %561 = vxpose.xlu0.b32.cont [15/16] %v322, 128
        %562 = vxpose.xlu0.b32.end [16/16] %v323, 128
        %v563 = vpop.trf.xlu0
        %v564 = vpop.trf.xlu0
        %v565 = vpop.trf.xlu0
        %v566 = vpop.trf.xlu0
        %v567 = vpop.trf.xlu0
        %v568 = vpop.trf.xlu0
        %v569 = vpop.trf.xlu0
        %v570 = vpop.trf.xlu0
        %v571 = vpop.trf.xlu0
        %v572 = vpop.trf.xlu0
        %v573 = vpop.trf.xlu0
        %v574 = vpop.trf.xlu0
        %v575 = vpop.trf.xlu0
        %v576 = vpop.trf.xlu0
        %v577 = vpop.trf.xlu0
        %v578 = vpop.trf.xlu0
        %579 = vxpose.xlu0.b32.start [1/16] %v324, 128
        %580 = vxpose.xlu0.b32.cont [2/16] %v325, 128
        %581 = vxpose.xlu0.b32.cont [3/16] %v342, 128
        %582 = vxpose.xlu0.b32.cont [4/16] %v343, 128
        %583 = vxpose.xlu0.b32.cont [5/16] %v344, 128
        %584 = vxpose.xlu0.b32.cont [6/16] %v345, 128
        %585 = vxpose.xlu0.b32.cont [7/16] %v346, 128
        %586 = vxpose.xlu0.b32.cont [8/16] %v347, 128
        %587 = vxpose.xlu0.b32.cont [9/16] %v348, 128
        %588 = vxpose.xlu0.b32.cont [10/16] %v349, 128
        %589 = vxpose.xlu0.b32.cont [11/16] %v350, 128
        %590 = vxpose.xlu0.b32.cont [12/16] %v351, 128
        %591 = vxpose.xlu0.b32.cont [13/16] %v352, 128
        %592 = vxpose.xlu0.b32.cont [14/16] %v353, 128
        %593 = vxpose.xlu0.b32.cont [15/16] %v354, 128
        %594 = vxpose.xlu0.b32.end [16/16] %v355, 128
        %v595 = vpop.trf.xlu0
        %v596 = vpop.trf.xlu0
        %v597 = vpop.trf.xlu0
        %v598 = vpop.trf.xlu0
        %v599 = vpop.trf.xlu0
        %v600 = vpop.trf.xlu0
        %v601 = vpop.trf.xlu0
        %v602 = vpop.trf.xlu0
        %v603 = vpop.trf.xlu0
        %v604 = vpop.trf.xlu0
        %v605 = vpop.trf.xlu0
        %v606 = vpop.trf.xlu0
        %v607 = vpop.trf.xlu0
        %v608 = vpop.trf.xlu0
        %v609 = vpop.trf.xlu0
        %v610 = vpop.trf.xlu0
        %vm611 = vcmask 1046528
        %v612 = vrot.slane 0.0, 1
        %v613 = vsel %vm611, %v612, %v612
        %v614 = vrot.slane %v310, 1
        %v615 = vrot.slane %v311, 1
        %v616 = vsel %vm611, %v614, %v615
        %v617 = vsel %vm611, %v615, %v612
        %v618 = vrot.slane %v312, 1
        %v619 = vrot.slane %v313, 1
        %v620 = vsel %vm611, %v618, %v619
        %v621 = vsel %vm611, %v619, %v612
        %v622 = vrot.slane %v314, 1
        %v623 = vrot.slane %v315, 1
        %v624 = vsel %vm611, %v622, %v623
        %v625 = vsel %vm611, %v623, %v612
        %v626 = vrot.slane %v316, 1
        %v627 = vrot.slane %v317, 1
        %v628 = vsel %vm611, %v626, %v627
        %v629 = vsel %vm611, %v627, %v612
        %v630 = vrot.slane %v318, 1
        %v631 = vrot.slane %v319, 1
        %v632 = vsel %vm611, %v630, %v631
        %v633 = vsel %vm611, %v631, %v612
        %v634 = vrot.slane %v320, 1
        %v635 = vrot.slane %v321, 1
        %v636 = vsel %vm611, %v634, %v635
        %v637 = vsel %vm611, %v635, %v612
        %v638 = vrot.slane %v322, 1
        %v639 = vrot.slane %v323, 1
        %v640 = vsel %vm611, %v638, %v639
        %v641 = vsel %vm611, %v639, %v612
        %v642 = vrot.slane %v324, 1
        %v643 = vrot.slane %v325, 1
        %v644 = vsel %vm611, %v642, %v643
        %v645 = vsel %vm611, %v643, %v612
        %v646 = vrot.slane %v342, 1
        %v647 = vrot.slane %v343, 1
        %v648 = vsel %vm611, %v646, %v647
        %v649 = vsel %vm611, %v647, %v612
        %v650 = vrot.slane %v344, 1
        %v651 = vrot.slane %v345, 1
        %v652 = vsel %vm611, %v650, %v651
        %v653 = vsel %vm611, %v651, %v612
        %v654 = vrot.slane %v346, 1
        %v655 = vrot.slane %v347, 1
        %v656 = vsel %vm611, %v654, %v655
        %v657 = vsel %vm611, %v655, %v612
        %v658 = vrot.slane %v348, 1
        %v659 = vrot.slane %v349, 1
        %v660 = vsel %vm611, %v658, %v659
        %v661 = vsel %vm611, %v659, %v612
        %v662 = vrot.slane %v350, 1
        %v663 = vrot.slane %v351, 1
        %v664 = vsel %vm611, %v662, %v663
        %v665 = vsel %vm611, %v663, %v612
        %v666 = vrot.slane %v352, 1
        %v667 = vrot.slane %v353, 1
        %v668 = vsel %vm611, %v666, %v667
        %v669 = vsel %vm611, %v667, %v612
        %v670 = vrot.slane %v354, 1
        %v671 = vrot.slane %v355, 1
        %v672 = vsel %vm611, %v670, %v671
        %v673 = vsel %vm611, %v671, %v612
        %705 = vxpose.xlu0.b32.start [1/16] %v613, 128
        %706 = vxpose.xlu0.b32.cont [2/16] %v613, 128
        %707 = vxpose.xlu0.b32.cont [3/16] %v616, 128
        %708 = vxpose.xlu0.b32.cont [4/16] %v617, 128
        %709 = vxpose.xlu0.b32.cont [5/16] %v620, 128
        %710 = vxpose.xlu0.b32.cont [6/16] %v621, 128
        %711 = vxpose.xlu0.b32.cont [7/16] %v624, 128
        %712 = vxpose.xlu0.b32.cont [8/16] %v625, 128
        %713 = vxpose.xlu0.b32.cont [9/16] %v628, 128
        %714 = vxpose.xlu0.b32.cont [10/16] %v629, 128
        %715 = vxpose.xlu0.b32.cont [11/16] %v632, 128
        %716 = vxpose.xlu0.b32.cont [12/16] %v633, 128
        %717 = vxpose.xlu0.b32.cont [13/16] %v636, 128
        %718 = vxpose.xlu0.b32.cont [14/16] %v637, 128
        %719 = vxpose.xlu0.b32.cont [15/16] %v640, 128
        %720 = vxpose.xlu0.b32.end [16/16] %v641, 128
        %v721 = vpop.trf.xlu0
        %v722 = vpop.trf.xlu0
        %v723 = vpop.trf.xlu0
        %v724 = vpop.trf.xlu0
        %v725 = vpop.trf.xlu0
        %v726 = vpop.trf.xlu0
        %v727 = vpop.trf.xlu0
        %v728 = vpop.trf.xlu0
        %v729 = vpop.trf.xlu0
        %v730 = vpop.trf.xlu0
        %v731 = vpop.trf.xlu0
        %v732 = vpop.trf.xlu0
        %v733 = vpop.trf.xlu0
        %v734 = vpop.trf.xlu0
        %v735 = vpop.trf.xlu0
        %v736 = vpop.trf.xlu0
        %737 = vxpose.xlu0.b32.start [1/16] %v644, 128
        %738 = vxpose.xlu0.b32.cont [2/16] %v645, 128
        %739 = vxpose.xlu0.b32.cont [3/16] %v648, 128
        %740 = vxpose.xlu0.b32.cont [4/16] %v649, 128
        %741 = vxpose.xlu0.b32.cont [5/16] %v652, 128
        %742 = vxpose.xlu0.b32.cont [6/16] %v653, 128
        %743 = vxpose.xlu0.b32.cont [7/16] %v656, 128
        %744 = vxpose.xlu0.b32.cont [8/16] %v657, 128
        %745 = vxpose.xlu0.b32.cont [9/16] %v660, 128
        %746 = vxpose.xlu0.b32.cont [10/16] %v661, 128
        %747 = vxpose.xlu0.b32.cont [11/16] %v664, 128
        %748 = vxpose.xlu0.b32.cont [12/16] %v665, 128
        %749 = vxpose.xlu0.b32.cont [13/16] %v668, 128
        %750 = vxpose.xlu0.b32.cont [14/16] %v669, 128
        %751 = vxpose.xlu0.b32.cont [15/16] %v672, 128
        %752 = vxpose.xlu0.b32.end [16/16] %v673, 128
        %v753 = vpop.trf.xlu0
        %v754 = vpop.trf.xlu0
        %v755 = vpop.trf.xlu0
        %v756 = vpop.trf.xlu0
        %v757 = vpop.trf.xlu0
        %v758 = vpop.trf.xlu0
        %v759 = vpop.trf.xlu0
        %v760 = vpop.trf.xlu0
        %v761 = vpop.trf.xlu0
        %v762 = vpop.trf.xlu0
        %v763 = vpop.trf.xlu0
        %v764 = vpop.trf.xlu0
        %v765 = vpop.trf.xlu0
        %v766 = vpop.trf.xlu0
        %v767 = vpop.trf.xlu0
        %v768 = vpop.trf.xlu0
        %v771 = vrot.slane %v356, 7
        %v772 = vsel %vm389, %v390, %v771
        %v773 = vrot.slane %v357, 7
        %v774 = vsel %vm389, %v771, %v773
        %777 = vxpose.xlu0.b32.start [1/16] %v393, 128
        %778 = vxpose.xlu0.b32.cont [2/16] %v395, 128
        %779 = vxpose.xlu0.b32.cont [3/16] %v397, 128
        %780 = vxpose.xlu0.b32.cont [4/16] %v399, 128
        %781 = vxpose.xlu0.b32.cont [5/16] %v401, 128
        %782 = vxpose.xlu0.b32.cont [6/16] %v403, 128
        %783 = vxpose.xlu0.b32.cont [7/16] %v405, 128
        %784 = vxpose.xlu0.b32.cont [8/16] %v407, 128
        %785 = vxpose.xlu0.b32.cont [9/16] %v409, 128
        %786 = vxpose.xlu0.b32.cont [10/16] %v411, 128
        %787 = vxpose.xlu0.b32.cont [11/16] %v413, 128
        %788 = vxpose.xlu0.b32.cont [12/16] %v415, 128
        %789 = vxpose.xlu0.b32.cont [13/16] %v417, 128
        %790 = vxpose.xlu0.b32.cont [14/16] %v419, 128
        %791 = vxpose.xlu0.b32.cont [15/16] %v421, 128
        %792 = vxpose.xlu0.b32.end [16/16] %v423, 128
        %v793 = vpop.trf.xlu0
        %v794 = vpop.trf.xlu0
        %v795 = vpop.trf.xlu0
        %v796 = vpop.trf.xlu0
        %v797 = vpop.trf.xlu0
        %v798 = vpop.trf.xlu0
        %v799 = vpop.trf.xlu0
        %v800 = vpop.trf.xlu0
        %v801 = vpop.trf.xlu0
        %v802 = vpop.trf.xlu0
        %v803 = vpop.trf.xlu0
        %v804 = vpop.trf.xlu0
        %v805 = vpop.trf.xlu0
        %v806 = vpop.trf.xlu0
        %v807 = vpop.trf.xlu0
        %v808 = vpop.trf.xlu0
        %809 = vxpose.xlu0.b32.start [1/16] %v425, 128
        %810 = vxpose.xlu0.b32.cont [2/16] %v427, 128
        %811 = vxpose.xlu0.b32.cont [3/16] %v429, 128
        %812 = vxpose.xlu0.b32.cont [4/16] %v431, 128
        %813 = vxpose.xlu0.b32.cont [5/16] %v433, 128
        %814 = vxpose.xlu0.b32.cont [6/16] %v435, 128
        %815 = vxpose.xlu0.b32.cont [7/16] %v437, 128
        %816 = vxpose.xlu0.b32.cont [8/16] %v439, 128
        %817 = vxpose.xlu0.b32.cont [9/16] %v441, 128
        %818 = vxpose.xlu0.b32.cont [10/16] %v443, 128
        %819 = vxpose.xlu0.b32.cont [11/16] %v445, 128
        %820 = vxpose.xlu0.b32.cont [12/16] %v447, 128
        %821 = vxpose.xlu0.b32.cont [13/16] %v449, 128
        %822 = vxpose.xlu0.b32.cont [14/16] %v451, 128
        %823 = vxpose.xlu0.b32.cont [15/16] %v772, 128
        %824 = vxpose.xlu0.b32.end [16/16] %v774, 128
        %v825 = vpop.trf.xlu0
        %v826 = vpop.trf.xlu0
        %v827 = vpop.trf.xlu0
        %v828 = vpop.trf.xlu0
        %v829 = vpop.trf.xlu0
        %v830 = vpop.trf.xlu0
        %v831 = vpop.trf.xlu0
        %v832 = vpop.trf.xlu0
        %v833 = vpop.trf.xlu0
        %v834 = vpop.trf.xlu0
        %v835 = vpop.trf.xlu0
        %v836 = vpop.trf.xlu0
        %v837 = vpop.trf.xlu0
        %v838 = vpop.trf.xlu0
        %v839 = vpop.trf.xlu0
        %v840 = vpop.trf.xlu0
        %841 = vxpose.xlu0.b32.start [1/16] %v310, 128
        %842 = vxpose.xlu0.b32.cont [2/16] %v311, 128
        %843 = vxpose.xlu0.b32.cont [3/16] %v312, 128
        %844 = vxpose.xlu0.b32.cont [4/16] %v313, 128
        %845 = vxpose.xlu0.b32.cont [5/16] %v314, 128
        %846 = vxpose.xlu0.b32.cont [6/16] %v315, 128
        %847 = vxpose.xlu0.b32.cont [7/16] %v316, 128
        %848 = vxpose.xlu0.b32.cont [8/16] %v317, 128
        %849 = vxpose.xlu0.b32.cont [9/16] %v318, 128
        %850 = vxpose.xlu0.b32.cont [10/16] %v319, 128
        %851 = vxpose.xlu0.b32.cont [11/16] %v320, 128
        %852 = vxpose.xlu0.b32.cont [12/16] %v321, 128
        %853 = vxpose.xlu0.b32.cont [13/16] %v322, 128
        %854 = vxpose.xlu0.b32.cont [14/16] %v323, 128
        %855 = vxpose.xlu0.b32.cont [15/16] %v324, 128
        %856 = vxpose.xlu0.b32.end [16/16] %v325, 128
        %v857 = vpop.trf.xlu0
        %v858 = vpop.trf.xlu0
        %v859 = vpop.trf.xlu0
        %v860 = vpop.trf.xlu0
        %v861 = vpop.trf.xlu0
        %v862 = vpop.trf.xlu0
        %v863 = vpop.trf.xlu0
        %v864 = vpop.trf.xlu0
        %v865 = vpop.trf.xlu0
        %v866 = vpop.trf.xlu0
        %v867 = vpop.trf.xlu0
        %v868 = vpop.trf.xlu0
        %v869 = vpop.trf.xlu0
        %v870 = vpop.trf.xlu0
        %v871 = vpop.trf.xlu0
        %v872 = vpop.trf.xlu0
        %873 = vxpose.xlu0.b32.start [1/16] %v342, 128
        %874 = vxpose.xlu0.b32.cont [2/16] %v343, 128
        %875 = vxpose.xlu0.b32.cont [3/16] %v344, 128
        %876 = vxpose.xlu0.b32.cont [4/16] %v345, 128
        %877 = vxpose.xlu0.b32.cont [5/16] %v346, 128
        %878 = vxpose.xlu0.b32.cont [6/16] %v347, 128
        %879 = vxpose.xlu0.b32.cont [7/16] %v348, 128
        %880 = vxpose.xlu0.b32.cont [8/16] %v349, 128
        %881 = vxpose.xlu0.b32.cont [9/16] %v350, 128
        %882 = vxpose.xlu0.b32.cont [10/16] %v351, 128
        %883 = vxpose.xlu0.b32.cont [11/16] %v352, 128
        %884 = vxpose.xlu0.b32.cont [12/16] %v353, 128
        %885 = vxpose.xlu0.b32.cont [13/16] %v354, 128
        %886 = vxpose.xlu0.b32.cont [14/16] %v355, 128
        %887 = vxpose.xlu0.b32.cont [15/16] %v356, 128
        %888 = vxpose.xlu0.b32.end [16/16] %v357, 128
        %v889 = vpop.trf.xlu0
        %v890 = vpop.trf.xlu0
        %v891 = vpop.trf.xlu0
        %v892 = vpop.trf.xlu0
        %v893 = vpop.trf.xlu0
        %v894 = vpop.trf.xlu0
        %v895 = vpop.trf.xlu0
        %v896 = vpop.trf.xlu0
        %v897 = vpop.trf.xlu0
        %v898 = vpop.trf.xlu0
        %v899 = vpop.trf.xlu0
        %v900 = vpop.trf.xlu0
        %v901 = vpop.trf.xlu0
        %v902 = vpop.trf.xlu0
        %v903 = vpop.trf.xlu0
        %v904 = vpop.trf.xlu0
        %v905 = vrot.slane %v356, 1
        %v906 = vrot.slane %v357, 1
        %v907 = vsel %vm611, %v905, %v906
        %v908 = vsel %vm611, %v906, %v612
        %911 = vxpose.xlu0.b32.start [1/16] %v616, 128
        %912 = vxpose.xlu0.b32.cont [2/16] %v617, 128
        %913 = vxpose.xlu0.b32.cont [3/16] %v620, 128
        %914 = vxpose.xlu0.b32.cont [4/16] %v621, 128
        %915 = vxpose.xlu0.b32.cont [5/16] %v624, 128
        %916 = vxpose.xlu0.b32.cont [6/16] %v625, 128
        %917 = vxpose.xlu0.b32.cont [7/16] %v628, 128
        %918 = vxpose.xlu0.b32.cont [8/16] %v629, 128
        %919 = vxpose.xlu0.b32.cont [9/16] %v632, 128
        %920 = vxpose.xlu0.b32.cont [10/16] %v633, 128
        %921 = vxpose.xlu0.b32.cont [11/16] %v636, 128
        %922 = vxpose.xlu0.b32.cont [12/16] %v637, 128
        %923 = vxpose.xlu0.b32.cont [13/16] %v640, 128
        %924 = vxpose.xlu0.b32.cont [14/16] %v641, 128
        %925 = vxpose.xlu0.b32.cont [15/16] %v644, 128
        %926 = vxpose.xlu0.b32.end [16/16] %v645, 128
        %v927 = vpop.trf.xlu0
        %v928 = vpop.trf.xlu0
        %v929 = vpop.trf.xlu0
        %v930 = vpop.trf.xlu0
        %v931 = vpop.trf.xlu0
        %v932 = vpop.trf.xlu0
        %v933 = vpop.trf.xlu0
        %v934 = vpop.trf.xlu0
        %v935 = vpop.trf.xlu0
        %v936 = vpop.trf.xlu0
        %v937 = vpop.trf.xlu0
        %v938 = vpop.trf.xlu0
        %v939 = vpop.trf.xlu0
        %v940 = vpop.trf.xlu0
        %v941 = vpop.trf.xlu0
        %v942 = vpop.trf.xlu0
        %943 = vxpose.xlu0.b32.start [1/16] %v648, 128
        %944 = vxpose.xlu0.b32.cont [2/16] %v649, 128
        %945 = vxpose.xlu0.b32.cont [3/16] %v652, 128
        %946 = vxpose.xlu0.b32.cont [4/16] %v653, 128
        %947 = vxpose.xlu0.b32.cont [5/16] %v656, 128
        %948 = vxpose.xlu0.b32.cont [6/16] %v657, 128
        %949 = vxpose.xlu0.b32.cont [7/16] %v660, 128
        %950 = vxpose.xlu0.b32.cont [8/16] %v661, 128
        %951 = vxpose.xlu0.b32.cont [9/16] %v664, 128
        %952 = vxpose.xlu0.b32.cont [10/16] %v665, 128
        %953 = vxpose.xlu0.b32.cont [11/16] %v668, 128
        %954 = vxpose.xlu0.b32.cont [12/16] %v669, 128
        %955 = vxpose.xlu0.b32.cont [13/16] %v672, 128
        %956 = vxpose.xlu0.b32.cont [14/16] %v673, 128
        %957 = vxpose.xlu0.b32.cont [15/16] %v907, 128
        %958 = vxpose.xlu0.b32.end [16/16] %v908, 128
        %v959 = vpop.trf.xlu0
        %v960 = vpop.trf.xlu0
        %v961 = vpop.trf.xlu0
        %v962 = vpop.trf.xlu0
        %v963 = vpop.trf.xlu0
        %v964 = vpop.trf.xlu0
        %v965 = vpop.trf.xlu0
        %v966 = vpop.trf.xlu0
        %v967 = vpop.trf.xlu0
        %v968 = vpop.trf.xlu0
        %v969 = vpop.trf.xlu0
        %v970 = vpop.trf.xlu0
        %v971 = vpop.trf.xlu0
        %v972 = vpop.trf.xlu0
        %v973 = vpop.trf.xlu0
        %v974 = vpop.trf.xlu0
        %975 = vxpose.xlu0.b32.start [1/16] %v397, 128
        %976 = vxpose.xlu0.b32.cont [2/16] %v399, 128
        %977 = vxpose.xlu0.b32.cont [3/16] %v401, 128
        %978 = vxpose.xlu0.b32.cont [4/16] %v403, 128
        %979 = vxpose.xlu0.b32.cont [5/16] %v405, 128
        %980 = vxpose.xlu0.b32.cont [6/16] %v407, 128
        %981 = vxpose.xlu0.b32.cont [7/16] %v409, 128
        %982 = vxpose.xlu0.b32.cont [8/16] %v411, 128
        %983 = vxpose.xlu0.b32.cont [9/16] %v413, 128
        %984 = vxpose.xlu0.b32.cont [10/16] %v415, 128
        %985 = vxpose.xlu0.b32.cont [11/16] %v417, 128
        %986 = vxpose.xlu0.b32.cont [12/16] %v419, 128
        %987 = vxpose.xlu0.b32.cont [13/16] %v421, 128
        %988 = vxpose.xlu0.b32.cont [14/16] %v423, 128
        %989 = vxpose.xlu0.b32.cont [15/16] %v425, 128
        %990 = vxpose.xlu0.b32.end [16/16] %v427, 128
        %v991 = vpop.trf.xlu0
        %v992 = vpop.trf.xlu0
        %v993 = vpop.trf.xlu0
        %v994 = vpop.trf.xlu0
        %v995 = vpop.trf.xlu0
        %v996 = vpop.trf.xlu0
        %v997 = vpop.trf.xlu0
        %v998 = vpop.trf.xlu0
        %v999 = vpop.trf.xlu0
        %v1000 = vpop.trf.xlu0
        %v1001 = vpop.trf.xlu0
        %v1002 = vpop.trf.xlu0
        %v1003 = vpop.trf.xlu0
        %v1004 = vpop.trf.xlu0
        %v1005 = vpop.trf.xlu0
        %v1006 = vpop.trf.xlu0
        %1007 = vxpose.xlu0.b32.start [1/16] %v429, 128
        %1008 = vxpose.xlu0.b32.cont [2/16] %v431, 128
        %1009 = vxpose.xlu0.b32.cont [3/16] %v433, 128
        %1010 = vxpose.xlu0.b32.cont [4/16] %v435, 128
        %1011 = vxpose.xlu0.b32.cont [5/16] %v437, 128
        %1012 = vxpose.xlu0.b32.cont [6/16] %v439, 128
        %1013 = vxpose.xlu0.b32.cont [7/16] %v441, 128
        %1014 = vxpose.xlu0.b32.cont [8/16] %v443, 128
        %1015 = vxpose.xlu0.b32.cont [9/16] %v445, 128
        %1016 = vxpose.xlu0.b32.cont [10/16] %v447, 128
        %1017 = vxpose.xlu0.b32.cont [11/16] %v449, 128
        %1018 = vxpose.xlu0.b32.cont [12/16] %v451, 128
        %1019 = vxpose.xlu0.b32.cont [13/16] %v772, 128
        %1020 = vxpose.xlu0.b32.cont [14/16] %v774, 128
        %1021 = vxpose.xlu0.b32.cont [15/16] %v391, 128
        %1022 = vxpose.xlu0.b32.end [16/16] %v391, 128
        %v1023 = vpop.trf.xlu0
        %v1024 = vpop.trf.xlu0
        %v1025 = vpop.trf.xlu0
        %v1026 = vpop.trf.xlu0
        %v1027 = vpop.trf.xlu0
        %v1028 = vpop.trf.xlu0
        %v1029 = vpop.trf.xlu0
        %v1030 = vpop.trf.xlu0
        %v1031 = vpop.trf.xlu0
        %v1032 = vpop.trf.xlu0
        %v1033 = vpop.trf.xlu0
        %v1034 = vpop.trf.xlu0
        %v1035 = vpop.trf.xlu0
        %v1036 = vpop.trf.xlu0
        %v1037 = vpop.trf.xlu0
        %v1038 = vpop.trf.xlu0
        %1039 = vxpose.xlu0.b32.start [1/16] %v312, 128
        %1040 = vxpose.xlu0.b32.cont [2/16] %v313, 128
        %1041 = vxpose.xlu0.b32.cont [3/16] %v314, 128
        %1042 = vxpose.xlu0.b32.cont [4/16] %v315, 128
        %1043 = vxpose.xlu0.b32.cont [5/16] %v316, 128
        %1044 = vxpose.xlu0.b32.cont [6/16] %v317, 128
        %1045 = vxpose.xlu0.b32.cont [7/16] %v318, 128
        %1046 = vxpose.xlu0.b32.cont [8/16] %v319, 128
        %1047 = vxpose.xlu0.b32.cont [9/16] %v320, 128
        %1048 = vxpose.xlu0.b32.cont [10/16] %v321, 128
        %1049 = vxpose.xlu0.b32.cont [11/16] %v322, 128
        %1050 = vxpose.xlu0.b32.cont [12/16] %v323, 128
        %1051 = vxpose.xlu0.b32.cont [13/16] %v324, 128
        %1052 = vxpose.xlu0.b32.cont [14/16] %v325, 128
        %1053 = vxpose.xlu0.b32.cont [15/16] %v342, 128
        %1054 = vxpose.xlu0.b32.end [16/16] %v343, 128
        %v1055 = vpop.trf.xlu0
        %v1056 = vpop.trf.xlu0
        %v1057 = vpop.trf.xlu0
        %v1058 = vpop.trf.xlu0
        %v1059 = vpop.trf.xlu0
        %v1060 = vpop.trf.xlu0
        %v1061 = vpop.trf.xlu0
        %v1062 = vpop.trf.xlu0
        %v1063 = vpop.trf.xlu0
        %v1064 = vpop.trf.xlu0
        %v1065 = vpop.trf.xlu0
        %v1066 = vpop.trf.xlu0
        %v1067 = vpop.trf.xlu0
        %v1068 = vpop.trf.xlu0
        %v1069 = vpop.trf.xlu0
        %v1070 = vpop.trf.xlu0
        %1071 = vxpose.xlu0.b32.start [1/16] %v344, 128
        %1072 = vxpose.xlu0.b32.cont [2/16] %v345, 128
        %1073 = vxpose.xlu0.b32.cont [3/16] %v346, 128
        %1074 = vxpose.xlu0.b32.cont [4/16] %v347, 128
        %1075 = vxpose.xlu0.b32.cont [5/16] %v348, 128
        %1076 = vxpose.xlu0.b32.cont [6/16] %v349, 128
        %1077 = vxpose.xlu0.b32.cont [7/16] %v350, 128
        %1078 = vxpose.xlu0.b32.cont [8/16] %v351, 128
        %1079 = vxpose.xlu0.b32.cont [9/16] %v352, 128
        %1080 = vxpose.xlu0.b32.cont [10/16] %v353, 128
        %1081 = vxpose.xlu0.b32.cont [11/16] %v354, 128
        %1082 = vxpose.xlu0.b32.cont [12/16] %v355, 128
        %1083 = vxpose.xlu0.b32.cont [13/16] %v356, 128
        %1084 = vxpose.xlu0.b32.cont [14/16] %v357, 128
        %1085 = vxpose.xlu0.b32.cont [15/16] 0.0, 128
        %1086 = vxpose.xlu0.b32.end [16/16] 0.0, 128
        %v1087 = vpop.trf.xlu0
        %v1088 = vpop.trf.xlu0
        %v1089 = vpop.trf.xlu0
        %v1090 = vpop.trf.xlu0
        %v1091 = vpop.trf.xlu0
        %v1092 = vpop.trf.xlu0
        %v1093 = vpop.trf.xlu0
        %v1094 = vpop.trf.xlu0
        %v1095 = vpop.trf.xlu0
        %v1096 = vpop.trf.xlu0
        %v1097 = vpop.trf.xlu0
        %v1098 = vpop.trf.xlu0
        %v1099 = vpop.trf.xlu0
        %v1100 = vpop.trf.xlu0
        %v1101 = vpop.trf.xlu0
        %v1102 = vpop.trf.xlu0
        %1103 = vxpose.xlu0.b32.start [1/16] %v620, 128
        %1104 = vxpose.xlu0.b32.cont [2/16] %v621, 128
        %1105 = vxpose.xlu0.b32.cont [3/16] %v624, 128
        %1106 = vxpose.xlu0.b32.cont [4/16] %v625, 128
        %1107 = vxpose.xlu0.b32.cont [5/16] %v628, 128
        %1108 = vxpose.xlu0.b32.cont [6/16] %v629, 128
        %1109 = vxpose.xlu0.b32.cont [7/16] %v632, 128
        %1110 = vxpose.xlu0.b32.cont [8/16] %v633, 128
        %1111 = vxpose.xlu0.b32.cont [9/16] %v636, 128
        %1112 = vxpose.xlu0.b32.cont [10/16] %v637, 128
        %1113 = vxpose.xlu0.b32.cont [11/16] %v640, 128
        %1114 = vxpose.xlu0.b32.cont [12/16] %v641, 128
        %1115 = vxpose.xlu0.b32.cont [13/16] %v644, 128
        %1116 = vxpose.xlu0.b32.cont [14/16] %v645, 128
        %1117 = vxpose.xlu0.b32.cont [15/16] %v648, 128
        %1118 = vxpose.xlu0.b32.end [16/16] %v649, 128
        %v1119 = vpop.trf.xlu0
        %v1120 = vpop.trf.xlu0
        %v1121 = vpop.trf.xlu0
        %v1122 = vpop.trf.xlu0
        %v1123 = vpop.trf.xlu0
        %v1124 = vpop.trf.xlu0
        %v1125 = vpop.trf.xlu0
        %v1126 = vpop.trf.xlu0
        %v1127 = vpop.trf.xlu0
        %v1128 = vpop.trf.xlu0
        %v1129 = vpop.trf.xlu0
        %v1130 = vpop.trf.xlu0
        %v1131 = vpop.trf.xlu0
        %v1132 = vpop.trf.xlu0
        %v1133 = vpop.trf.xlu0
        %v1134 = vpop.trf.xlu0
        %1135 = vxpose.xlu0.b32.start [1/16] %v652, 128
        %1136 = vxpose.xlu0.b32.cont [2/16] %v653, 128
        %1137 = vxpose.xlu0.b32.cont [3/16] %v656, 128
        %1138 = vxpose.xlu0.b32.cont [4/16] %v657, 128
        %1139 = vxpose.xlu0.b32.cont [5/16] %v660, 128
        %1140 = vxpose.xlu0.b32.cont [6/16] %v661, 128
        %1141 = vxpose.xlu0.b32.cont [7/16] %v664, 128
        %1142 = vxpose.xlu0.b32.cont [8/16] %v665, 128
        %1143 = vxpose.xlu0.b32.cont [9/16] %v668, 128
        %1144 = vxpose.xlu0.b32.cont [10/16] %v669, 128
        %1145 = vxpose.xlu0.b32.cont [11/16] %v672, 128
        %1146 = vxpose.xlu0.b32.cont [12/16] %v673, 128
        %1147 = vxpose.xlu0.b32.cont [13/16] %v907, 128
        %1148 = vxpose.xlu0.b32.cont [14/16] %v908, 128
        %1149 = vxpose.xlu0.b32.cont [15/16] %v613, 128
        %1150 = vxpose.xlu0.b32.end [16/16] %v613, 128
        %v1151 = vpop.trf.xlu0
        %v1152 = vpop.trf.xlu0
        %v1153 = vpop.trf.xlu0
        %v1154 = vpop.trf.xlu0
        %v1155 = vpop.trf.xlu0
        %v1156 = vpop.trf.xlu0
        %v1157 = vpop.trf.xlu0
        %v1158 = vpop.trf.xlu0
        %v1159 = vpop.trf.xlu0
        %v1160 = vpop.trf.xlu0
        %v1161 = vpop.trf.xlu0
        %v1162 = vpop.trf.xlu0
        %v1163 = vpop.trf.xlu0
        %v1164 = vpop.trf.xlu0
        %v1165 = vpop.trf.xlu0
        %v1166 = vpop.trf.xlu0
        %v1167 = vld [vmem:[#allocation5] sm:$0xf]
        %v1168 = vpack.c.bf16 %v563, %v499
        %v1169 = vpack.c.bf16 %v595, %v531
        %v1170 = vpack.c.bf16 %v793, %v721
        %v1171 = vpack.c.bf16 %v825, %v753
        %v1172 = vpack.c.bf16 %v927, %v857
        %v1173 = vpack.c.bf16 %v959, %v889
        %v1174 = vpack.c.bf16 %v1055, %v991
        %v1175 = vpack.c.bf16 %v1087, %v1023
        %v1176 = vpack.c.bf16 %v1119, %v1119
        %v1177 = vpack.c.bf16 %v1151, %v1151
        %v1178 = vld [vmem:[#allocation7] sm:$0xff]
        %1180 = vset.pattern.permute.xlu0 0
        %1181 = vperm.xlu0 %1180, %v1178
        %v1182 = vpop.permute.xlu0 %1181
        %vm1184 = vcmask 588800
        %v1186 = vsel %vm1184, %v1167, 0
        %vm1188 = vcmask 1043456
        %v1190 = vsel %vm1188, %v1176, 0
        %v1193 = vsel %vm1188, %v1177, 0
        %1195 = vmatprep.subr.bf16.mxu0 %v1169
        %1196 = vmatpush1.bf16.msra.mxu0 %v1168
        %1197 = vmatprep.subr.bf16.mxu0 %v1171
        %1198 = vmatpush1.bf16.msra.mxu0 %v1170
        %1199 = vmatprep.subr.bf16.mxu0 %v1173
        %1200 = vmatpush1.bf16.msra.mxu0 %v1172
        %1201 = vmatprep.subr.bf16.mxu0 %v1175
        %1202 = vmatpush1.bf16.msra.mxu0 %v1174
        %1203 = vmatprep.subr.bf16.mxu0 %v1193
        %1204 = vmatpush1.bf16.msra.mxu0 %v1190
        %1205 = vmatprep.subr.bf16.mxu0 0
        %1206 = vmatpush1.bf16.msra.mxu0 0
        %1207 = vmatprep.subr.bf16.mxu0 0
        %1208 = vmatpush1.bf16.msra.mxu0 0
        %1209 = vmatprep.subr.bf16.mxu0 0
        %1210 = vmatpush1.bf16.msra.mxu0 0
        %1211 = vmatprep.subr.bf16.mxu0 0
        %1212 = vmatpush1.bf16.msra.mxu0 0
        %1213 = vmatprep.subr.bf16.mxu0 0
        %1214 = vmatpush1.bf16.msra.mxu0 0
        %1215 = vmatprep.subr.bf16.mxu0 0
        %1216 = vmatpush1.bf16.msra.mxu0 0
        %1217 = vmatprep.subr.bf16.mxu0 0
        %1218 = vmatpush1.bf16.msra.mxu0 0
        %1219 = vmatprep.subr.bf16.mxu0 0
        %1220 = vmatpush1.bf16.msra.mxu0 0
        %1221 = vmatprep.subr.bf16.mxu0 0
        %1222 = vmatpush1.bf16.msra.mxu0 0
        %1223 = vmatprep.subr.bf16.mxu0 0
        %1224 = vmatpush1.bf16.msra.mxu0 0
        %1225 = vmatprep.subr.bf16.mxu0 0
        %1226 = vmatpush1.bf16.msra.mxu0 0
        %1227 = vmatprep.mubr.bf16.mxu0 0
        %1228 = vmatmul.mubr.bf16.gmra.mrb[0].mxu0 %v1186
        %v1229 = vpop.f32.mrb[0].mxu0
        %v1230 = vadd.f32 %v1182, %v1229
        %v1231 = vpop.f32.mrb[0].mxu0
        %v1232 = vadd.f32 %v1182, %v1231
        %v1233 = vpop.f32.mrb[0].mxu0
        %v1234 = vpop.f32.mrb[0].mxu0
        %1235 = vdwg.mxu0
        %vm1236 = vcmp.gt.f32.partialorder %v1230, 0.0
        %vm1237 = vcmp.gt.f32.partialorder %v1232, 0.0
        %v1238 = vmul.f32 %v1230, 0.2
        %v1239 = vmul.f32 %v1232, 0.2
        %v1240 = vsel %vm1236, %v1230, %v1238
        %v1241 = vsel %vm1237, %v1232, %v1239
        %1242 = vxpose.xlu0.b32.start [1/16] %v1240, 128
        %1243 = vxpose.xlu0.b32.cont [2/16] 0.0, 128
        %1244 = vxpose.xlu0.b32.cont [3/16] 0.0, 128
        %1245 = vxpose.xlu0.b32.cont [4/16] 0.0, 128
        %1246 = vxpose.xlu0.b32.cont [5/16] 0.0, 128
        %1247 = vxpose.xlu0.b32.cont [6/16] 0.0, 128
        %1248 = vxpose.xlu0.b32.cont [7/16] 0.0, 128
        %1249 = vxpose.xlu0.b32.cont [8/16] 0.0, 128
        %1250 = vxpose.xlu0.b32.cont [9/16] 0.0, 128
        %1251 = vxpose.xlu0.b32.cont [10/16] 0.0, 128
        %1252 = vxpose.xlu0.b32.cont [11/16] 0.0, 128
        %1253 = vxpose.xlu0.b32.cont [12/16] 0.0, 128
        %1254 = vxpose.xlu0.b32.cont [13/16] 0.0, 128
        %1255 = vxpose.xlu0.b32.cont [14/16] 0.0, 128
        %1256 = vxpose.xlu0.b32.cont [15/16] 0.0, 128
        %1257 = vxpose.xlu0.b32.end [16/16] 0.0, 128
        %v1258 = vpop.trf.xlu0
        %v1259 = vpop.trf.xlu0
        %v1260 = vpop.trf.xlu0
        %v1261 = vpop.trf.xlu0
        %v1262 = vpop.trf.xlu0
        %v1263 = vpop.trf.xlu0
        %v1264 = vpop.trf.xlu0
        %v1265 = vpop.trf.xlu0
        %v1266 = vpop.trf.xlu0
        %v1267 = vpop.trf.xlu0
        %v1268 = vpop.trf.xlu0
        %v1269 = vpop.trf.xlu0
        %v1270 = vpop.trf.xlu0
        %v1271 = vpop.trf.xlu0
        %v1272 = vpop.trf.xlu0
        %v1273 = vpop.trf.xlu0
        %1274 = vxpose.xlu0.b32.start [1/16] %v1241, 128
        %1275 = vxpose.xlu0.b32.cont [2/16] 0.0, 128
        %1276 = vxpose.xlu0.b32.cont [3/16] 0.0, 128
        %1277 = vxpose.xlu0.b32.cont [4/16] 0.0, 128
        %1278 = vxpose.xlu0.b32.cont [5/16] 0.0, 128
        %1279 = vxpose.xlu0.b32.cont [6/16] 0.0, 128
        %1280 = vxpose.xlu0.b32.cont [7/16] 0.0, 128
        %1281 = vxpose.xlu0.b32.cont [8/16] 0.0, 128
        %1282 = vxpose.xlu0.b32.cont [9/16] 0.0, 128
        %1283 = vxpose.xlu0.b32.cont [10/16] 0.0, 128
        %1284 = vxpose.xlu0.b32.cont [11/16] 0.0, 128
        %1285 = vxpose.xlu0.b32.cont [12/16] 0.0, 128
        %1286 = vxpose.xlu0.b32.cont [13/16] 0.0, 128
        %1287 = vxpose.xlu0.b32.cont [14/16] 0.0, 128
        %1288 = vxpose.xlu0.b32.cont [15/16] 0.0, 128
        %1289 = vxpose.xlu0.b32.end [16/16] 0.0, 128
        %v1290 = vpop.trf.xlu0
        %v1291 = vpop.trf.xlu0
        %v1292 = vpop.trf.xlu0
        %v1293 = vpop.trf.xlu0
        %v1294 = vpop.trf.xlu0
        %v1295 = vpop.trf.xlu0
        %v1296 = vpop.trf.xlu0
        %v1297 = vpop.trf.xlu0
        %v1298 = vpop.trf.xlu0
        %v1299 = vpop.trf.xlu0
        %v1300 = vpop.trf.xlu0
        %v1301 = vpop.trf.xlu0
        %v1302 = vpop.trf.xlu0
        %v1303 = vpop.trf.xlu0
        %v1304 = vpop.trf.xlu0
        %v1305 = vpop.trf.xlu0
        %v1336 = vrot.slane %v1258, 7
        %v1337 = vsel %vm389, %v390, %v1336
        %v1338 = vrot.slane %v1259, 7
        %v1339 = vsel %vm389, %v1336, %v1338
        %v1340 = vrot.slane %v1260, 7
        %v1341 = vsel %vm389, %v390, %v1340
        %v1342 = vrot.slane %v1261, 7
        %v1343 = vsel %vm389, %v1340, %v1342
        %v1344 = vrot.slane %v1262, 7
        %v1345 = vsel %vm389, %v390, %v1344
        %v1346 = vrot.slane %v1263, 7
        %v1347 = vsel %vm389, %v1344, %v1346
        %v1348 = vrot.slane %v1264, 7
        %v1349 = vsel %vm389, %v390, %v1348
        %v1350 = vrot.slane %v1265, 7
        %v1351 = vsel %vm389, %v1348, %v1350
        %v1352 = vrot.slane %v1266, 7
        %v1353 = vsel %vm389, %v390, %v1352
        %v1354 = vrot.slane %v1267, 7
        %v1355 = vsel %vm389, %v1352, %v1354
        %v1356 = vrot.slane %v1268, 7
        %v1357 = vsel %vm389, %v390, %v1356
        %v1358 = vrot.slane %v1269, 7
        %v1359 = vsel %vm389, %v1356, %v1358
        %v1360 = vrot.slane %v1270, 7
        %v1361 = vsel %vm389, %v390, %v1360
        %v1362 = vrot.slane %v1271, 7
        %v1363 = vsel %vm389, %v1360, %v1362
        %v1364 = vrot.slane %v1272, 7
        %v1365 = vsel %vm389, %v390, %v1364
        %v1366 = vrot.slane %v1273, 7
        %v1367 = vsel %vm389, %v1364, %v1366
        %v1368 = vrot.slane %v1290, 7
        %v1369 = vsel %vm389, %v390, %v1368
        %v1370 = vrot.slane %v1291, 7
        %v1371 = vsel %vm389, %v1368, %v1370
        %v1372 = vrot.slane %v1292, 7
        %v1373 = vsel %vm389, %v390, %v1372
        %v1374 = vrot.slane %v1293, 7
        %v1375 = vsel %vm389, %v1372, %v1374
        %v1376 = vrot.slane %v1294, 7
        %v1377 = vsel %vm389, %v390, %v1376
        %v1378 = vrot.slane %v1295, 7
        %v1379 = vsel %vm389, %v1376, %v1378
        %v1380 = vrot.slane %v1296, 7
        %v1381 = vsel %vm389, %v390, %v1380
        %v1382 = vrot.slane %v1297, 7
        %v1383 = vsel %vm389, %v1380, %v1382
        %v1384 = vrot.slane %v1298, 7
        %v1385 = vsel %vm389, %v390, %v1384
        %v1386 = vrot.slane %v1299, 7
        %v1387 = vsel %vm389, %v1384, %v1386
        %v1388 = vrot.slane %v1300, 7
        %v1389 = vsel %vm389, %v390, %v1388
        %v1390 = vrot.slane %v1301, 7
        %v1391 = vsel %vm389, %v1388, %v1390
        %v1392 = vrot.slane %v1302, 7
        %v1393 = vsel %vm389, %v390, %v1392
        %v1394 = vrot.slane %v1303, 7
        %v1395 = vsel %vm389, %v1392, %v1394
        %1426 = vxpose.xlu0.b32.start [1/16] %v391, 128
        %1427 = vxpose.xlu0.b32.cont [2/16] %v391, 128
        %1428 = vxpose.xlu0.b32.cont [3/16] %v1337, 128
        %1429 = vxpose.xlu0.b32.cont [4/16] %v1339, 128
        %1430 = vxpose.xlu0.b32.cont [5/16] %v1341, 128
        %1431 = vxpose.xlu0.b32.cont [6/16] %v1343, 128
        %1432 = vxpose.xlu0.b32.cont [7/16] %v1345, 128
        %1433 = vxpose.xlu0.b32.cont [8/16] %v1347, 128
        %1434 = vxpose.xlu0.b32.cont [9/16] %v1349, 128
        %1435 = vxpose.xlu0.b32.cont [10/16] %v1351, 128
        %1436 = vxpose.xlu0.b32.cont [11/16] %v1353, 128
        %1437 = vxpose.xlu0.b32.cont [12/16] %v1355, 128
        %1438 = vxpose.xlu0.b32.cont [13/16] %v1357, 128
        %1439 = vxpose.xlu0.b32.cont [14/16] %v1359, 128
        %1440 = vxpose.xlu0.b32.cont [15/16] %v1361, 128
        %1441 = vxpose.xlu0.b32.end [16/16] %v1363, 128
        %v1442 = vpop.trf.xlu0
        %v1443 = vpop.trf.xlu0
        %v1444 = vpop.trf.xlu0
        %v1445 = vpop.trf.xlu0
        %v1446 = vpop.trf.xlu0
        %v1447 = vpop.trf.xlu0
        %v1448 = vpop.trf.xlu0
        %v1449 = vpop.trf.xlu0
        %v1450 = vpop.trf.xlu0
        %v1451 = vpop.trf.xlu0
        %v1452 = vpop.trf.xlu0
        %v1453 = vpop.trf.xlu0
        %v1454 = vpop.trf.xlu0
        %v1455 = vpop.trf.xlu0
        %v1456 = vpop.trf.xlu0
        %v1457 = vpop.trf.xlu0
        %1458 = vxpose.xlu0.b32.start [1/16] %v1365, 128
        %1459 = vxpose.xlu0.b32.cont [2/16] %v1367, 128
        %1460 = vxpose.xlu0.b32.cont [3/16] %v1369, 128
        %1461 = vxpose.xlu0.b32.cont [4/16] %v1371, 128
        %1462 = vxpose.xlu0.b32.cont [5/16] %v1373, 128
        %1463 = vxpose.xlu0.b32.cont [6/16] %v1375, 128
        %1464 = vxpose.xlu0.b32.cont [7/16] %v1377, 128
        %1465 = vxpose.xlu0.b32.cont [8/16] %v1379, 128
        %1466 = vxpose.xlu0.b32.cont [9/16] %v1381, 128
        %1467 = vxpose.xlu0.b32.cont [10/16] %v1383, 128
        %1468 = vxpose.xlu0.b32.cont [11/16] %v1385, 128
        %1469 = vxpose.xlu0.b32.cont [12/16] %v1387, 128
        %1470 = vxpose.xlu0.b32.cont [13/16] %v1389, 128
        %1471 = vxpose.xlu0.b32.cont [14/16] %v1391, 128
        %1472 = vxpose.xlu0.b32.cont [15/16] %v1393, 128
        %1473 = vxpose.xlu0.b32.end [16/16] %v1395, 128
        %v1474 = vpop.trf.xlu0
        %v1475 = vpop.trf.xlu0
        %v1476 = vpop.trf.xlu0
        %v1477 = vpop.trf.xlu0
        %v1478 = vpop.trf.xlu0
        %v1479 = vpop.trf.xlu0
        %v1480 = vpop.trf.xlu0
        %v1481 = vpop.trf.xlu0
        %v1482 = vpop.trf.xlu0
        %v1483 = vpop.trf.xlu0
        %v1484 = vpop.trf.xlu0
        %v1485 = vpop.trf.xlu0
        %v1486 = vpop.trf.xlu0
        %v1487 = vpop.trf.xlu0
        %v1488 = vpop.trf.xlu0
        %v1489 = vpop.trf.xlu0
        %1490 = vxpose.xlu0.b32.start [1/16] 0.0, 128
        %1491 = vxpose.xlu0.b32.cont [2/16] 0.0, 128
        %1492 = vxpose.xlu0.b32.cont [3/16] %v1258, 128
        %1493 = vxpose.xlu0.b32.cont [4/16] %v1259, 128
        %1494 = vxpose.xlu0.b32.cont [5/16] %v1260, 128
        %1495 = vxpose.xlu0.b32.cont [6/16] %v1261, 128
        %1496 = vxpose.xlu0.b32.cont [7/16] %v1262, 128
        %1497 = vxpose.xlu0.b32.cont [8/16] %v1263, 128
        %1498 = vxpose.xlu0.b32.cont [9/16] %v1264, 128
        %1499 = vxpose.xlu0.b32.cont [10/16] %v1265, 128
        %1500 = vxpose.xlu0.b32.cont [11/16] %v1266, 128
        %1501 = vxpose.xlu0.b32.cont [12/16] %v1267, 128
        %1502 = vxpose.xlu0.b32.cont [13/16] %v1268, 128
        %1503 = vxpose.xlu0.b32.cont [14/16] %v1269, 128
        %1504 = vxpose.xlu0.b32.cont [15/16] %v1270, 128
        %1505 = vxpose.xlu0.b32.end [16/16] %v1271, 128
        %v1506 = vpop.trf.xlu0
        %v1507 = vpop.trf.xlu0
        %v1508 = vpop.trf.xlu0
        %v1509 = vpop.trf.xlu0
        %v1510 = vpop.trf.xlu0
        %v1511 = vpop.trf.xlu0
        %v1512 = vpop.trf.xlu0
        %v1513 = vpop.trf.xlu0
        %v1514 = vpop.trf.xlu0
        %v1515 = vpop.trf.xlu0
        %v1516 = vpop.trf.xlu0
        %v1517 = vpop.trf.xlu0
        %v1518 = vpop.trf.xlu0
        %v1519 = vpop.trf.xlu0
        %v1520 = vpop.trf.xlu0
        %v1521 = vpop.trf.xlu0
        %1522 = vxpose.xlu0.b32.start [1/16] %v1272, 128
        %1523 = vxpose.xlu0.b32.cont [2/16] %v1273, 128
        %1524 = vxpose.xlu0.b32.cont [3/16] %v1290, 128
        %1525 = vxpose.xlu0.b32.cont [4/16] %v1291, 128
        %1526 = vxpose.xlu0.b32.cont [5/16] %v1292, 128
        %1527 = vxpose.xlu0.b32.cont [6/16] %v1293, 128
        %1528 = vxpose.xlu0.b32.cont [7/16] %v1294, 128
        %1529 = vxpose.xlu0.b32.cont [8/16] %v1295, 128
        %1530 = vxpose.xlu0.b32.cont [9/16] %v1296, 128
        %1531 = vxpose.xlu0.b32.cont [10/16] %v1297, 128
        %1532 = vxpose.xlu0.b32.cont [11/16] %v1298, 128
        %1533 = vxpose.xlu0.b32.cont [12/16] %v1299, 128
        %1534 = vxpose.xlu0.b32.cont [13/16] %v1300, 128
        %1535 = vxpose.xlu0.b32.cont [14/16] %v1301, 128
        %1536 = vxpose.xlu0.b32.cont [15/16] %v1302, 128
        %1537 = vxpose.xlu0.b32.end [16/16] %v1303, 128
        %v1538 = vpop.trf.xlu0
        %v1539 = vpop.trf.xlu0
        %v1540 = vpop.trf.xlu0
        %v1541 = vpop.trf.xlu0
        %v1542 = vpop.trf.xlu0
        %v1543 = vpop.trf.xlu0
        %v1544 = vpop.trf.xlu0
        %v1545 = vpop.trf.xlu0
        %v1546 = vpop.trf.xlu0
        %v1547 = vpop.trf.xlu0
        %v1548 = vpop.trf.xlu0
        %v1549 = vpop.trf.xlu0
        %v1550 = vpop.trf.xlu0
        %v1551 = vpop.trf.xlu0
        %v1552 = vpop.trf.xlu0
        %v1553 = vpop.trf.xlu0
        %v1554 = vrot.slane %v1258, 1
        %v1555 = vrot.slane %v1259, 1
        %v1556 = vsel %vm611, %v1554, %v1555
        %v1557 = vsel %vm611, %v1555, %v612
        %v1558 = vrot.slane %v1260, 1
        %v1559 = vrot.slane %v1261, 1
        %v1560 = vsel %vm611, %v1558, %v1559
        %v1561 = vsel %vm611, %v1559, %v612
        %v1562 = vrot.slane %v1262, 1
        %v1563 = vrot.slane %v1263, 1
        %v1564 = vsel %vm611, %v1562, %v1563
        %v1565 = vsel %vm611, %v1563, %v612
        %v1566 = vrot.slane %v1264, 1
        %v1567 = vrot.slane %v1265, 1
        %v1568 = vsel %vm611, %v1566, %v1567
        %v1569 = vsel %vm611, %v1567, %v612
        %v1570 = vrot.slane %v1266, 1
        %v1571 = vrot.slane %v1267, 1
        %v1572 = vsel %vm611, %v1570, %v1571
        %v1573 = vsel %vm611, %v1571, %v612
        %v1574 = vrot.slane %v1268, 1
        %v1575 = vrot.slane %v1269, 1
        %v1576 = vsel %vm611, %v1574, %v1575
        %v1577 = vsel %vm611, %v1575, %v612
        %v1578 = vrot.slane %v1270, 1
        %v1579 = vrot.slane %v1271, 1
        %v1580 = vsel %vm611, %v1578, %v1579
        %v1581 = vsel %vm611, %v1579, %v612
        %v1582 = vrot.slane %v1272, 1
        %v1583 = vrot.slane %v1273, 1
        %v1584 = vsel %vm611, %v1582, %v1583
        %v1585 = vsel %vm611, %v1583, %v612
        %v1586 = vrot.slane %v1290, 1
        %v1587 = vrot.slane %v1291, 1
        %v1588 = vsel %vm611, %v1586, %v1587
        %v1589 = vsel %vm611, %v1587, %v612
        %v1590 = vrot.slane %v1292, 1
        %v1591 = vrot.slane %v1293, 1
        %v1592 = vsel %vm611, %v1590, %v1591
        %v1593 = vsel %vm611, %v1591, %v612
        %v1594 = vrot.slane %v1294, 1
        %v1595 = vrot.slane %v1295, 1
        %v1596 = vsel %vm611, %v1594, %v1595
        %v1597 = vsel %vm611, %v1595, %v612
        %v1598 = vrot.slane %v1296, 1
        %v1599 = vrot.slane %v1297, 1
        %v1600 = vsel %vm611, %v1598, %v1599
        %v1601 = vsel %vm611, %v1599, %v612
        %v1602 = vrot.slane %v1298, 1
        %v1603 = vrot.slane %v1299, 1
        %v1604 = vsel %vm611, %v1602, %v1603
        %v1605 = vsel %vm611, %v1603, %v612
        %v1606 = vrot.slane %v1300, 1
        %v1607 = vrot.slane %v1301, 1
        %v1608 = vsel %vm611, %v1606, %v1607
        %v1609 = vsel %vm611, %v1607, %v612
        %v1610 = vrot.slane %v1302, 1
        %v1611 = vrot.slane %v1303, 1
        %v1612 = vsel %vm611, %v1610, %v1611
        %v1613 = vsel %vm611, %v1611, %v612
        %1644 = vxpose.xlu0.b32.start [1/16] %v613, 128
        %1645 = vxpose.xlu0.b32.cont [2/16] %v613, 128
        %1646 = vxpose.xlu0.b32.cont [3/16] %v1556, 128
        %1647 = vxpose.xlu0.b32.cont [4/16] %v1557, 128
        %1648 = vxpose.xlu0.b32.cont [5/16] %v1560, 128
        %1649 = vxpose.xlu0.b32.cont [6/16] %v1561, 128
        %1650 = vxpose.xlu0.b32.cont [7/16] %v1564, 128
        %1651 = vxpose.xlu0.b32.cont [8/16] %v1565, 128
        %1652 = vxpose.xlu0.b32.cont [9/16] %v1568, 128
        %1653 = vxpose.xlu0.b32.cont [10/16] %v1569, 128
        %1654 = vxpose.xlu0.b32.cont [11/16] %v1572, 128
        %1655 = vxpose.xlu0.b32.cont [12/16] %v1573, 128
        %1656 = vxpose.xlu0.b32.cont [13/16] %v1576, 128
        %1657 = vxpose.xlu0.b32.cont [14/16] %v1577, 128
        %1658 = vxpose.xlu0.b32.cont [15/16] %v1580, 128
        %1659 = vxpose.xlu0.b32.end [16/16] %v1581, 128
        %v1660 = vpop.trf.xlu0
        %v1661 = vpop.trf.xlu0
        %v1662 = vpop.trf.xlu0
        %v1663 = vpop.trf.xlu0
        %v1664 = vpop.trf.xlu0
        %v1665 = vpop.trf.xlu0
        %v1666 = vpop.trf.xlu0
        %v1667 = vpop.trf.xlu0
        %v1668 = vpop.trf.xlu0
        %v1669 = vpop.trf.xlu0
        %v1670 = vpop.trf.xlu0
        %v1671 = vpop.trf.xlu0
        %v1672 = vpop.trf.xlu0
        %v1673 = vpop.trf.xlu0
        %v1674 = vpop.trf.xlu0
        %v1675 = vpop.trf.xlu0
        %1676 = vxpose.xlu0.b32.start [1/16] %v1584, 128
        %1677 = vxpose.xlu0.b32.cont [2/16] %v1585, 128
        %1678 = vxpose.xlu0.b32.cont [3/16] %v1588, 128
        %1679 = vxpose.xlu0.b32.cont [4/16] %v1589, 128
        %1680 = vxpose.xlu0.b32.cont [5/16] %v1592, 128
        %1681 = vxpose.xlu0.b32.cont [6/16] %v1593, 128
        %1682 = vxpose.xlu0.b32.cont [7/16] %v1596, 128
        %1683 = vxpose.xlu0.b32.cont [8/16] %v1597, 128
        %1684 = vxpose.xlu0.b32.cont [9/16] %v1600, 128
        %1685 = vxpose.xlu0.b32.cont [10/16] %v1601, 128
        %1686 = vxpose.xlu0.b32.cont [11/16] %v1604, 128
        %1687 = vxpose.xlu0.b32.cont [12/16] %v1605, 128
        %1688 = vxpose.xlu0.b32.cont [13/16] %v1608, 128
        %1689 = vxpose.xlu0.b32.cont [14/16] %v1609, 128
        %1690 = vxpose.xlu0.b32.cont [15/16] %v1612, 128
        %1691 = vxpose.xlu0.b32.end [16/16] %v1613, 128
        %v1692 = vpop.trf.xlu0
        %v1693 = vpop.trf.xlu0
        %v1694 = vpop.trf.xlu0
        %v1695 = vpop.trf.xlu0
        %v1696 = vpop.trf.xlu0
        %v1697 = vpop.trf.xlu0
        %v1698 = vpop.trf.xlu0
        %v1699 = vpop.trf.xlu0
        %v1700 = vpop.trf.xlu0
        %v1701 = vpop.trf.xlu0
        %v1702 = vpop.trf.xlu0
        %v1703 = vpop.trf.xlu0
        %v1704 = vpop.trf.xlu0
        %v1705 = vpop.trf.xlu0
        %v1706 = vpop.trf.xlu0
        %v1707 = vpop.trf.xlu0
        %v1710 = vrot.slane %v1304, 7
        %v1711 = vsel %vm389, %v390, %v1710
        %v1712 = vrot.slane %v1305, 7
        %v1713 = vsel %vm389, %v1710, %v1712
        %1716 = vxpose.xlu0.b32.start [1/16] %v1337, 128
        %1717 = vxpose.xlu0.b32.cont [2/16] %v1339, 128
        %1718 = vxpose.xlu0.b32.cont [3/16] %v1341, 128
        %1719 = vxpose.xlu0.b32.cont [4/16] %v1343, 128
        %1720 = vxpose.xlu0.b32.cont [5/16] %v1345, 128
        %1721 = vxpose.xlu0.b32.cont [6/16] %v1347, 128
        %1722 = vxpose.xlu0.b32.cont [7/16] %v1349, 128
        %1723 = vxpose.xlu0.b32.cont [8/16] %v1351, 128
        %1724 = vxpose.xlu0.b32.cont [9/16] %v1353, 128
        %1725 = vxpose.xlu0.b32.cont [10/16] %v1355, 128
        %1726 = vxpose.xlu0.b32.cont [11/16] %v1357, 128
        %1727 = vxpose.xlu0.b32.cont [12/16] %v1359, 128
        %1728 = vxpose.xlu0.b32.cont [13/16] %v1361, 128
        %1729 = vxpose.xlu0.b32.cont [14/16] %v1363, 128
        %1730 = vxpose.xlu0.b32.cont [15/16] %v1365, 128
        %1731 = vxpose.xlu0.b32.end [16/16] %v1367, 128
        %v1732 = vpop.trf.xlu0
        %v1733 = vpop.trf.xlu0
        %v1734 = vpop.trf.xlu0
        %v1735 = vpop.trf.xlu0
        %v1736 = vpop.trf.xlu0
        %v1737 = vpop.trf.xlu0
        %v1738 = vpop.trf.xlu0
        %v1739 = vpop.trf.xlu0
        %v1740 = vpop.trf.xlu0
        %v1741 = vpop.trf.xlu0
        %v1742 = vpop.trf.xlu0
        %v1743 = vpop.trf.xlu0
        %v1744 = vpop.trf.xlu0
        %v1745 = vpop.trf.xlu0
        %v1746 = vpop.trf.xlu0
        %v1747 = vpop.trf.xlu0
        %1748 = vxpose.xlu0.b32.start [1/16] %v1369, 128
        %1749 = vxpose.xlu0.b32.cont [2/16] %v1371, 128
        %1750 = vxpose.xlu0.b32.cont [3/16] %v1373, 128
        %1751 = vxpose.xlu0.b32.cont [4/16] %v1375, 128
        %1752 = vxpose.xlu0.b32.cont [5/16] %v1377, 128
        %1753 = vxpose.xlu0.b32.cont [6/16] %v1379, 128
        %1754 = vxpose.xlu0.b32.cont [7/16] %v1381, 128
        %1755 = vxpose.xlu0.b32.cont [8/16] %v1383, 128
        %1756 = vxpose.xlu0.b32.cont [9/16] %v1385, 128
        %1757 = vxpose.xlu0.b32.cont [10/16] %v1387, 128
        %1758 = vxpose.xlu0.b32.cont [11/16] %v1389, 128
        %1759 = vxpose.xlu0.b32.cont [12/16] %v1391, 128
        %1760 = vxpose.xlu0.b32.cont [13/16] %v1393, 128
        %1761 = vxpose.xlu0.b32.cont [14/16] %v1395, 128
        %1762 = vxpose.xlu0.b32.cont [15/16] %v1711, 128
        %1763 = vxpose.xlu0.b32.end [16/16] %v1713, 128
        %v1764 = vpop.trf.xlu0
        %v1765 = vpop.trf.xlu0
        %v1766 = vpop.trf.xlu0
        %v1767 = vpop.trf.xlu0
        %v1768 = vpop.trf.xlu0
        %v1769 = vpop.trf.xlu0
        %v1770 = vpop.trf.xlu0
        %v1771 = vpop.trf.xlu0
        %v1772 = vpop.trf.xlu0
        %v1773 = vpop.trf.xlu0
        %v1774 = vpop.trf.xlu0
        %v1775 = vpop.trf.xlu0
        %v1776 = vpop.trf.xlu0
        %v1777 = vpop.trf.xlu0
        %v1778 = vpop.trf.xlu0
        %v1779 = vpop.trf.xlu0
        %1780 = vxpose.xlu0.b32.start [1/16] %v1258, 128
        %1781 = vxpose.xlu0.b32.cont [2/16] %v1259, 128
        %1782 = vxpose.xlu0.b32.cont [3/16] %v1260, 128
        %1783 = vxpose.xlu0.b32.cont [4/16] %v1261, 128
        %1784 = vxpose.xlu0.b32.cont [5/16] %v1262, 128
        %1785 = vxpose.xlu0.b32.cont [6/16] %v1263, 128
        %1786 = vxpose.xlu0.b32.cont [7/16] %v1264, 128
        %1787 = vxpose.xlu0.b32.cont [8/16] %v1265, 128
        %1788 = vxpose.xlu0.b32.cont [9/16] %v1266, 128
        %1789 = vxpose.xlu0.b32.cont [10/16] %v1267, 128
        %1790 = vxpose.xlu0.b32.cont [11/16] %v1268, 128
        %1791 = vxpose.xlu0.b32.cont [12/16] %v1269, 128
        %1792 = vxpose.xlu0.b32.cont [13/16] %v1270, 128
        %1793 = vxpose.xlu0.b32.cont [14/16] %v1271, 128
        %1794 = vxpose.xlu0.b32.cont [15/16] %v1272, 128
        %1795 = vxpose.xlu0.b32.end [16/16] %v1273, 128
        %v1796 = vpop.trf.xlu0
        %v1797 = vpop.trf.xlu0
        %v1798 = vpop.trf.xlu0
        %v1799 = vpop.trf.xlu0
        %v1800 = vpop.trf.xlu0
        %v1801 = vpop.trf.xlu0
        %v1802 = vpop.trf.xlu0
        %v1803 = vpop.trf.xlu0
        %v1804 = vpop.trf.xlu0
        %v1805 = vpop.trf.xlu0
        %v1806 = vpop.trf.xlu0
        %v1807 = vpop.trf.xlu0
        %v1808 = vpop.trf.xlu0
        %v1809 = vpop.trf.xlu0
        %v1810 = vpop.trf.xlu0
        %v1811 = vpop.trf.xlu0
        %1812 = vxpose.xlu0.b32.start [1/16] %v1290, 128
        %1813 = vxpose.xlu0.b32.cont [2/16] %v1291, 128
        %1814 = vxpose.xlu0.b32.cont [3/16] %v1292, 128
        %1815 = vxpose.xlu0.b32.cont [4/16] %v1293, 128
        %1816 = vxpose.xlu0.b32.cont [5/16] %v1294, 128
        %1817 = vxpose.xlu0.b32.cont [6/16] %v1295, 128
        %1818 = vxpose.xlu0.b32.cont [7/16] %v1296, 128
        %1819 = vxpose.xlu0.b32.cont [8/16] %v1297, 128
        %1820 = vxpose.xlu0.b32.cont [9/16] %v1298, 128
        %1821 = vxpose.xlu0.b32.cont [10/16] %v1299, 128
        %1822 = vxpose.xlu0.b32.cont [11/16] %v1300, 128
        %1823 = vxpose.xlu0.b32.cont [12/16] %v1301, 128
        %1824 = vxpose.xlu0.b32.cont [13/16] %v1302, 128
        %1825 = vxpose.xlu0.b32.cont [14/16] %v1303, 128
        %1826 = vxpose.xlu0.b32.cont [15/16] %v1304, 128
        %1827 = vxpose.xlu0.b32.end [16/16] %v1305, 128
        %v1828 = vpop.trf.xlu0
        %v1829 = vpop.trf.xlu0
        %v1830 = vpop.trf.xlu0
        %v1831 = vpop.trf.xlu0
        %v1832 = vpop.trf.xlu0
        %v1833 = vpop.trf.xlu0
        %v1834 = vpop.trf.xlu0
        %v1835 = vpop.trf.xlu0
        %v1836 = vpop.trf.xlu0
        %v1837 = vpop.trf.xlu0
        %v1838 = vpop.trf.xlu0
        %v1839 = vpop.trf.xlu0
        %v1840 = vpop.trf.xlu0
        %v1841 = vpop.trf.xlu0
        %v1842 = vpop.trf.xlu0
        %v1843 = vpop.trf.xlu0
        %v1844 = vrot.slane %v1304, 1
        %v1845 = vrot.slane %v1305, 1
        %v1846 = vsel %vm611, %v1844, %v1845
        %v1847 = vsel %vm611, %v1845, %v612
        %1850 = vxpose.xlu0.b32.start [1/16] %v1556, 128
        %1851 = vxpose.xlu0.b32.cont [2/16] %v1557, 128
        %1852 = vxpose.xlu0.b32.cont [3/16] %v1560, 128
        %1853 = vxpose.xlu0.b32.cont [4/16] %v1561, 128
        %1854 = vxpose.xlu0.b32.cont [5/16] %v1564, 128
        %1855 = vxpose.xlu0.b32.cont [6/16] %v1565, 128
        %1856 = vxpose.xlu0.b32.cont [7/16] %v1568, 128
        %1857 = vxpose.xlu0.b32.cont [8/16] %v1569, 128
        %1858 = vxpose.xlu0.b32.cont [9/16] %v1572, 128
        %1859 = vxpose.xlu0.b32.cont [10/16] %v1573, 128
        %1860 = vxpose.xlu0.b32.cont [11/16] %v1576, 128
        %1861 = vxpose.xlu0.b32.cont [12/16] %v1577, 128
        %1862 = vxpose.xlu0.b32.cont [13/16] %v1580, 128
        %1863 = vxpose.xlu0.b32.cont [14/16] %v1581, 128
        %1864 = vxpose.xlu0.b32.cont [15/16] %v1584, 128
        %1865 = vxpose.xlu0.b32.end [16/16] %v1585, 128
        %v1866 = vpop.trf.xlu0
        %v1867 = vpop.trf.xlu0
        %v1868 = vpop.trf.xlu0
        %v1869 = vpop.trf.xlu0
        %v1870 = vpop.trf.xlu0
        %v1871 = vpop.trf.xlu0
        %v1872 = vpop.trf.xlu0
        %v1873 = vpop.trf.xlu0
        %v1874 = vpop.trf.xlu0
        %v1875 = vpop.trf.xlu0
        %v1876 = vpop.trf.xlu0
        %v1877 = vpop.trf.xlu0
        %v1878 = vpop.trf.xlu0
        %v1879 = vpop.trf.xlu0
        %v1880 = vpop.trf.xlu0
        %v1881 = vpop.trf.xlu0
        %1882 = vxpose.xlu0.b32.start [1/16] %v1588, 128
        %1883 = vxpose.xlu0.b32.cont [2/16] %v1589, 128
        %1884 = vxpose.xlu0.b32.cont [3/16] %v1592, 128
        %1885 = vxpose.xlu0.b32.cont [4/16] %v1593, 128
        %1886 = vxpose.xlu0.b32.cont [5/16] %v1596, 128
        %1887 = vxpose.xlu0.b32.cont [6/16] %v1597, 128
        %1888 = vxpose.xlu0.b32.cont [7/16] %v1600, 128
        %1889 = vxpose.xlu0.b32.cont [8/16] %v1601, 128
        %1890 = vxpose.xlu0.b32.cont [9/16] %v1604, 128
        %1891 = vxpose.xlu0.b32.cont [10/16] %v1605, 128
        %1892 = vxpose.xlu0.b32.cont [11/16] %v1608, 128
        %1893 = vxpose.xlu0.b32.cont [12/16] %v1609, 128
        %1894 = vxpose.xlu0.b32.cont [13/16] %v1612, 128
        %1895 = vxpose.xlu0.b32.cont [14/16] %v1613, 128
        %1896 = vxpose.xlu0.b32.cont [15/16] %v1846, 128
        %1897 = vxpose.xlu0.b32.end [16/16] %v1847, 128
        %v1898 = vpop.trf.xlu0
        %v1899 = vpop.trf.xlu0
        %v1900 = vpop.trf.xlu0
        %v1901 = vpop.trf.xlu0
        %v1902 = vpop.trf.xlu0
        %v1903 = vpop.trf.xlu0
        %v1904 = vpop.trf.xlu0
        %v1905 = vpop.trf.xlu0
        %v1906 = vpop.trf.xlu0
        %v1907 = vpop.trf.xlu0
        %v1908 = vpop.trf.xlu0
        %v1909 = vpop.trf.xlu0
        %v1910 = vpop.trf.xlu0
        %v1911 = vpop.trf.xlu0
        %v1912 = vpop.trf.xlu0
        %v1913 = vpop.trf.xlu0
        %1914 = vxpose.xlu0.b32.start [1/16] %v1341, 128
        %1915 = vxpose.xlu0.b32.cont [2/16] %v1343, 128
        %1916 = vxpose.xlu0.b32.cont [3/16] %v1345, 128
        %1917 = vxpose.xlu0.b32.cont [4/16] %v1347, 128
        %1918 = vxpose.xlu0.b32.cont [5/16] %v1349, 128
        %1919 = vxpose.xlu0.b32.cont [6/16] %v1351, 128
        %1920 = vxpose.xlu0.b32.cont [7/16] %v1353, 128
        %1921 = vxpose.xlu0.b32.cont [8/16] %v1355, 128
        %1922 = vxpose.xlu0.b32.cont [9/16] %v1357, 128
        %1923 = vxpose.xlu0.b32.cont [10/16] %v1359, 128
        %1924 = vxpose.xlu0.b32.cont [11/16] %v1361, 128
        %1925 = vxpose.xlu0.b32.cont [12/16] %v1363, 128
        %1926 = vxpose.xlu0.b32.cont [13/16] %v1365, 128
        %1927 = vxpose.xlu0.b32.cont [14/16] %v1367, 128
        %1928 = vxpose.xlu0.b32.cont [15/16] %v1369, 128
        %1929 = vxpose.xlu0.b32.end [16/16] %v1371, 128
        %v1930 = vpop.trf.xlu0
        %v1931 = vpop.trf.xlu0
        %v1932 = vpop.trf.xlu0
        %v1933 = vpop.trf.xlu0
        %v1934 = vpop.trf.xlu0
        %v1935 = vpop.trf.xlu0
        %v1936 = vpop.trf.xlu0
        %v1937 = vpop.trf.xlu0
        %v1938 = vpop.trf.xlu0
        %v1939 = vpop.trf.xlu0
        %v1940 = vpop.trf.xlu0
        %v1941 = vpop.trf.xlu0
        %v1942 = vpop.trf.xlu0
        %v1943 = vpop.trf.xlu0
        %v1944 = vpop.trf.xlu0
        %v1945 = vpop.trf.xlu0
        %1946 = vxpose.xlu0.b32.start [1/16] %v1373, 128
        %1947 = vxpose.xlu0.b32.cont [2/16] %v1375, 128
        %1948 = vxpose.xlu0.b32.cont [3/16] %v1377, 128
        %1949 = vxpose.xlu0.b32.cont [4/16] %v1379, 128
        %1950 = vxpose.xlu0.b32.cont [5/16] %v1381, 128
        %1951 = vxpose.xlu0.b32.cont [6/16] %v1383, 128
        %1952 = vxpose.xlu0.b32.cont [7/16] %v1385, 128
        %1953 = vxpose.xlu0.b32.cont [8/16] %v1387, 128
        %1954 = vxpose.xlu0.b32.cont [9/16] %v1389, 128
        %1955 = vxpose.xlu0.b32.cont [10/16] %v1391, 128
        %1956 = vxpose.xlu0.b32.cont [11/16] %v1393, 128
        %1957 = vxpose.xlu0.b32.cont [12/16] %v1395, 128
        %1958 = vxpose.xlu0.b32.cont [13/16] %v1711, 128
        %1959 = vxpose.xlu0.b32.cont [14/16] %v1713, 128
        %1960 = vxpose.xlu0.b32.cont [15/16] %v391, 128
        %1961 = vxpose.xlu0.b32.end [16/16] %v391, 128
        %v1962 = vpop.trf.xlu0
        %v1963 = vpop.trf.xlu0
        %v1964 = vpop.trf.xlu0
        %v1965 = vpop.trf.xlu0
        %v1966 = vpop.trf.xlu0
        %v1967 = vpop.trf.xlu0
        %v1968 = vpop.trf.xlu0
        %v1969 = vpop.trf.xlu0
        %v1970 = vpop.trf.xlu0
        %v1971 = vpop.trf.xlu0
        %v1972 = vpop.trf.xlu0
        %v1973 = vpop.trf.xlu0
        %v1974 = vpop.trf.xlu0
        %v1975 = vpop.trf.xlu0
        %v1976 = vpop.trf.xlu0
        %v1977 = vpop.trf.xlu0
        %1978 = vxpose.xlu0.b32.start [1/16] %v1260, 128
        %1979 = vxpose.xlu0.b32.cont [2/16] %v1261, 128
        %1980 = vxpose.xlu0.b32.cont [3/16] %v1262, 128
        %1981 = vxpose.xlu0.b32.cont [4/16] %v1263, 128
        %1982 = vxpose.xlu0.b32.cont [5/16] %v1264, 128
        %1983 = vxpose.xlu0.b32.cont [6/16] %v1265, 128
        %1984 = vxpose.xlu0.b32.cont [7/16] %v1266, 128
        %1985 = vxpose.xlu0.b32.cont [8/16] %v1267, 128
        %1986 = vxpose.xlu0.b32.cont [9/16] %v1268, 128
        %1987 = vxpose.xlu0.b32.cont [10/16] %v1269, 128
        %1988 = vxpose.xlu0.b32.cont [11/16] %v1270, 128
        %1989 = vxpose.xlu0.b32.cont [12/16] %v1271, 128
        %1990 = vxpose.xlu0.b32.cont [13/16] %v1272, 128
        %1991 = vxpose.xlu0.b32.cont [14/16] %v1273, 128
        %1992 = vxpose.xlu0.b32.cont [15/16] %v1290, 128
        %1993 = vxpose.xlu0.b32.end [16/16] %v1291, 128
        %v1994 = vpop.trf.xlu0
        %v1995 = vpop.trf.xlu0
        %v1996 = vpop.trf.xlu0
        %v1997 = vpop.trf.xlu0
        %v1998 = vpop.trf.xlu0
        %v1999 = vpop.trf.xlu0
        %v2000 = vpop.trf.xlu0
        %v2001 = vpop.trf.xlu0
        %v2002 = vpop.trf.xlu0
        %v2003 = vpop.trf.xlu0
        %v2004 = vpop.trf.xlu0
        %v2005 = vpop.trf.xlu0
        %v2006 = vpop.trf.xlu0
        %v2007 = vpop.trf.xlu0
        %v2008 = vpop.trf.xlu0
        %v2009 = vpop.trf.xlu0
        %2010 = vxpose.xlu0.b32.start [1/16] %v1292, 128
        %2011 = vxpose.xlu0.b32.cont [2/16] %v1293, 128
        %2012 = vxpose.xlu0.b32.cont [3/16] %v1294, 128
        %2013 = vxpose.xlu0.b32.cont [4/16] %v1295, 128
        %2014 = vxpose.xlu0.b32.cont [5/16] %v1296, 128
        %2015 = vxpose.xlu0.b32.cont [6/16] %v1297, 128
        %2016 = vxpose.xlu0.b32.cont [7/16] %v1298, 128
        %2017 = vxpose.xlu0.b32.cont [8/16] %v1299, 128
        %2018 = vxpose.xlu0.b32.cont [9/16] %v1300, 128
        %2019 = vxpose.xlu0.b32.cont [10/16] %v1301, 128
        %2020 = vxpose.xlu0.b32.cont [11/16] %v1302, 128
        %2021 = vxpose.xlu0.b32.cont [12/16] %v1303, 128
        %2022 = vxpose.xlu0.b32.cont [13/16] %v1304, 128
        %2023 = vxpose.xlu0.b32.cont [14/16] %v1305, 128
        %2024 = vxpose.xlu0.b32.cont [15/16] 0.0, 128
        %2025 = vxpose.xlu0.b32.end [16/16] 0.0, 128
        %v2026 = vpop.trf.xlu0
        %v2027 = vpop.trf.xlu0
        %v2028 = vpop.trf.xlu0
        %v2029 = vpop.trf.xlu0
        %v2030 = vpop.trf.xlu0
        %v2031 = vpop.trf.xlu0
        %v2032 = vpop.trf.xlu0
        %v2033 = vpop.trf.xlu0
        %v2034 = vpop.trf.xlu0
        %v2035 = vpop.trf.xlu0
        %v2036 = vpop.trf.xlu0
        %v2037 = vpop.trf.xlu0
        %v2038 = vpop.trf.xlu0
        %v2039 = vpop.trf.xlu0
        %v2040 = vpop.trf.xlu0
        %v2041 = vpop.trf.xlu0
        %2042 = vxpose.xlu0.b32.start [1/16] %v1560, 128
        %2043 = vxpose.xlu0.b32.cont [2/16] %v1561, 128
        %2044 = vxpose.xlu0.b32.cont [3/16] %v1564, 128
        %2045 = vxpose.xlu0.b32.cont [4/16] %v1565, 128
        %2046 = vxpose.xlu0.b32.cont [5/16] %v1568, 128
        %2047 = vxpose.xlu0.b32.cont [6/16] %v1569, 128
        %2048 = vxpose.xlu0.b32.cont [7/16] %v1572, 128
        %2049 = vxpose.xlu0.b32.cont [8/16] %v1573, 128
        %2050 = vxpose.xlu0.b32.cont [9/16] %v1576, 128
        %2051 = vxpose.xlu0.b32.cont [10/16] %v1577, 128
        %2052 = vxpose.xlu0.b32.cont [11/16] %v1580, 128
        %2053 = vxpose.xlu0.b32.cont [12/16] %v1581, 128
        %2054 = vxpose.xlu0.b32.cont [13/16] %v1584, 128
        %2055 = vxpose.xlu0.b32.cont [14/16] %v1585, 128
        %2056 = vxpose.xlu0.b32.cont [15/16] %v1588, 128
        %2057 = vxpose.xlu0.b32.end [16/16] %v1589, 128
        %v2058 = vpop.trf.xlu0
        %v2059 = vpop.trf.xlu0
        %v2060 = vpop.trf.xlu0
        %v2061 = vpop.trf.xlu0
        %v2062 = vpop.trf.xlu0
        %v2063 = vpop.trf.xlu0
        %v2064 = vpop.trf.xlu0
        %v2065 = vpop.trf.xlu0
        %v2066 = vpop.trf.xlu0
        %v2067 = vpop.trf.xlu0
        %v2068 = vpop.trf.xlu0
        %v2069 = vpop.trf.xlu0
        %v2070 = vpop.trf.xlu0
        %v2071 = vpop.trf.xlu0
        %v2072 = vpop.trf.xlu0
        %v2073 = vpop.trf.xlu0
        %2074 = vxpose.xlu0.b32.start [1/16] %v1592, 128
        %2075 = vxpose.xlu0.b32.cont [2/16] %v1593, 128
        %2076 = vxpose.xlu0.b32.cont [3/16] %v1596, 128
        %2077 = vxpose.xlu0.b32.cont [4/16] %v1597, 128
        %2078 = vxpose.xlu0.b32.cont [5/16] %v1600, 128
        %2079 = vxpose.xlu0.b32.cont [6/16] %v1601, 128
        %2080 = vxpose.xlu0.b32.cont [7/16] %v1604, 128
        %2081 = vxpose.xlu0.b32.cont [8/16] %v1605, 128
        %2082 = vxpose.xlu0.b32.cont [9/16] %v1608, 128
        %2083 = vxpose.xlu0.b32.cont [10/16] %v1609, 128
        %2084 = vxpose.xlu0.b32.cont [11/16] %v1612, 128
        %2085 = vxpose.xlu0.b32.cont [12/16] %v1613, 128
        %2086 = vxpose.xlu0.b32.cont [13/16] %v1846, 128
        %2087 = vxpose.xlu0.b32.cont [14/16] %v1847, 128
        %2088 = vxpose.xlu0.b32.cont [15/16] %v613, 128
        %2089 = vxpose.xlu0.b32.end [16/16] %v613, 128
        %v2090 = vpop.trf.xlu0
        %v2091 = vpop.trf.xlu0
        %v2092 = vpop.trf.xlu0
        %v2093 = vpop.trf.xlu0
        %v2094 = vpop.trf.xlu0
        %v2095 = vpop.trf.xlu0
        %v2096 = vpop.trf.xlu0
        %v2097 = vpop.trf.xlu0
        %v2098 = vpop.trf.xlu0
        %v2099 = vpop.trf.xlu0
        %v2100 = vpop.trf.xlu0
        %v2101 = vpop.trf.xlu0
        %v2102 = vpop.trf.xlu0
        %v2103 = vpop.trf.xlu0
        %v2104 = vpop.trf.xlu0
        %v2105 = vpop.trf.xlu0
        %v2106 = vld [vmem:[#allocation8] sm:$0xf]
        %v2107 = vpack.c.bf16 %v1506, %v1442
        %v2108 = vpack.c.bf16 %v1538, %v1474
        %v2109 = vpack.c.bf16 %v1732, %v1660
        %v2110 = vpack.c.bf16 %v1764, %v1692
        %v2111 = vpack.c.bf16 %v1866, %v1796
        %v2112 = vpack.c.bf16 %v1898, %v1828
        %v2113 = vpack.c.bf16 %v1994, %v1930
        %v2114 = vpack.c.bf16 %v2026, %v1962
        %v2115 = vpack.c.bf16 %v2058, %v2058
        %v2116 = vpack.c.bf16 %v2090, %v2090
        %v2117 = vld [vmem:[#allocation10] sm:$0xff]
        %2119 = vset.pattern.permute.xlu0 0
        %2120 = vperm.xlu0 %2119, %v2117
        %v2121 = vpop.permute.xlu0 %2120
        %v2124 = vsel %vm1184, %v2106, 0
        %v2127 = vsel %vm1188, %v2115, 0
        %v2130 = vsel %vm1188, %v2116, 0
        %2132 = vmatprep.subr.bf16.mxu0 %v2108
        %2133 = vmatpush1.bf16.msra.mxu0 %v2107
        %2134 = vmatprep.subr.bf16.mxu0 %v2110
        %2135 = vmatpush1.bf16.msra.mxu0 %v2109
        %2136 = vmatprep.subr.bf16.mxu0 %v2112
        %2137 = vmatpush1.bf16.msra.mxu0 %v2111
        %2138 = vmatprep.subr.bf16.mxu0 %v2114
        %2139 = vmatpush1.bf16.msra.mxu0 %v2113
        %2140 = vmatprep.subr.bf16.mxu0 %v2130
        %2141 = vmatpush1.bf16.msra.mxu0 %v2127
        %2142 = vmatprep.subr.bf16.mxu0 0
        %2143 = vmatpush1.bf16.msra.mxu0 0
        %2144 = vmatprep.subr.bf16.mxu0 0
        %2145 = vmatpush1.bf16.msra.mxu0 0
        %2146 = vmatprep.subr.bf16.mxu0 0
        %2147 = vmatpush1.bf16.msra.mxu0 0
        %2148 = vmatprep.subr.bf16.mxu0 0
        %2149 = vmatpush1.bf16.msra.mxu0 0
        %2150 = vmatprep.subr.bf16.mxu0 0
        %2151 = vmatpush1.bf16.msra.mxu0 0
        %2152 = vmatprep.subr.bf16.mxu0 0
        %2153 = vmatpush1.bf16.msra.mxu0 0
        %2154 = vmatprep.subr.bf16.mxu0 0
        %2155 = vmatpush1.bf16.msra.mxu0 0
        %2156 = vmatprep.subr.bf16.mxu0 0
        %2157 = vmatpush1.bf16.msra.mxu0 0
        %2158 = vmatprep.subr.bf16.mxu0 0
        %2159 = vmatpush1.bf16.msra.mxu0 0
        %2160 = vmatprep.subr.bf16.mxu0 0
        %2161 = vmatpush1.bf16.msra.mxu0 0
        %2162 = vmatprep.subr.bf16.mxu0 0
        %2163 = vmatpush1.bf16.msra.mxu0 0
        %2164 = vmatprep.mubr.bf16.mxu0 0
        %2165 = vmatmul.mubr.bf16.gmra.mrb[0].mxu0 %v2124
        %v2166 = vpop.f32.mrb[0].mxu0
        %v2167 = vadd.f32 %v2121, %v2166
        %v2168 = vpop.f32.mrb[0].mxu0
        %v2169 = vadd.f32 %v2121, %v2168
        %v2170 = vpop.f32.mrb[0].mxu0
        %v2171 = vpop.f32.mrb[0].mxu0
        %2172 = vdwg.mxu0
        %vm2173 = vcmp.gt.f32.partialorder %v2167, 0.0
        %vm2174 = vcmp.gt.f32.partialorder %v2169, 0.0
        %v2175 = vmul.f32 %v2167, 0.2
        %v2176 = vmul.f32 %v2169, 0.2
        %v2177 = vsel %vm2173, %v2167, %v2175
        %v2178 = vsel %vm2174, %v2169, %v2176
        %2179 = vxpose.xlu0.b32.start [1/16] %v2177, 128
        %2180 = vxpose.xlu0.b32.cont [2/16] 0.0, 128
        %2181 = vxpose.xlu0.b32.cont [3/16] 0.0, 128
        %2182 = vxpose.xlu0.b32.cont [4/16] 0.0, 128
        %2183 = vxpose.xlu0.b32.cont [5/16] 0.0, 128
        %2184 = vxpose.xlu0.b32.cont [6/16] 0.0, 128
        %2185 = vxpose.xlu0.b32.cont [7/16] 0.0, 128
        %2186 = vxpose.xlu0.b32.cont [8/16] 0.0, 128
        %2187 = vxpose.xlu0.b32.cont [9/16] 0.0, 128
        %2188 = vxpose.xlu0.b32.cont [10/16] 0.0, 128
        %2189 = vxpose.xlu0.b32.cont [11/16] 0.0, 128
        %2190 = vxpose.xlu0.b32.cont [12/16] 0.0, 128
        %2191 = vxpose.xlu0.b32.cont [13/16] 0.0, 128
        %2192 = vxpose.xlu0.b32.cont [14/16] 0.0, 128
        %2193 = vxpose.xlu0.b32.cont [15/16] 0.0, 128
        %2194 = vxpose.xlu0.b32.end [16/16] 0.0, 128
        %v2195 = vpop.trf.xlu0
        %v2196 = vpop.trf.xlu0
        %v2197 = vpop.trf.xlu0
        %v2198 = vpop.trf.xlu0
        %v2199 = vpop.trf.xlu0
        %v2200 = vpop.trf.xlu0
        %v2201 = vpop.trf.xlu0
        %v2202 = vpop.trf.xlu0
        %v2203 = vpop.trf.xlu0
        %v2204 = vpop.trf.xlu0
        %v2205 = vpop.trf.xlu0
        %v2206 = vpop.trf.xlu0
        %v2207 = vpop.trf.xlu0
        %v2208 = vpop.trf.xlu0
        %v2209 = vpop.trf.xlu0
        %v2210 = vpop.trf.xlu0
        %2211 = vxpose.xlu0.b32.start [1/16] %v2178, 128
        %2212 = vxpose.xlu0.b32.cont [2/16] 0.0, 128
        %2213 = vxpose.xlu0.b32.cont [3/16] 0.0, 128
        %2214 = vxpose.xlu0.b32.cont [4/16] 0.0, 128
        %2215 = vxpose.xlu0.b32.cont [5/16] 0.0, 128
        %2216 = vxpose.xlu0.b32.cont [6/16] 0.0, 128
        %2217 = vxpose.xlu0.b32.cont [7/16] 0.0, 128
        %2218 = vxpose.xlu0.b32.cont [8/16] 0.0, 128
        %2219 = vxpose.xlu0.b32.cont [9/16] 0.0, 128
        %2220 = vxpose.xlu0.b32.cont [10/16] 0.0, 128
        %2221 = vxpose.xlu0.b32.cont [11/16] 0.0, 128
        %2222 = vxpose.xlu0.b32.cont [12/16] 0.0, 128
        %2223 = vxpose.xlu0.b32.cont [13/16] 0.0, 128
        %2224 = vxpose.xlu0.b32.cont [14/16] 0.0, 128
        %2225 = vxpose.xlu0.b32.cont [15/16] 0.0, 128
        %2226 = vxpose.xlu0.b32.end [16/16] 0.0, 128
        %v2227 = vpop.trf.xlu0
        %v2228 = vpop.trf.xlu0
        %v2229 = vpop.trf.xlu0
        %v2230 = vpop.trf.xlu0
        %v2231 = vpop.trf.xlu0
        %v2232 = vpop.trf.xlu0
        %v2233 = vpop.trf.xlu0
        %v2234 = vpop.trf.xlu0
        %v2235 = vpop.trf.xlu0
        %v2236 = vpop.trf.xlu0
        %v2237 = vpop.trf.xlu0
        %v2238 = vpop.trf.xlu0
        %v2239 = vpop.trf.xlu0
        %v2240 = vpop.trf.xlu0
        %v2241 = vpop.trf.xlu0
        %v2242 = vpop.trf.xlu0
        %v2275 = vcombine.high %v2195, %v2195
        %v2277 = vunpack.c.l.s4 1983009808
        %v2278 = vunpack.c.0.s8 %v2277
        %v2279 = vlaneseq
        %v2280 = vshrl.u32 %v2279, 7
        %v2281 = vsub.s32 %v2278, %v2280
        %v2282 = vrot.slane %v2195, %v2281
        %v2284 = vunpack.c.l.s4 1983009808
        %v2285 = vunpack.c.0.s8 %v2284
        %v2286 = vlaneseq
        %v2287 = vshrl.u32 %v2286, 7
        %v2288 = vsub.s32 %v2285, %v2287
        %v2289 = vrot.slane %v2275, %v2288
        %v2290 = vcombine.high %v2282, %v2282
        %v2291 = vcombine.high %v2289, %v2289
        %v2292 = vcombine.high %v2196, %v2196
        %v2294 = vunpack.c.l.s4 1983009808
        %v2295 = vunpack.c.0.s8 %v2294
        %v2296 = vlaneseq
        %v2297 = vshrl.u32 %v2296, 7
        %v2298 = vsub.s32 %v2295, %v2297
        %v2299 = vrot.slane %v2196, %v2298
        %v2301 = vunpack.c.l.s4 1983009808
        %v2302 = vunpack.c.0.s8 %v2301
        %v2303 = vlaneseq
        %v2304 = vshrl.u32 %v2303, 7
        %v2305 = vsub.s32 %v2302, %v2304
        %v2306 = vrot.slane %v2292, %v2305
        %v2307 = vcombine.high %v2299, %v2299
        %v2308 = vcombine.high %v2306, %v2306
        %v2309 = vcombine.high %v2197, %v2197
        %v2311 = vunpack.c.l.s4 1983009808
        %v2312 = vunpack.c.0.s8 %v2311
        %v2313 = vlaneseq
        %v2314 = vshrl.u32 %v2313, 7
        %v2315 = vsub.s32 %v2312, %v2314
        %v2316 = vrot.slane %v2197, %v2315
        %v2318 = vunpack.c.l.s4 1983009808
        %v2319 = vunpack.c.0.s8 %v2318
        %v2320 = vlaneseq
        %v2321 = vshrl.u32 %v2320, 7
        %v2322 = vsub.s32 %v2319, %v2321
        %v2323 = vrot.slane %v2309, %v2322
        %v2324 = vcombine.high %v2316, %v2316
        %v2325 = vcombine.high %v2323, %v2323
        %v2326 = vcombine.high %v2198, %v2198
        %v2328 = vunpack.c.l.s4 1983009808
        %v2329 = vunpack.c.0.s8 %v2328
        %v2330 = vlaneseq
        %v2331 = vshrl.u32 %v2330, 7
        %v2332 = vsub.s32 %v2329, %v2331
        %v2333 = vrot.slane %v2198, %v2332
        %v2335 = vunpack.c.l.s4 1983009808
        %v2336 = vunpack.c.0.s8 %v2335
        %v2337 = vlaneseq
        %v2338 = vshrl.u32 %v2337, 7
        %v2339 = vsub.s32 %v2336, %v2338
        %v2340 = vrot.slane %v2326, %v2339
        %v2341 = vcombine.high %v2333, %v2333
        %v2342 = vcombine.high %v2340, %v2340
        %v2343 = vcombine.high %v2199, %v2199
        %v2345 = vunpack.c.l.s4 1983009808
        %v2346 = vunpack.c.0.s8 %v2345
        %v2347 = vlaneseq
        %v2348 = vshrl.u32 %v2347, 7
        %v2349 = vsub.s32 %v2346, %v2348
        %v2350 = vrot.slane %v2199, %v2349
        %v2352 = vunpack.c.l.s4 1983009808
        %v2353 = vunpack.c.0.s8 %v2352
        %v2354 = vlaneseq
        %v2355 = vshrl.u32 %v2354, 7
        %v2356 = vsub.s32 %v2353, %v2355
        %v2357 = vrot.slane %v2343, %v2356
        %v2358 = vcombine.high %v2350, %v2350
        %v2359 = vcombine.high %v2357, %v2357
        %v2360 = vcombine.high %v2200, %v2200
        %v2362 = vunpack.c.l.s4 1983009808
        %v2363 = vunpack.c.0.s8 %v2362
        %v2364 = vlaneseq
        %v2365 = vshrl.u32 %v2364, 7
        %v2366 = vsub.s32 %v2363, %v2365
        %v2367 = vrot.slane %v2200, %v2366
        %v2369 = vunpack.c.l.s4 1983009808
        %v2370 = vunpack.c.0.s8 %v2369
        %v2371 = vlaneseq
        %v2372 = vshrl.u32 %v2371, 7
        %v2373 = vsub.s32 %v2370, %v2372
        %v2374 = vrot.slane %v2360, %v2373
        %v2375 = vcombine.high %v2367, %v2367
        %v2376 = vcombine.high %v2374, %v2374
        %v2377 = vcombine.high %v2201, %v2201
        %v2379 = vunpack.c.l.s4 1983009808
        %v2380 = vunpack.c.0.s8 %v2379
        %v2381 = vlaneseq
        %v2382 = vshrl.u32 %v2381, 7
        %v2383 = vsub.s32 %v2380, %v2382
        %v2384 = vrot.slane %v2201, %v2383
        %v2386 = vunpack.c.l.s4 1983009808
        %v2387 = vunpack.c.0.s8 %v2386
        %v2388 = vlaneseq
        %v2389 = vshrl.u32 %v2388, 7
        %v2390 = vsub.s32 %v2387, %v2389
        %v2391 = vrot.slane %v2377, %v2390
        %v2392 = vcombine.high %v2384, %v2384
        %v2393 = vcombine.high %v2391, %v2391
        %v2394 = vcombine.high %v2202, %v2202
        %v2396 = vunpack.c.l.s4 1983009808
        %v2397 = vunpack.c.0.s8 %v2396
        %v2398 = vlaneseq
        %v2399 = vshrl.u32 %v2398, 7
        %v2400 = vsub.s32 %v2397, %v2399
        %v2401 = vrot.slane %v2202, %v2400
        %v2403 = vunpack.c.l.s4 1983009808
        %v2404 = vunpack.c.0.s8 %v2403
        %v2405 = vlaneseq
        %v2406 = vshrl.u32 %v2405, 7
        %v2407 = vsub.s32 %v2404, %v2406
        %v2408 = vrot.slane %v2394, %v2407
        %v2409 = vcombine.high %v2401, %v2401
        %v2410 = vcombine.high %v2408, %v2408
        %v2411 = vcombine.high %v2203, %v2203
        %v2413 = vunpack.c.l.s4 1983009808
        %v2414 = vunpack.c.0.s8 %v2413
        %v2415 = vlaneseq
        %v2416 = vshrl.u32 %v2415, 7
        %v2417 = vsub.s32 %v2414, %v2416
        %v2418 = vrot.slane %v2203, %v2417
        %v2420 = vunpack.c.l.s4 1983009808
        %v2421 = vunpack.c.0.s8 %v2420
        %v2422 = vlaneseq
        %v2423 = vshrl.u32 %v2422, 7
        %v2424 = vsub.s32 %v2421, %v2423
        %v2425 = vrot.slane %v2411, %v2424
        %v2426 = vcombine.high %v2418, %v2418
        %v2427 = vcombine.high %v2425, %v2425
        %v2428 = vcombine.high %v2204, %v2204
        %v2430 = vunpack.c.l.s4 1983009808
        %v2431 = vunpack.c.0.s8 %v2430
        %v2432 = vlaneseq
        %v2433 = vshrl.u32 %v2432, 7
        %v2434 = vsub.s32 %v2431, %v2433
        %v2435 = vrot.slane %v2204, %v2434
        %v2437 = vunpack.c.l.s4 1983009808
        %v2438 = vunpack.c.0.s8 %v2437
        %v2439 = vlaneseq
        %v2440 = vshrl.u32 %v2439, 7
        %v2441 = vsub.s32 %v2438, %v2440
        %v2442 = vrot.slane %v2428, %v2441
        %v2443 = vcombine.high %v2435, %v2435
        %v2444 = vcombine.high %v2442, %v2442
        %v2445 = vcombine.high %v2205, %v2205
        %v2447 = vunpack.c.l.s4 1983009808
        %v2448 = vunpack.c.0.s8 %v2447
        %v2449 = vlaneseq
        %v2450 = vshrl.u32 %v2449, 7
        %v2451 = vsub.s32 %v2448, %v2450
        %v2452 = vrot.slane %v2205, %v2451
        %v2454 = vunpack.c.l.s4 1983009808
        %v2455 = vunpack.c.0.s8 %v2454
        %v2456 = vlaneseq
        %v2457 = vshrl.u32 %v2456, 7
        %v2458 = vsub.s32 %v2455, %v2457
        %v2459 = vrot.slane %v2445, %v2458
        %v2460 = vcombine.high %v2452, %v2452
        %v2461 = vcombine.high %v2459, %v2459
        %v2462 = vcombine.high %v2206, %v2206
        %v2464 = vunpack.c.l.s4 1983009808
        %v2465 = vunpack.c.0.s8 %v2464
        %v2466 = vlaneseq
        %v2467 = vshrl.u32 %v2466, 7
        %v2468 = vsub.s32 %v2465, %v2467
        %v2469 = vrot.slane %v2206, %v2468
        %v2471 = vunpack.c.l.s4 1983009808
        %v2472 = vunpack.c.0.s8 %v2471
        %v2473 = vlaneseq
        %v2474 = vshrl.u32 %v2473, 7
        %v2475 = vsub.s32 %v2472, %v2474
        %v2476 = vrot.slane %v2462, %v2475
        %v2477 = vcombine.high %v2469, %v2469
        %v2478 = vcombine.high %v2476, %v2476
        %v2479 = vcombine.high %v2207, %v2207
        %v2481 = vunpack.c.l.s4 1983009808
        %v2482 = vunpack.c.0.s8 %v2481
        %v2483 = vlaneseq
        %v2484 = vshrl.u32 %v2483, 7
        %v2485 = vsub.s32 %v2482, %v2484
        %v2486 = vrot.slane %v2207, %v2485
        %v2488 = vunpack.c.l.s4 1983009808
        %v2489 = vunpack.c.0.s8 %v2488
        %v2490 = vlaneseq
        %v2491 = vshrl.u32 %v2490, 7
        %v2492 = vsub.s32 %v2489, %v2491
        %v2493 = vrot.slane %v2479, %v2492
        %v2494 = vcombine.high %v2486, %v2486
        %v2495 = vcombine.high %v2493, %v2493
        %v2496 = vcombine.high %v2208, %v2208
        %v2498 = vunpack.c.l.s4 1983009808
        %v2499 = vunpack.c.0.s8 %v2498
        %v2500 = vlaneseq
        %v2501 = vshrl.u32 %v2500, 7
        %v2502 = vsub.s32 %v2499, %v2501
        %v2503 = vrot.slane %v2208, %v2502
        %v2505 = vunpack.c.l.s4 1983009808
        %v2506 = vunpack.c.0.s8 %v2505
        %v2507 = vlaneseq
        %v2508 = vshrl.u32 %v2507, 7
        %v2509 = vsub.s32 %v2506, %v2508
        %v2510 = vrot.slane %v2496, %v2509
        %v2511 = vcombine.high %v2503, %v2503
        %v2512 = vcombine.high %v2510, %v2510
        %v2513 = vcombine.high %v2209, %v2209
        %v2515 = vunpack.c.l.s4 1983009808
        %v2516 = vunpack.c.0.s8 %v2515
        %v2517 = vlaneseq
        %v2518 = vshrl.u32 %v2517, 7
        %v2519 = vsub.s32 %v2516, %v2518
        %v2520 = vrot.slane %v2209, %v2519
        %v2522 = vunpack.c.l.s4 1983009808
        %v2523 = vunpack.c.0.s8 %v2522
        %v2524 = vlaneseq
        %v2525 = vshrl.u32 %v2524, 7
        %v2526 = vsub.s32 %v2523, %v2525
        %v2527 = vrot.slane %v2513, %v2526
        %v2528 = vcombine.high %v2520, %v2520
        %v2529 = vcombine.high %v2527, %v2527
        %v2530 = vcombine.high %v2210, %v2210
        %v2532 = vunpack.c.l.s4 1983009808
        %v2533 = vunpack.c.0.s8 %v2532
        %v2534 = vlaneseq
        %v2535 = vshrl.u32 %v2534, 7
        %v2536 = vsub.s32 %v2533, %v2535
        %v2537 = vrot.slane %v2210, %v2536
        %v2539 = vunpack.c.l.s4 1983009808
        %v2540 = vunpack.c.0.s8 %v2539
        %v2541 = vlaneseq
        %v2542 = vshrl.u32 %v2541, 7
        %v2543 = vsub.s32 %v2540, %v2542
        %v2544 = vrot.slane %v2530, %v2543
        %v2545 = vcombine.high %v2537, %v2537
        %v2546 = vcombine.high %v2544, %v2544
        %v2547 = vcombine.high %v2227, %v2227
        %v2549 = vunpack.c.l.s4 1983009808
        %v2550 = vunpack.c.0.s8 %v2549
        %v2551 = vlaneseq
        %v2552 = vshrl.u32 %v2551, 7
        %v2553 = vsub.s32 %v2550, %v2552
        %v2554 = vrot.slane %v2227, %v2553
        %v2556 = vunpack.c.l.s4 1983009808
        %v2557 = vunpack.c.0.s8 %v2556
        %v2558 = vlaneseq
        %v2559 = vshrl.u32 %v2558, 7
        %v2560 = vsub.s32 %v2557, %v2559
        %v2561 = vrot.slane %v2547, %v2560
        %v2562 = vcombine.high %v2554, %v2554
        %v2563 = vcombine.high %v2561, %v2561
        %v2564 = vcombine.high %v2228, %v2228
        %v2566 = vunpack.c.l.s4 1983009808
        %v2567 = vunpack.c.0.s8 %v2566
        %v2568 = vlaneseq
        %v2569 = vshrl.u32 %v2568, 7
        %v2570 = vsub.s32 %v2567, %v2569
        %v2571 = vrot.slane %v2228, %v2570
        %v2573 = vunpack.c.l.s4 1983009808
        %v2574 = vunpack.c.0.s8 %v2573
        %v2575 = vlaneseq
        %v2576 = vshrl.u32 %v2575, 7
        %v2577 = vsub.s32 %v2574, %v2576
        %v2578 = vrot.slane %v2564, %v2577
        %v2579 = vcombine.high %v2571, %v2571
        %v2580 = vcombine.high %v2578, %v2578
        %v2581 = vcombine.high %v2229, %v2229
        %v2583 = vunpack.c.l.s4 1983009808
        %v2584 = vunpack.c.0.s8 %v2583
        %v2585 = vlaneseq
        %v2586 = vshrl.u32 %v2585, 7
        %v2587 = vsub.s32 %v2584, %v2586
        %v2588 = vrot.slane %v2229, %v2587
        %v2590 = vunpack.c.l.s4 1983009808
        %v2591 = vunpack.c.0.s8 %v2590
        %v2592 = vlaneseq
        %v2593 = vshrl.u32 %v2592, 7
        %v2594 = vsub.s32 %v2591, %v2593
        %v2595 = vrot.slane %v2581, %v2594
        %v2596 = vcombine.high %v2588, %v2588
        %v2597 = vcombine.high %v2595, %v2595
        %v2598 = vcombine.high %v2230, %v2230
        %v2600 = vunpack.c.l.s4 1983009808
        %v2601 = vunpack.c.0.s8 %v2600
        %v2602 = vlaneseq
        %v2603 = vshrl.u32 %v2602, 7
        %v2604 = vsub.s32 %v2601, %v2603
        %v2605 = vrot.slane %v2230, %v2604
        %v2607 = vunpack.c.l.s4 1983009808
        %v2608 = vunpack.c.0.s8 %v2607
        %v2609 = vlaneseq
        %v2610 = vshrl.u32 %v2609, 7
        %v2611 = vsub.s32 %v2608, %v2610
        %v2612 = vrot.slane %v2598, %v2611
        %v2613 = vcombine.high %v2605, %v2605
        %v2614 = vcombine.high %v2612, %v2612
        %v2615 = vcombine.high %v2231, %v2231
        %v2617 = vunpack.c.l.s4 1983009808
        %v2618 = vunpack.c.0.s8 %v2617
        %v2619 = vlaneseq
        %v2620 = vshrl.u32 %v2619, 7
        %v2621 = vsub.s32 %v2618, %v2620
        %v2622 = vrot.slane %v2231, %v2621
        %v2624 = vunpack.c.l.s4 1983009808
        %v2625 = vunpack.c.0.s8 %v2624
        %v2626 = vlaneseq
        %v2627 = vshrl.u32 %v2626, 7
        %v2628 = vsub.s32 %v2625, %v2627
        %v2629 = vrot.slane %v2615, %v2628
        %v2630 = vcombine.high %v2622, %v2622
        %v2631 = vcombine.high %v2629, %v2629
        %v2632 = vcombine.high %v2232, %v2232
        %v2634 = vunpack.c.l.s4 1983009808
        %v2635 = vunpack.c.0.s8 %v2634
        %v2636 = vlaneseq
        %v2637 = vshrl.u32 %v2636, 7
        %v2638 = vsub.s32 %v2635, %v2637
        %v2639 = vrot.slane %v2232, %v2638
        %v2641 = vunpack.c.l.s4 1983009808
        %v2642 = vunpack.c.0.s8 %v2641
        %v2643 = vlaneseq
        %v2644 = vshrl.u32 %v2643, 7
        %v2645 = vsub.s32 %v2642, %v2644
        %v2646 = vrot.slane %v2632, %v2645
        %v2647 = vcombine.high %v2639, %v2639
        %v2648 = vcombine.high %v2646, %v2646
        %v2649 = vcombine.high %v2233, %v2233
        %v2651 = vunpack.c.l.s4 1983009808
        %v2652 = vunpack.c.0.s8 %v2651
        %v2653 = vlaneseq
        %v2654 = vshrl.u32 %v2653, 7
        %v2655 = vsub.s32 %v2652, %v2654
        %v2656 = vrot.slane %v2233, %v2655
        %v2658 = vunpack.c.l.s4 1983009808
        %v2659 = vunpack.c.0.s8 %v2658
        %v2660 = vlaneseq
        %v2661 = vshrl.u32 %v2660, 7
        %v2662 = vsub.s32 %v2659, %v2661
        %v2663 = vrot.slane %v2649, %v2662
        %v2664 = vcombine.high %v2656, %v2656
        %v2665 = vcombine.high %v2663, %v2663
        %v2666 = vcombine.high %v2234, %v2234
        %v2668 = vunpack.c.l.s4 1983009808
        %v2669 = vunpack.c.0.s8 %v2668
        %v2670 = vlaneseq
        %v2671 = vshrl.u32 %v2670, 7
        %v2672 = vsub.s32 %v2669, %v2671
        %v2673 = vrot.slane %v2234, %v2672
        %v2675 = vunpack.c.l.s4 1983009808
        %v2676 = vunpack.c.0.s8 %v2675
        %v2677 = vlaneseq
        %v2678 = vshrl.u32 %v2677, 7
        %v2679 = vsub.s32 %v2676, %v2678
        %v2680 = vrot.slane %v2666, %v2679
        %v2681 = vcombine.high %v2673, %v2673
        %v2682 = vcombine.high %v2680, %v2680
        %v2683 = vcombine.high %v2235, %v2235
        %v2685 = vunpack.c.l.s4 1983009808
        %v2686 = vunpack.c.0.s8 %v2685
        %v2687 = vlaneseq
        %v2688 = vshrl.u32 %v2687, 7
        %v2689 = vsub.s32 %v2686, %v2688
        %v2690 = vrot.slane %v2235, %v2689
        %v2692 = vunpack.c.l.s4 1983009808
        %v2693 = vunpack.c.0.s8 %v2692
        %v2694 = vlaneseq
        %v2695 = vshrl.u32 %v2694, 7
        %v2696 = vsub.s32 %v2693, %v2695
        %v2697 = vrot.slane %v2683, %v2696
        %v2698 = vcombine.high %v2690, %v2690
        %v2699 = vcombine.high %v2697, %v2697
        %v2700 = vcombine.high %v2236, %v2236
        %v2702 = vunpack.c.l.s4 1983009808
        %v2703 = vunpack.c.0.s8 %v2702
        %v2704 = vlaneseq
        %v2705 = vshrl.u32 %v2704, 7
        %v2706 = vsub.s32 %v2703, %v2705
        %v2707 = vrot.slane %v2236, %v2706
        %v2709 = vunpack.c.l.s4 1983009808
        %v2710 = vunpack.c.0.s8 %v2709
        %v2711 = vlaneseq
        %v2712 = vshrl.u32 %v2711, 7
        %v2713 = vsub.s32 %v2710, %v2712
        %v2714 = vrot.slane %v2700, %v2713
        %v2715 = vcombine.high %v2707, %v2707
        %v2716 = vcombine.high %v2714, %v2714
        %v2717 = vcombine.high %v2237, %v2237
        %v2719 = vunpack.c.l.s4 1983009808
        %v2720 = vunpack.c.0.s8 %v2719
        %v2721 = vlaneseq
        %v2722 = vshrl.u32 %v2721, 7
        %v2723 = vsub.s32 %v2720, %v2722
        %v2724 = vrot.slane %v2237, %v2723
        %v2726 = vunpack.c.l.s4 1983009808
        %v2727 = vunpack.c.0.s8 %v2726
        %v2728 = vlaneseq
        %v2729 = vshrl.u32 %v2728, 7
        %v2730 = vsub.s32 %v2727, %v2729
        %v2731 = vrot.slane %v2717, %v2730
        %v2732 = vcombine.high %v2724, %v2724
        %v2733 = vcombine.high %v2731, %v2731
        %v2734 = vcombine.high %v2238, %v2238
        %v2736 = vunpack.c.l.s4 1983009808
        %v2737 = vunpack.c.0.s8 %v2736
        %v2738 = vlaneseq
        %v2739 = vshrl.u32 %v2738, 7
        %v2740 = vsub.s32 %v2737, %v2739
        %v2741 = vrot.slane %v2238, %v2740
        %v2743 = vunpack.c.l.s4 1983009808
        %v2744 = vunpack.c.0.s8 %v2743
        %v2745 = vlaneseq
        %v2746 = vshrl.u32 %v2745, 7
        %v2747 = vsub.s32 %v2744, %v2746
        %v2748 = vrot.slane %v2734, %v2747
        %v2749 = vcombine.high %v2741, %v2741
        %v2750 = vcombine.high %v2748, %v2748
        %v2751 = vcombine.high %v2239, %v2239
        %v2753 = vunpack.c.l.s4 1983009808
        %v2754 = vunpack.c.0.s8 %v2753
        %v2755 = vlaneseq
        %v2756 = vshrl.u32 %v2755, 7
        %v2757 = vsub.s32 %v2754, %v2756
        %v2758 = vrot.slane %v2239, %v2757
        %v2760 = vunpack.c.l.s4 1983009808
        %v2761 = vunpack.c.0.s8 %v2760
        %v2762 = vlaneseq
        %v2763 = vshrl.u32 %v2762, 7
        %v2764 = vsub.s32 %v2761, %v2763
        %v2765 = vrot.slane %v2751, %v2764
        %v2766 = vcombine.high %v2758, %v2758
        %v2767 = vcombine.high %v2765, %v2765
        %v2768 = vcombine.high %v2240, %v2240
        %v2770 = vunpack.c.l.s4 1983009808
        %v2771 = vunpack.c.0.s8 %v2770
        %v2772 = vlaneseq
        %v2773 = vshrl.u32 %v2772, 7
        %v2774 = vsub.s32 %v2771, %v2773
        %v2775 = vrot.slane %v2240, %v2774
        %v2777 = vunpack.c.l.s4 1983009808
        %v2778 = vunpack.c.0.s8 %v2777
        %v2779 = vlaneseq
        %v2780 = vshrl.u32 %v2779, 7
        %v2781 = vsub.s32 %v2778, %v2780
        %v2782 = vrot.slane %v2768, %v2781
        %v2783 = vcombine.high %v2775, %v2775
        %v2784 = vcombine.high %v2782, %v2782
        %v2785 = vcombine.high %v2241, %v2241
        %v2787 = vunpack.c.l.s4 1983009808
        %v2788 = vunpack.c.0.s8 %v2787
        %v2789 = vlaneseq
        %v2790 = vshrl.u32 %v2789, 7
        %v2791 = vsub.s32 %v2788, %v2790
        %v2792 = vrot.slane %v2241, %v2791
        %v2794 = vunpack.c.l.s4 1983009808
        %v2795 = vunpack.c.0.s8 %v2794
        %v2796 = vlaneseq
        %v2797 = vshrl.u32 %v2796, 7
        %v2798 = vsub.s32 %v2795, %v2797
        %v2799 = vrot.slane %v2785, %v2798
        %v2800 = vcombine.high %v2792, %v2792
        %v2801 = vcombine.high %v2799, %v2799
        %v2802 = vcombine.high %v2242, %v2242
        %v2804 = vunpack.c.l.s4 1983009808
        %v2805 = vunpack.c.0.s8 %v2804
        %v2806 = vlaneseq
        %v2807 = vshrl.u32 %v2806, 7
        %v2808 = vsub.s32 %v2805, %v2807
        %v2809 = vrot.slane %v2242, %v2808
        %v2811 = vunpack.c.l.s4 1983009808
        %v2812 = vunpack.c.0.s8 %v2811
        %v2813 = vlaneseq
        %v2814 = vshrl.u32 %v2813, 7
        %v2815 = vsub.s32 %v2812, %v2814
        %v2816 = vrot.slane %v2802, %v2815
        %v2817 = vcombine.high %v2809, %v2809
        %v2818 = vcombine.high %v2816, %v2816
        %v2947 = vrot.slane %v2282, 7
        %v2948 = vrot.slane %v2947, 2
        %v2949 = vrot.slane %v2290, 7
        %v2950 = vrot.slane %v2949, 2
        %v2951 = vrot.slane %v2289, 7
        %v2952 = vrot.slane %v2951, 2
        %v2953 = vrot.slane %v2291, 7
        %v2954 = vrot.slane %v2953, 2
        %v2955 = vrot.slane %v2299, 7
        %v2956 = vrot.slane %v2955, 2
        %v2957 = vrot.slane %v2307, 7
        %v2958 = vrot.slane %v2957, 2
        %v2959 = vrot.slane %v2306, 7
        %v2960 = vrot.slane %v2959, 2
        %v2961 = vrot.slane %v2308, 7
        %v2962 = vrot.slane %v2961, 2
        %v2963 = vrot.slane %v2350, 7
        %v2964 = vrot.slane %v2963, 2
        %v2965 = vrot.slane %v2358, 7
        %v2966 = vrot.slane %v2965, 2
        %v2967 = vrot.slane %v2357, 7
        %v2968 = vrot.slane %v2967, 2
        %v2969 = vrot.slane %v2359, 7
        %v2970 = vrot.slane %v2969, 2
        %v2971 = vrot.slane %v2367, 7
        %v2972 = vrot.slane %v2971, 2
        %v2973 = vrot.slane %v2375, 7
        %v2974 = vrot.slane %v2973, 2
        %v2975 = vrot.slane %v2374, 7
        %v2976 = vrot.slane %v2975, 2
        %v2977 = vrot.slane %v2376, 7
        %v2978 = vrot.slane %v2977, 2
        %v2979 = vrot.slane %v2418, 7
        %v2980 = vrot.slane %v2979, 2
        %v2981 = vrot.slane %v2426, 7
        %v2982 = vrot.slane %v2981, 2
        %v2983 = vrot.slane %v2425, 7
        %v2984 = vrot.slane %v2983, 2
        %v2985 = vrot.slane %v2427, 7
        %v2986 = vrot.slane %v2985, 2
        %v2987 = vrot.slane %v2435, 7
        %v2988 = vrot.slane %v2987, 2
        %v2989 = vrot.slane %v2443, 7
        %v2990 = vrot.slane %v2989, 2
        %v2991 = vrot.slane %v2442, 7
        %v2992 = vrot.slane %v2991, 2
        %v2993 = vrot.slane %v2444, 7
        %v2994 = vrot.slane %v2993, 2
        %v2995 = vrot.slane %v2486, 7
        %v2996 = vrot.slane %v2995, 2
        %v2997 = vrot.slane %v2494, 7
        %v2998 = vrot.slane %v2997, 2
        %v2999 = vrot.slane %v2493, 7
        %v3000 = vrot.slane %v2999, 2
        %v3001 = vrot.slane %v2495, 7
        %v3002 = vrot.slane %v3001, 2
        %v3003 = vrot.slane %v2503, 7
        %v3004 = vrot.slane %v3003, 2
        %v3005 = vrot.slane %v2511, 7
        %v3006 = vrot.slane %v3005, 2
        %v3007 = vrot.slane %v2510, 7
        %v3008 = vrot.slane %v3007, 2
        %v3009 = vrot.slane %v2512, 7
        %v3010 = vrot.slane %v3009, 2
        %v3011 = vrot.slane %v2554, 7
        %v3012 = vrot.slane %v3011, 2
        %v3013 = vrot.slane %v2562, 7
        %v3014 = vrot.slane %v3013, 2
        %v3015 = vrot.slane %v2561, 7
        %v3016 = vrot.slane %v3015, 2
        %v3017 = vrot.slane %v2563, 7
        %v3018 = vrot.slane %v3017, 2
        %v3019 = vrot.slane %v2571, 7
        %v3020 = vrot.slane %v3019, 2
        %v3021 = vrot.slane %v2579, 7
        %v3022 = vrot.slane %v3021, 2
        %v3023 = vrot.slane %v2578, 7
        %v3024 = vrot.slane %v3023, 2
        %v3025 = vrot.slane %v2580, 7
        %v3026 = vrot.slane %v3025, 2
        %v3027 = vrot.slane %v2622, 7
        %v3028 = vrot.slane %v3027, 2
        %v3029 = vrot.slane %v2630, 7
        %v3030 = vrot.slane %v3029, 2
        %v3031 = vrot.slane %v2629, 7
        %v3032 = vrot.slane %v3031, 2
        %v3033 = vrot.slane %v2631, 7
        %v3034 = vrot.slane %v3033, 2
        %v3035 = vrot.slane %v2639, 7
        %v3036 = vrot.slane %v3035, 2
        %v3037 = vrot.slane %v2647, 7
        %v3038 = vrot.slane %v3037, 2
        %v3039 = vrot.slane %v2646, 7
        %v3040 = vrot.slane %v3039, 2
        %v3041 = vrot.slane %v2648, 7
        %v3042 = vrot.slane %v3041, 2
        %v3043 = vrot.slane %v2690, 7
        %v3044 = vrot.slane %v3043, 2
        %v3045 = vrot.slane %v2698, 7
        %v3046 = vrot.slane %v3045, 2
        %v3047 = vrot.slane %v2697, 7
        %v3048 = vrot.slane %v3047, 2
        %v3049 = vrot.slane %v2699, 7
        %v3050 = vrot.slane %v3049, 2
        %v3051 = vrot.slane %v2707, 7
        %v3052 = vrot.slane %v3051, 2
        %v3053 = vrot.slane %v2715, 7
        %v3054 = vrot.slane %v3053, 2
        %v3055 = vrot.slane %v2714, 7
        %v3056 = vrot.slane %v3055, 2
        %v3057 = vrot.slane %v2716, 7
        %v3058 = vrot.slane %v3057, 2
        %v3059 = vrot.slane %v2758, 7
        %v3060 = vrot.slane %v3059, 2
        %v3061 = vrot.slane %v2766, 7
        %v3062 = vrot.slane %v3061, 2
        %v3063 = vrot.slane %v2765, 7
        %v3064 = vrot.slane %v3063, 2
        %v3065 = vrot.slane %v2767, 7
        %v3066 = vrot.slane %v3065, 2
        %v3067 = vrot.slane %v2775, 7
        %v3068 = vrot.slane %v3067, 2
        %v3069 = vrot.slane %v2783, 7
        %v3070 = vrot.slane %v3069, 2
        %v3071 = vrot.slane %v2782, 7
        %v3072 = vrot.slane %v3071, 2
        %v3073 = vrot.slane %v2784, 7
        %v3074 = vrot.slane %v3073, 2
        %v3139 = vadd.f32 %v2282, %v2948
        %v3140 = vadd.f32 %v2290, %v2950
        %v3141 = vadd.f32 %v2289, %v2952
        %v3142 = vadd.f32 %v2291, %v2954
        %v3143 = vadd.f32 %v2299, %v2956
        %v3144 = vadd.f32 %v2307, %v2958
        %v3145 = vadd.f32 %v2306, %v2960
        %v3146 = vadd.f32 %v2308, %v2962
        %v3147 = vadd.f32 %v2350, %v2964
        %v3148 = vadd.f32 %v2358, %v2966
        %v3149 = vadd.f32 %v2357, %v2968
        %v3150 = vadd.f32 %v2359, %v2970
        %v3151 = vadd.f32 %v2367, %v2972
        %v3152 = vadd.f32 %v2375, %v2974
        %v3153 = vadd.f32 %v2374, %v2976
        %v3154 = vadd.f32 %v2376, %v2978
        %v3155 = vadd.f32 %v2418, %v2980
        %v3156 = vadd.f32 %v2426, %v2982
        %v3157 = vadd.f32 %v2425, %v2984
        %v3158 = vadd.f32 %v2427, %v2986
        %v3159 = vadd.f32 %v2435, %v2988
        %v3160 = vadd.f32 %v2443, %v2990
        %v3161 = vadd.f32 %v2442, %v2992
        %v3162 = vadd.f32 %v2444, %v2994
        %v3163 = vadd.f32 %v2486, %v2996
        %v3164 = vadd.f32 %v2494, %v2998
        %v3165 = vadd.f32 %v2493, %v3000
        %v3166 = vadd.f32 %v2495, %v3002
        %v3167 = vadd.f32 %v2503, %v3004
        %v3168 = vadd.f32 %v2511, %v3006
        %v3169 = vadd.f32 %v2510, %v3008
        %v3170 = vadd.f32 %v2512, %v3010
        %v3171 = vadd.f32 %v2554, %v3012
        %v3172 = vadd.f32 %v2562, %v3014
        %v3173 = vadd.f32 %v2561, %v3016
        %v3174 = vadd.f32 %v2563, %v3018
        %v3175 = vadd.f32 %v2571, %v3020
        %v3176 = vadd.f32 %v2579, %v3022
        %v3177 = vadd.f32 %v2578, %v3024
        %v3178 = vadd.f32 %v2580, %v3026
        %v3179 = vadd.f32 %v2622, %v3028
        %v3180 = vadd.f32 %v2630, %v3030
        %v3181 = vadd.f32 %v2629, %v3032
        %v3182 = vadd.f32 %v2631, %v3034
        %v3183 = vadd.f32 %v2639, %v3036
        %v3184 = vadd.f32 %v2647, %v3038
        %v3185 = vadd.f32 %v2646, %v3040
        %v3186 = vadd.f32 %v2648, %v3042
        %v3187 = vadd.f32 %v2690, %v3044
        %v3188 = vadd.f32 %v2698, %v3046
        %v3189 = vadd.f32 %v2697, %v3048
        %v3190 = vadd.f32 %v2699, %v3050
        %v3191 = vadd.f32 %v2707, %v3052
        %v3192 = vadd.f32 %v2715, %v3054
        %v3193 = vadd.f32 %v2714, %v3056
        %v3194 = vadd.f32 %v2716, %v3058
        %v3195 = vadd.f32 %v2758, %v3060
        %v3196 = vadd.f32 %v2766, %v3062
        %v3197 = vadd.f32 %v2765, %v3064
        %v3198 = vadd.f32 %v2767, %v3066
        %v3199 = vadd.f32 %v2775, %v3068
        %v3200 = vadd.f32 %v2783, %v3070
        %v3201 = vadd.f32 %v2782, %v3072
        %v3202 = vadd.f32 %v2784, %v3074
        %v3203 = vadd.f32 %v3139, %v2316
        %v3204 = vadd.f32 %v3140, %v2324
        %v3205 = vadd.f32 %v3141, %v2323
        %v3206 = vadd.f32 %v3142, %v2325
        %v3207 = vadd.f32 %v3143, %v2333
        %v3208 = vadd.f32 %v3144, %v2341
        %v3209 = vadd.f32 %v3145, %v2340
        %v3210 = vadd.f32 %v3146, %v2342
        %v3211 = vadd.f32 %v3147, %v2384
        %v3212 = vadd.f32 %v3148, %v2392
        %v3213 = vadd.f32 %v3149, %v2391
        %v3214 = vadd.f32 %v3150, %v2393
        %v3215 = vadd.f32 %v3151, %v2401
        %v3216 = vadd.f32 %v3152, %v2409
        %v3217 = vadd.f32 %v3153, %v2408
        %v3218 = vadd.f32 %v3154, %v2410
        %v3219 = vadd.f32 %v3155, %v2452
        %v3220 = vadd.f32 %v3156, %v2460
        %v3221 = vadd.f32 %v3157, %v2459
        %v3222 = vadd.f32 %v3158, %v2461
        %v3223 = vadd.f32 %v3159, %v2469
        %v3224 = vadd.f32 %v3160, %v2477
        %v3225 = vadd.f32 %v3161, %v2476
        %v3226 = vadd.f32 %v3162, %v2478
        %v3227 = vadd.f32 %v3163, %v2520
        %v3228 = vadd.f32 %v3164, %v2528
        %v3229 = vadd.f32 %v3165, %v2527
        %v3230 = vadd.f32 %v3166, %v2529
        %v3231 = vadd.f32 %v3167, %v2537
        %v3232 = vadd.f32 %v3168, %v2545
        %v3233 = vadd.f32 %v3169, %v2544
        %v3234 = vadd.f32 %v3170, %v2546
        %v3235 = vadd.f32 %v3171, %v2588
        %v3236 = vadd.f32 %v3172, %v2596
        %v3237 = vadd.f32 %v3173, %v2595
        %v3238 = vadd.f32 %v3174, %v2597
        %v3239 = vadd.f32 %v3175, %v2605
        %v3240 = vadd.f32 %v3176, %v2613
        %v3241 = vadd.f32 %v3177, %v2612
        %v3242 = vadd.f32 %v3178, %v2614
        %v3243 = vadd.f32 %v3179, %v2656
        %v3244 = vadd.f32 %v3180, %v2664
        %v3245 = vadd.f32 %v3181, %v2663
        %v3246 = vadd.f32 %v3182, %v2665
        %v3247 = vadd.f32 %v3183, %v2673
        %v3248 = vadd.f32 %v3184, %v2681
        %v3249 = vadd.f32 %v3185, %v2680
        %v3250 = vadd.f32 %v3186, %v2682
        %v3251 = vadd.f32 %v3187, %v2724
        %v3252 = vadd.f32 %v3188, %v2732
        %v3253 = vadd.f32 %v3189, %v2731
        %v3254 = vadd.f32 %v3190, %v2733
        %v3255 = vadd.f32 %v3191, %v2741
        %v3256 = vadd.f32 %v3192, %v2749
        %v3257 = vadd.f32 %v3193, %v2748
        %v3258 = vadd.f32 %v3194, %v2750
        %v3259 = vadd.f32 %v3195, %v2792
        %v3260 = vadd.f32 %v3196, %v2800
        %v3261 = vadd.f32 %v3197, %v2799
        %v3262 = vadd.f32 %v3198, %v2801
        %v3263 = vadd.f32 %v3199, %v2809
        %v3264 = vadd.f32 %v3200, %v2817
        %v3265 = vadd.f32 %v3201, %v2816
        %v3266 = vadd.f32 %v3202, %v2818
        %v3267 = vrot.slane %v2316, 7
        %v3268 = vrot.slane %v3267, 2
        %v3269 = vrot.slane %v2324, 7
        %v3270 = vrot.slane %v3269, 2
        %v3271 = vrot.slane %v2323, 7
        %v3272 = vrot.slane %v3271, 2
        %v3273 = vrot.slane %v2325, 7
        %v3274 = vrot.slane %v3273, 2
        %v3275 = vrot.slane %v2333, 7
        %v3276 = vrot.slane %v3275, 2
        %v3277 = vrot.slane %v2341, 7
        %v3278 = vrot.slane %v3277, 2
        %v3279 = vrot.slane %v2340, 7
        %v3280 = vrot.slane %v3279, 2
        %v3281 = vrot.slane %v2342, 7
        %v3282 = vrot.slane %v3281, 2
        %v3283 = vrot.slane %v2384, 7
        %v3284 = vrot.slane %v3283, 2
        %v3285 = vrot.slane %v2392, 7
        %v3286 = vrot.slane %v3285, 2
        %v3287 = vrot.slane %v2391, 7
        %v3288 = vrot.slane %v3287, 2
        %v3289 = vrot.slane %v2393, 7
        %v3290 = vrot.slane %v3289, 2
        %v3291 = vrot.slane %v2401, 7
        %v3292 = vrot.slane %v3291, 2
        %v3293 = vrot.slane %v2409, 7
        %v3294 = vrot.slane %v3293, 2
        %v3295 = vrot.slane %v2408, 7
        %v3296 = vrot.slane %v3295, 2
        %v3297 = vrot.slane %v2410, 7
        %v3298 = vrot.slane %v3297, 2
        %v3299 = vrot.slane %v2452, 7
        %v3300 = vrot.slane %v3299, 2
        %v3301 = vrot.slane %v2460, 7
        %v3302 = vrot.slane %v3301, 2
        %v3303 = vrot.slane %v2459, 7
        %v3304 = vrot.slane %v3303, 2
        %v3305 = vrot.slane %v2461, 7
        %v3306 = vrot.slane %v3305, 2
        %v3307 = vrot.slane %v2469, 7
        %v3308 = vrot.slane %v3307, 2
        %v3309 = vrot.slane %v2477, 7
        %v3310 = vrot.slane %v3309, 2
        %v3311 = vrot.slane %v2476, 7
        %v3312 = vrot.slane %v3311, 2
        %v3313 = vrot.slane %v2478, 7
        %v3314 = vrot.slane %v3313, 2
        %v3315 = vrot.slane %v2520, 7
        %v3316 = vrot.slane %v3315, 2
        %v3317 = vrot.slane %v2528, 7
        %v3318 = vrot.slane %v3317, 2
        %v3319 = vrot.slane %v2527, 7
        %v3320 = vrot.slane %v3319, 2
        %v3321 = vrot.slane %v2529, 7
        %v3322 = vrot.slane %v3321, 2
        %v3323 = vrot.slane %v2537, 7
        %v3324 = vrot.slane %v3323, 2
        %v3325 = vrot.slane %v2545, 7
        %v3326 = vrot.slane %v3325, 2
        %v3327 = vrot.slane %v2544, 7
        %v3328 = vrot.slane %v3327, 2
        %v3329 = vrot.slane %v2546, 7
        %v3330 = vrot.slane %v3329, 2
        %v3331 = vrot.slane %v2588, 7
        %v3332 = vrot.slane %v3331, 2
        %v3333 = vrot.slane %v2596, 7
        %v3334 = vrot.slane %v3333, 2
        %v3335 = vrot.slane %v2595, 7
        %v3336 = vrot.slane %v3335, 2
        %v3337 = vrot.slane %v2597, 7
        %v3338 = vrot.slane %v3337, 2
        %v3339 = vrot.slane %v2605, 7
        %v3340 = vrot.slane %v3339, 2
        %v3341 = vrot.slane %v2613, 7
        %v3342 = vrot.slane %v3341, 2
        %v3343 = vrot.slane %v2612, 7
        %v3344 = vrot.slane %v3343, 2
        %v3345 = vrot.slane %v2614, 7
        %v3346 = vrot.slane %v3345, 2
        %v3347 = vrot.slane %v2656, 7
        %v3348 = vrot.slane %v3347, 2
        %v3349 = vrot.slane %v2664, 7
        %v3350 = vrot.slane %v3349, 2
        %v3351 = vrot.slane %v2663, 7
        %v3352 = vrot.slane %v3351, 2
        %v3353 = vrot.slane %v2665, 7
        %v3354 = vrot.slane %v3353, 2
        %v3355 = vrot.slane %v2673, 7
        %v3356 = vrot.slane %v3355, 2
        %v3357 = vrot.slane %v2681, 7
        %v3358 = vrot.slane %v3357, 2
        %v3359 = vrot.slane %v2680, 7
        %v3360 = vrot.slane %v3359, 2
        %v3361 = vrot.slane %v2682, 7
        %v3362 = vrot.slane %v3361, 2
        %v3363 = vrot.slane %v2724, 7
        %v3364 = vrot.slane %v3363, 2
        %v3365 = vrot.slane %v2732, 7
        %v3366 = vrot.slane %v3365, 2
        %v3367 = vrot.slane %v2731, 7
        %v3368 = vrot.slane %v3367, 2
        %v3369 = vrot.slane %v2733, 7
        %v3370 = vrot.slane %v3369, 2
        %v3371 = vrot.slane %v2741, 7
        %v3372 = vrot.slane %v3371, 2
        %v3373 = vrot.slane %v2749, 7
        %v3374 = vrot.slane %v3373, 2
        %v3375 = vrot.slane %v2748, 7
        %v3376 = vrot.slane %v3375, 2
        %v3377 = vrot.slane %v2750, 7
        %v3378 = vrot.slane %v3377, 2
        %v3379 = vrot.slane %v2792, 7
        %v3380 = vrot.slane %v3379, 2
        %v3381 = vrot.slane %v2800, 7
        %v3382 = vrot.slane %v3381, 2
        %v3383 = vrot.slane %v2799, 7
        %v3384 = vrot.slane %v3383, 2
        %v3385 = vrot.slane %v2801, 7
        %v3386 = vrot.slane %v3385, 2
        %v3387 = vrot.slane %v2809, 7
        %v3388 = vrot.slane %v3387, 2
        %v3389 = vrot.slane %v2817, 7
        %v3390 = vrot.slane %v3389, 2
        %v3391 = vrot.slane %v2816, 7
        %v3392 = vrot.slane %v3391, 2
        %v3393 = vrot.slane %v2818, 7
        %v3394 = vrot.slane %v3393, 2
        %v3459 = vadd.f32 %v3203, %v3268
        %v3460 = vadd.f32 %v3204, %v3270
        %v3461 = vadd.f32 %v3205, %v3272
        %v3462 = vadd.f32 %v3206, %v3274
        %v3463 = vadd.f32 %v3207, %v3276
        %v3464 = vadd.f32 %v3208, %v3278
        %v3465 = vadd.f32 %v3209, %v3280
        %v3466 = vadd.f32 %v3210, %v3282
        %v3467 = vadd.f32 %v3211, %v3284
        %v3468 = vadd.f32 %v3212, %v3286
        %v3469 = vadd.f32 %v3213, %v3288
        %v3470 = vadd.f32 %v3214, %v3290
        %v3471 = vadd.f32 %v3215, %v3292
        %v3472 = vadd.f32 %v3216, %v3294
        %v3473 = vadd.f32 %v3217, %v3296
        %v3474 = vadd.f32 %v3218, %v3298
        %v3475 = vadd.f32 %v3219, %v3300
        %v3476 = vadd.f32 %v3220, %v3302
        %v3477 = vadd.f32 %v3221, %v3304
        %v3478 = vadd.f32 %v3222, %v3306
        %v3479 = vadd.f32 %v3223, %v3308
        %v3480 = vadd.f32 %v3224, %v3310
        %v3481 = vadd.f32 %v3225, %v3312
        %v3482 = vadd.f32 %v3226, %v3314
        %v3483 = vadd.f32 %v3227, %v3316
        %v3484 = vadd.f32 %v3228, %v3318
        %v3485 = vadd.f32 %v3229, %v3320
        %v3486 = vadd.f32 %v3230, %v3322
        %v3487 = vadd.f32 %v3231, %v3324
        %v3488 = vadd.f32 %v3232, %v3326
        %v3489 = vadd.f32 %v3233, %v3328
        %v3490 = vadd.f32 %v3234, %v3330
        %v3491 = vadd.f32 %v3235, %v3332
        %v3492 = vadd.f32 %v3236, %v3334
        %v3493 = vadd.f32 %v3237, %v3336
        %v3494 = vadd.f32 %v3238, %v3338
        %v3495 = vadd.f32 %v3239, %v3340
        %v3496 = vadd.f32 %v3240, %v3342
        %v3497 = vadd.f32 %v3241, %v3344
        %v3498 = vadd.f32 %v3242, %v3346
        %v3499 = vadd.f32 %v3243, %v3348
        %v3500 = vadd.f32 %v3244, %v3350
        %v3501 = vadd.f32 %v3245, %v3352
        %v3502 = vadd.f32 %v3246, %v3354
        %v3503 = vadd.f32 %v3247, %v3356
        %v3504 = vadd.f32 %v3248, %v3358
        %v3505 = vadd.f32 %v3249, %v3360
        %v3506 = vadd.f32 %v3250, %v3362
        %v3507 = vadd.f32 %v3251, %v3364
        %v3508 = vadd.f32 %v3252, %v3366
        %v3509 = vadd.f32 %v3253, %v3368
        %v3510 = vadd.f32 %v3254, %v3370
        %v3511 = vadd.f32 %v3255, %v3372
        %v3512 = vadd.f32 %v3256, %v3374
        %v3513 = vadd.f32 %v3257, %v3376
        %v3514 = vadd.f32 %v3258, %v3378
        %v3515 = vadd.f32 %v3259, %v3380
        %v3516 = vadd.f32 %v3260, %v3382
        %v3517 = vadd.f32 %v3261, %v3384
        %v3518 = vadd.f32 %v3262, %v3386
        %v3519 = vadd.f32 %v3263, %v3388
        %v3520 = vadd.f32 %v3264, %v3390
        %v3521 = vadd.f32 %v3265, %v3392
        %v3522 = vadd.f32 %v3266, %v3394
        %v3523 = vmul.f32 %v3459, 0.25
        %v3524 = vmul.f32 %v3460, 0.25
        %v3525 = vmul.f32 %v3461, 0.25
        %v3526 = vmul.f32 %v3462, 0.25
        %v3527 = vmul.f32 %v3463, 0.25
        %v3528 = vmul.f32 %v3464, 0.25
        %v3529 = vmul.f32 %v3465, 0.25
        %v3530 = vmul.f32 %v3466, 0.25
        %v3531 = vmul.f32 %v3467, 0.25
        %v3532 = vmul.f32 %v3468, 0.25
        %v3533 = vmul.f32 %v3469, 0.25
        %v3534 = vmul.f32 %v3470, 0.25
        %v3535 = vmul.f32 %v3471, 0.25
        %v3536 = vmul.f32 %v3472, 0.25
        %v3537 = vmul.f32 %v3473, 0.25
        %v3538 = vmul.f32 %v3474, 0.25
        %v3539 = vmul.f32 %v3475, 0.25
        %v3540 = vmul.f32 %v3476, 0.25
        %v3541 = vmul.f32 %v3477, 0.25
        %v3542 = vmul.f32 %v3478, 0.25
        %v3543 = vmul.f32 %v3479, 0.25
        %v3544 = vmul.f32 %v3480, 0.25
        %v3545 = vmul.f32 %v3481, 0.25
        %v3546 = vmul.f32 %v3482, 0.25
        %v3547 = vmul.f32 %v3483, 0.25
        %v3548 = vmul.f32 %v3484, 0.25
        %v3549 = vmul.f32 %v3485, 0.25
        %v3550 = vmul.f32 %v3486, 0.25
        %v3551 = vmul.f32 %v3487, 0.25
        %v3552 = vmul.f32 %v3488, 0.25
        %v3553 = vmul.f32 %v3489, 0.25
        %v3554 = vmul.f32 %v3490, 0.25
        %v3555 = vmul.f32 %v3491, 0.25
        %v3556 = vmul.f32 %v3492, 0.25
        %v3557 = vmul.f32 %v3493, 0.25
        %v3558 = vmul.f32 %v3494, 0.25
        %v3559 = vmul.f32 %v3495, 0.25
        %v3560 = vmul.f32 %v3496, 0.25
        %v3561 = vmul.f32 %v3497, 0.25
        %v3562 = vmul.f32 %v3498, 0.25
        %v3563 = vmul.f32 %v3499, 0.25
        %v3564 = vmul.f32 %v3500, 0.25
        %v3565 = vmul.f32 %v3501, 0.25
        %v3566 = vmul.f32 %v3502, 0.25
        %v3567 = vmul.f32 %v3503, 0.25
        %v3568 = vmul.f32 %v3504, 0.25
        %v3569 = vmul.f32 %v3505, 0.25
        %v3570 = vmul.f32 %v3506, 0.25
        %v3571 = vmul.f32 %v3507, 0.25
        %v3572 = vmul.f32 %v3508, 0.25
        %v3573 = vmul.f32 %v3509, 0.25
        %v3574 = vmul.f32 %v3510, 0.25
        %v3575 = vmul.f32 %v3511, 0.25
        %v3576 = vmul.f32 %v3512, 0.25
        %v3577 = vmul.f32 %v3513, 0.25
        %v3578 = vmul.f32 %v3514, 0.25
        %v3579 = vmul.f32 %v3515, 0.25
        %v3580 = vmul.f32 %v3516, 0.25
        %v3581 = vmul.f32 %v3517, 0.25
        %v3582 = vmul.f32 %v3518, 0.25
        %v3583 = vmul.f32 %v3519, 0.25
        %v3584 = vmul.f32 %v3520, 0.25
        %v3585 = vmul.f32 %v3521, 0.25
        %v3586 = vmul.f32 %v3522, 0.25
        %v3651 = vlaneseq
        %v3652 = vshrl.u32 %v3651, 7
        %v3653 = vsub.s32 0, %v3652
        %v3654 = vrot.slane %v3523, %v3653
        %v3655 = vlaneseq
        %v3656 = vshrl.u32 %v3655, 7
        %v3657 = vsub.s32 0, %v3656
        %v3658 = vrot.slane %v3524, %v3657
        %v3659 = vlaneseq
        %v3660 = vshrl.u32 %v3659, 7
        %v3661 = vsub.s32 0, %v3660
        %v3662 = vrot.slane %v3525, %v3661
        %v3663 = vlaneseq
        %v3664 = vshrl.u32 %v3663, 7
        %v3665 = vsub.s32 0, %v3664
        %v3666 = vrot.slane %v3526, %v3665
        %v3667 = vlaneseq
        %v3668 = vshrl.u32 %v3667, 7
        %v3669 = vsub.s32 0, %v3668
        %v3670 = vrot.slane %v3527, %v3669
        %v3671 = vlaneseq
        %v3672 = vshrl.u32 %v3671, 7
        %v3673 = vsub.s32 0, %v3672
        %v3674 = vrot.slane %v3528, %v3673
        %v3675 = vlaneseq
        %v3676 = vshrl.u32 %v3675, 7
        %v3677 = vsub.s32 0, %v3676
        %v3678 = vrot.slane %v3529, %v3677
        %v3679 = vlaneseq
        %v3680 = vshrl.u32 %v3679, 7
        %v3681 = vsub.s32 0, %v3680
        %v3682 = vrot.slane %v3530, %v3681
        %v3683 = vlaneseq
        %v3684 = vshrl.u32 %v3683, 7
        %v3685 = vsub.s32 0, %v3684
        %v3686 = vrot.slane %v3531, %v3685
        %v3687 = vlaneseq
        %v3688 = vshrl.u32 %v3687, 7
        %v3689 = vsub.s32 0, %v3688
        %v3690 = vrot.slane %v3532, %v3689
        %v3691 = vlaneseq
        %v3692 = vshrl.u32 %v3691, 7
        %v3693 = vsub.s32 0, %v3692
        %v3694 = vrot.slane %v3533, %v3693
        %v3695 = vlaneseq
        %v3696 = vshrl.u32 %v3695, 7
        %v3697 = vsub.s32 0, %v3696
        %v3698 = vrot.slane %v3534, %v3697
        %v3699 = vlaneseq
        %v3700 = vshrl.u32 %v3699, 7
        %v3701 = vsub.s32 0, %v3700
        %v3702 = vrot.slane %v3535, %v3701
        %v3703 = vlaneseq
        %v3704 = vshrl.u32 %v3703, 7
        %v3705 = vsub.s32 0, %v3704
        %v3706 = vrot.slane %v3536, %v3705
        %v3707 = vlaneseq
        %v3708 = vshrl.u32 %v3707, 7
        %v3709 = vsub.s32 0, %v3708
        %v3710 = vrot.slane %v3537, %v3709
        %v3711 = vlaneseq
        %v3712 = vshrl.u32 %v3711, 7
        %v3713 = vsub.s32 0, %v3712
        %v3714 = vrot.slane %v3538, %v3713
        %v3715 = vlaneseq
        %v3716 = vshrl.u32 %v3715, 7
        %v3717 = vsub.s32 0, %v3716
        %v3718 = vrot.slane %v3539, %v3717
        %v3719 = vlaneseq
        %v3720 = vshrl.u32 %v3719, 7
        %v3721 = vsub.s32 0, %v3720
        %v3722 = vrot.slane %v3540, %v3721
        %v3723 = vlaneseq
        %v3724 = vshrl.u32 %v3723, 7
        %v3725 = vsub.s32 0, %v3724
        %v3726 = vrot.slane %v3541, %v3725
        %v3727 = vlaneseq
        %v3728 = vshrl.u32 %v3727, 7
        %v3729 = vsub.s32 0, %v3728
        %v3730 = vrot.slane %v3542, %v3729
        %v3731 = vlaneseq
        %v3732 = vshrl.u32 %v3731, 7
        %v3733 = vsub.s32 0, %v3732
        %v3734 = vrot.slane %v3543, %v3733
        %v3735 = vlaneseq
        %v3736 = vshrl.u32 %v3735, 7
        %v3737 = vsub.s32 0, %v3736
        %v3738 = vrot.slane %v3544, %v3737
        %v3739 = vlaneseq
        %v3740 = vshrl.u32 %v3739, 7
        %v3741 = vsub.s32 0, %v3740
        %v3742 = vrot.slane %v3545, %v3741
        %v3743 = vlaneseq
        %v3744 = vshrl.u32 %v3743, 7
        %v3745 = vsub.s32 0, %v3744
        %v3746 = vrot.slane %v3546, %v3745
        %v3747 = vlaneseq
        %v3748 = vshrl.u32 %v3747, 7
        %v3749 = vsub.s32 0, %v3748
        %v3750 = vrot.slane %v3547, %v3749
        %v3751 = vlaneseq
        %v3752 = vshrl.u32 %v3751, 7
        %v3753 = vsub.s32 0, %v3752
        %v3754 = vrot.slane %v3548, %v3753
        %v3755 = vlaneseq
        %v3756 = vshrl.u32 %v3755, 7
        %v3757 = vsub.s32 0, %v3756
        %v3758 = vrot.slane %v3549, %v3757
        %v3759 = vlaneseq
        %v3760 = vshrl.u32 %v3759, 7
        %v3761 = vsub.s32 0, %v3760
        %v3762 = vrot.slane %v3550, %v3761
        %v3763 = vlaneseq
        %v3764 = vshrl.u32 %v3763, 7
        %v3765 = vsub.s32 0, %v3764
        %v3766 = vrot.slane %v3551, %v3765
        %v3767 = vlaneseq
        %v3768 = vshrl.u32 %v3767, 7
        %v3769 = vsub.s32 0, %v3768
        %v3770 = vrot.slane %v3552, %v3769
        %v3771 = vlaneseq
        %v3772 = vshrl.u32 %v3771, 7
        %v3773 = vsub.s32 0, %v3772
        %v3774 = vrot.slane %v3553, %v3773
        %v3775 = vlaneseq
        %v3776 = vshrl.u32 %v3775, 7
        %v3777 = vsub.s32 0, %v3776
        %v3778 = vrot.slane %v3554, %v3777
        %v3779 = vlaneseq
        %v3780 = vshrl.u32 %v3779, 7
        %v3781 = vsub.s32 0, %v3780
        %v3782 = vrot.slane %v3555, %v3781
        %v3783 = vlaneseq
        %v3784 = vshrl.u32 %v3783, 7
        %v3785 = vsub.s32 0, %v3784
        %v3786 = vrot.slane %v3556, %v3785
        %v3787 = vlaneseq
        %v3788 = vshrl.u32 %v3787, 7
        %v3789 = vsub.s32 0, %v3788
        %v3790 = vrot.slane %v3557, %v3789
        %v3791 = vlaneseq
        %v3792 = vshrl.u32 %v3791, 7
        %v3793 = vsub.s32 0, %v3792
        %v3794 = vrot.slane %v3558, %v3793
        %v3795 = vlaneseq
        %v3796 = vshrl.u32 %v3795, 7
        %v3797 = vsub.s32 0, %v3796
        %v3798 = vrot.slane %v3559, %v3797
        %v3799 = vlaneseq
        %v3800 = vshrl.u32 %v3799, 7
        %v3801 = vsub.s32 0, %v3800
        %v3802 = vrot.slane %v3560, %v3801
        %v3803 = vlaneseq
        %v3804 = vshrl.u32 %v3803, 7
        %v3805 = vsub.s32 0, %v3804
        %v3806 = vrot.slane %v3561, %v3805
        %v3807 = vlaneseq
        %v3808 = vshrl.u32 %v3807, 7
        %v3809 = vsub.s32 0, %v3808
        %v3810 = vrot.slane %v3562, %v3809
        %v3811 = vlaneseq
        %v3812 = vshrl.u32 %v3811, 7
        %v3813 = vsub.s32 0, %v3812
        %v3814 = vrot.slane %v3563, %v3813
        %v3815 = vlaneseq
        %v3816 = vshrl.u32 %v3815, 7
        %v3817 = vsub.s32 0, %v3816
        %v3818 = vrot.slane %v3564, %v3817
        %v3819 = vlaneseq
        %v3820 = vshrl.u32 %v3819, 7
        %v3821 = vsub.s32 0, %v3820
        %v3822 = vrot.slane %v3565, %v3821
        %v3823 = vlaneseq
        %v3824 = vshrl.u32 %v3823, 7
        %v3825 = vsub.s32 0, %v3824
        %v3826 = vrot.slane %v3566, %v3825
        %v3827 = vlaneseq
        %v3828 = vshrl.u32 %v3827, 7
        %v3829 = vsub.s32 0, %v3828
        %v3830 = vrot.slane %v3567, %v3829
        %v3831 = vlaneseq
        %v3832 = vshrl.u32 %v3831, 7
        %v3833 = vsub.s32 0, %v3832
        %v3834 = vrot.slane %v3568, %v3833
        %v3835 = vlaneseq
        %v3836 = vshrl.u32 %v3835, 7
        %v3837 = vsub.s32 0, %v3836
        %v3838 = vrot.slane %v3569, %v3837
        %v3839 = vlaneseq
        %v3840 = vshrl.u32 %v3839, 7
        %v3841 = vsub.s32 0, %v3840
        %v3842 = vrot.slane %v3570, %v3841
        %v3843 = vlaneseq
        %v3844 = vshrl.u32 %v3843, 7
        %v3845 = vsub.s32 0, %v3844
        %v3846 = vrot.slane %v3571, %v3845
        %v3847 = vlaneseq
        %v3848 = vshrl.u32 %v3847, 7
        %v3849 = vsub.s32 0, %v3848
        %v3850 = vrot.slane %v3572, %v3849
        %v3851 = vlaneseq
        %v3852 = vshrl.u32 %v3851, 7
        %v3853 = vsub.s32 0, %v3852
        %v3854 = vrot.slane %v3573, %v3853
        %v3855 = vlaneseq
        %v3856 = vshrl.u32 %v3855, 7
        %v3857 = vsub.s32 0, %v3856
        %v3858 = vrot.slane %v3574, %v3857
        %v3859 = vlaneseq
        %v3860 = vshrl.u32 %v3859, 7
        %v3861 = vsub.s32 0, %v3860
        %v3862 = vrot.slane %v3575, %v3861
        %v3863 = vlaneseq
        %v3864 = vshrl.u32 %v3863, 7
        %v3865 = vsub.s32 0, %v3864
        %v3866 = vrot.slane %v3576, %v3865
        %v3867 = vlaneseq
        %v3868 = vshrl.u32 %v3867, 7
        %v3869 = vsub.s32 0, %v3868
        %v3870 = vrot.slane %v3577, %v3869
        %v3871 = vlaneseq
        %v3872 = vshrl.u32 %v3871, 7
        %v3873 = vsub.s32 0, %v3872
        %v3874 = vrot.slane %v3578, %v3873
        %v3875 = vlaneseq
        %v3876 = vshrl.u32 %v3875, 7
        %v3877 = vsub.s32 0, %v3876
        %v3878 = vrot.slane %v3579, %v3877
        %v3879 = vlaneseq
        %v3880 = vshrl.u32 %v3879, 7
        %v3881 = vsub.s32 0, %v3880
        %v3882 = vrot.slane %v3580, %v3881
        %v3883 = vlaneseq
        %v3884 = vshrl.u32 %v3883, 7
        %v3885 = vsub.s32 0, %v3884
        %v3886 = vrot.slane %v3581, %v3885
        %v3887 = vlaneseq
        %v3888 = vshrl.u32 %v3887, 7
        %v3889 = vsub.s32 0, %v3888
        %v3890 = vrot.slane %v3582, %v3889
        %v3891 = vlaneseq
        %v3892 = vshrl.u32 %v3891, 7
        %v3893 = vsub.s32 0, %v3892
        %v3894 = vrot.slane %v3583, %v3893
        %v3895 = vlaneseq
        %v3896 = vshrl.u32 %v3895, 7
        %v3897 = vsub.s32 0, %v3896
        %v3898 = vrot.slane %v3584, %v3897
        %v3899 = vlaneseq
        %v3900 = vshrl.u32 %v3899, 7
        %v3901 = vsub.s32 0, %v3900
        %v3902 = vrot.slane %v3585, %v3901
        %v3903 = vlaneseq
        %v3904 = vshrl.u32 %v3903, 7
        %v3905 = vsub.s32 0, %v3904
        %v3906 = vrot.slane %v3586, %v3905
        %vm3907 = vcmask 1041409
        %v3908 = vsel %vm3907, %v3658, %v3654
        %vm3909 = vcmask 1042434
        %v3910 = vsel %vm3909, %v3662, %v3908
        %vm3911 = vcmask 1043459
        %v3912 = vsel %vm3911, %v3666, %v3910
        %vm3913 = vcmask 1044484
        %v3914 = vsel %vm3913, %v3670, %v3912
        %vm3915 = vcmask 1045509
        %v3916 = vsel %vm3915, %v3674, %v3914
        %vm3917 = vcmask 1046534
        %v3918 = vsel %vm3917, %v3678, %v3916
        %vm3919 = vcmask 1047559
        %v3920 = vsel %vm3919, %v3682, %v3918
        %v3921 = vsel %vm3907, %v3690, %v3686
        %v3922 = vsel %vm3909, %v3694, %v3921
        %v3923 = vsel %vm3911, %v3698, %v3922
        %v3924 = vsel %vm3913, %v3702, %v3923
        %v3925 = vsel %vm3915, %v3706, %v3924
        %v3926 = vsel %vm3917, %v3710, %v3925
        %v3927 = vsel %vm3919, %v3714, %v3926
        %v3928 = vsel %vm3907, %v3722, %v3718
        %v3929 = vsel %vm3909, %v3726, %v3928
        %v3930 = vsel %vm3911, %v3730, %v3929
        %v3931 = vsel %vm3913, %v3734, %v3930
        %v3932 = vsel %vm3915, %v3738, %v3931
        %v3933 = vsel %vm3917, %v3742, %v3932
        %v3934 = vsel %vm3919, %v3746, %v3933
        %v3935 = vsel %vm3907, %v3754, %v3750
        %v3936 = vsel %vm3909, %v3758, %v3935
        %v3937 = vsel %vm3911, %v3762, %v3936
        %v3938 = vsel %vm3913, %v3766, %v3937
        %v3939 = vsel %vm3915, %v3770, %v3938
        %v3940 = vsel %vm3917, %v3774, %v3939
        %v3941 = vsel %vm3919, %v3778, %v3940
        %v3942 = vsel %vm3907, %v3786, %v3782
        %v3943 = vsel %vm3909, %v3790, %v3942
        %v3944 = vsel %vm3911, %v3794, %v3943
        %v3945 = vsel %vm3913, %v3798, %v3944
        %v3946 = vsel %vm3915, %v3802, %v3945
        %v3947 = vsel %vm3917, %v3806, %v3946
        %v3948 = vsel %vm3919, %v3810, %v3947
        %v3949 = vsel %vm3907, %v3818, %v3814
        %v3950 = vsel %vm3909, %v3822, %v3949
        %v3951 = vsel %vm3911, %v3826, %v3950
        %v3952 = vsel %vm3913, %v3830, %v3951
        %v3953 = vsel %vm3915, %v3834, %v3952
        %v3954 = vsel %vm3917, %v3838, %v3953
        %v3955 = vsel %vm3919, %v3842, %v3954
        %v3956 = vsel %vm3907, %v3850, %v3846
        %v3957 = vsel %vm3909, %v3854, %v3956
        %v3958 = vsel %vm3911, %v3858, %v3957
        %v3959 = vsel %vm3913, %v3862, %v3958
        %v3960 = vsel %vm3915, %v3866, %v3959
        %v3961 = vsel %vm3917, %v3870, %v3960
        %v3962 = vsel %vm3919, %v3874, %v3961
        %v3963 = vsel %vm3907, %v3882, %v3878
        %v3964 = vsel %vm3909, %v3886, %v3963
        %v3965 = vsel %vm3911, %v3890, %v3964
        %v3966 = vsel %vm3913, %v3894, %v3965
        %v3967 = vsel %vm3915, %v3898, %v3966
        %v3968 = vsel %vm3917, %v3902, %v3967
        %v3969 = vsel %vm3919, %v3906, %v3968
        %3978 = vxpose.xlu0.b32.start [1/16] %v3920, 128
        %3979 = vxpose.xlu0.b32.cont [2/16] %v3927, 128
        %3980 = vxpose.xlu0.b32.cont [3/16] %v3934, 128
        %3981 = vxpose.xlu0.b32.cont [4/16] %v3941, 128
        %3982 = vxpose.xlu0.b32.cont [5/16] %v3948, 128
        %3983 = vxpose.xlu0.b32.cont [6/16] %v3955, 128
        %3984 = vxpose.xlu0.b32.cont [7/16] %v3962, 128
        %3985 = vxpose.xlu0.b32.cont [8/16] %v3969, 128
        %3986 = vxpose.xlu0.b32.cont [9/16] 0.0, 128
        %3987 = vxpose.xlu0.b32.cont [10/16] 0.0, 128
        %3988 = vxpose.xlu0.b32.cont [11/16] 0.0, 128
        %3989 = vxpose.xlu0.b32.cont [12/16] 0.0, 128
        %3990 = vxpose.xlu0.b32.cont [13/16] 0.0, 128
        %3991 = vxpose.xlu0.b32.cont [14/16] 0.0, 128
        %3992 = vxpose.xlu0.b32.cont [15/16] 0.0, 128
        %3993 = vxpose.xlu0.b32.end [16/16] 0.0, 128
        %v3994 = vpop.trf.xlu0
        %v3995 = vpop.trf.xlu0
        %v3996 = vpop.trf.xlu0
        %v3997 = vpop.trf.xlu0
        %v3998 = vpop.trf.xlu0
        %v3999 = vpop.trf.xlu0
        %v4000 = vpop.trf.xlu0
        %v4001 = vpop.trf.xlu0
        %v4002 = vpop.trf.xlu0
        %v4003 = vpop.trf.xlu0
        %v4004 = vpop.trf.xlu0
        %v4005 = vpop.trf.xlu0
        %v4006 = vpop.trf.xlu0
        %v4007 = vpop.trf.xlu0
        %v4008 = vpop.trf.xlu0
        %v4009 = vpop.trf.xlu0
        %vm4010 = vcmask 523264
        %4011 = vst.msk [vmem:[%s290] sm:$0xff] %vm4010, %v3994
        %s4012 = sand.u32 %s142, 1
        %s4013 = scalar_lea.sflag [#allocation4], %s4012
        %s4014 = sand.u32 %s142, 1
        %s4015 = smul.addr %s4014, 8
        %s4016 = scalar_lea.vmem [#allocation11], %s4015
        // Predicated region
        $region61: #{tpu_custom_call.1} parent=39 // pred_check
          %p4017 = pneg %p152
        $region62: #{tpu_custom_call.1} parent=39 // pred_check_branch
          %4019 = sbr.rel (%p4017) target = $region64
        $region63: #{tpu_custom_call.1} parent=39 // pred_region
          %s4021 = ssub.s32 128, 128
          %4022 = vsyncadd %s4013, %s4021
          %s4023 = smul.addr %s24, 128
          %s4024 = scalar_lea.hbm %s5, %s4023
          %s4026 = sshll.u32 %s4016, 4
          %s4027 = int_to_ptr.vmem [resolvable:$true] %s4026
          %4029 = dma.vmem_to_hbm [thread:$0]  %s4027, 128, %s4024, %s4013
        $region64: #{tpu_custom_call.1} parent=39 // pred_fallthru
          _
      $region40: #{tpu_custom_call.1} parent=5 // pred_fallthru
        _
      %p4030 = scmp.le.s32.totalorder 2, %s19
      // Predicated region
      $region65: #{tpu_custom_call.1} parent=5 // pred_check
        %p4031 = pneg %p4030
      $region66: #{tpu_custom_call.1} parent=5 // pred_check_branch
        %4033 = sbr.rel (%p4031) target = $region68
      $region67: #{tpu_custom_call.1} parent=5 // pred_region
        %s4034 = ssub.s32 %s19, 2
        // Predicated region
        $region69: #{tpu_custom_call.1} parent=67 // pred_check
          %p4035 = pneg %p158
        $region70: #{tpu_custom_call.1} parent=67 // pred_check_branch
          %4037 = sbr.rel (%p4035) target = $region72
        $region71: #{tpu_custom_call.1} parent=67 // pred_region
          %s4038 = sand.u32 %s143, 1
          %s4039 = scalar_lea.sflag [#allocation4], %s4038
          %s4040 = sand.u32 %s143, 1
          %s4041 = smul.addr %s4040, 8
          %s4042 = scalar_lea.vmem [#allocation11], %s4041
          %4043 = dma.done %s4039, 128
        $region72: #{tpu_custom_call.1} parent=67 // pred_fallthru
          _
      $region68: #{tpu_custom_call.1} parent=5 // pred_fallthru
        _
    $region6: #{tpu_custom_call.1} parent=1 // loop_footer
      %s23 = sadd.s32 1, %s19
    $region7: #{tpu_custom_call.1} parent=1 // loop_footer_branch
      %18 = sbr.rel target = $region3
    $region8: #{tpu_custom_call.1} parent=1 // loop_exit
      _
    %4044 = vsyncpa [#allocation3], 1
    %s4045 = scalar_lea.sflag [#allocation3], 1
    %4046 = vsyncpa %s4045, 1
    %4047 = vsyncpa [#allocation6], 1
    %4048 = vsyncpa [#allocation9], 1
    %4049 = vsyncpa [#allocation4], 1
    %s4050 = scalar_lea.sflag [#allocation4], 1
    %4051 = vsyncpa %s4050, 1

</llo_original>
